<compile_context>
chip_gen: v7x
topology: tpu7x:2x2x1
jax: 0.10.0
libtpu: 0.0.40
codegen_flags: <defaults>
</compile_context>

<pallas_src>
import functools

import jax
import jax.numpy as jnp
import numpy as np
from jax.experimental import pallas as pl
from jax.experimental.pallas import tpu as pltpu

NEG_INF = -1e30


# ----------------------------- kernel helpers -----------------------------

def _layer_norm(x, gamma, beta, eps=1e-5):
    # gamma/beta are (1, d_model) -> broadcast against (rows, d_model)
    mu = jnp.mean(x, axis=-1, keepdims=True)
    var = jnp.mean(jnp.square(x - mu), axis=-1, keepdims=True)
    return (x - mu) * jax.lax.rsqrt(var + eps) * gamma + beta


def _mha_heads(q2d, k2d, v2d, bias, wp, *, n_heads, d_k, d_v, cd):
    """Head-batched scaled-dot attention + fused output projection.

    q2d: (Sq, H*d_k)  k2d: (Sk, H*d_k)  v2d: (Sk, H*d_v)
    bias: additive mask (0 keep / -1e30 drop), broadcastable vs (H, Sq, Sk)
    wp:   (H*d_v, D) output projection
    returns (Sq, D) in f32
    """
    # One head-major relayout per operand (H lane slices stacked on a new
    # leading axis), done once per attention stage per grid step.
    # TODO(synk): collapse to a single pltpu.einshape('q(hd)->hqd') relayout
    # once grouped-axis einshape is validated on the target Mosaic version.
    qh = jnp.stack([q2d[:, h * d_k:(h + 1) * d_k] for h in range(n_heads)], 0)
    kh = jnp.stack([k2d[:, h * d_k:(h + 1) * d_k] for h in range(n_heads)], 0)
    vh = jnp.stack([v2d[:, h * d_v:(h + 1) * d_v] for h in range(n_heads)], 0)

    s = jnp.einsum("hqd,hkd->hqk", qh.astype(cd), kh.astype(cd),
                   preferred_element_type=jnp.float32)           # (H, Sq, Sk)
    s = s * (1.0 / float(np.sqrt(d_k))) + bias                    # additive mask
    m = jnp.max(s, axis=-1, keepdims=True)
    e = jnp.exp(s - m)
    # Exact reciprocal keeps the 1e-4 match with the f32 reference; flip to
    # approx=True (EUP slot, essentially free) when the precision budget allows.
    p = e * pl.reciprocal(jnp.sum(e, axis=-1, keepdims=True), approx=False)
    o = jnp.einsum("hqk,hkd->hqd", p.astype(cd), vh.astype(cd),
                   preferred_element_type=jnp.float32)            # (H, Sq, d_v)

    # Fused head-reduction + output projection: repack heads into lanes and do
    # ONE (Sq, H*d_v) @ (H*d_v, D) contraction instead of H tiny dots + a sum.
    o2d = jnp.concatenate([o[h] for h in range(n_heads)], axis=-1)
    return jnp.dot(o2d.astype(cd), wp.astype(cd),
                   preferred_element_type=jnp.float32)


def _decoder_block_kernel(
    x_ref, ctx_ref, pad_bias_ref,
    wqkv1_ref, wp1_ref, wq2_ref, wkv2_ref, wp2_ref,
    w1_ref, b1_ref, w2_ref, b2_ref,
    g1_ref, be1_ref, g2_ref, be2_ref, g3_ref, be3_ref,
    out_ref,
    *, n_heads, d_k, d_v, compute_dtype,
):
    Hk = n_heads * d_k
    cd = compute_dtype

    x = x_ref[0]                    # (Sd, D)  one batch element per grid step
    ctx = ctx_ref[0]                # (Se, D)
    pad_bias = pad_bias_ref[0]      # (1, Se) additive key-padding bias
    Sd = x.shape[0]

    def mm(a, b):
        return jnp.dot(a.astype(cd), b.astype(cd),
                       preferred_element_type=jnp.float32)

    # Causal bias generated in-kernel (no O(Sd^2) mask streamed from HBM).
    # TODO(synk): with a flash-style query-tile grid axis, generate this per
    # (tq, tk) tile from program_id offsets instead of a full (Sd, Sd) slab.
    row = jax.lax.broadcasted_iota(jnp.int32, (Sd, Sd), 0)
    col = jax.lax.broadcasted_iota(jnp.int32, (Sd, Sd), 1)
    causal_bias = jnp.where(row >= col, 0.0, NEG_INF).astype(jnp.float32)

    # ---- 1) causal self-attention (fused Q|K|V matmul) + residual + LN ----
    qkv1 = mm(x, wqkv1_ref[...])                        # (Sd, 2*Hk + Hv)
    attn1 = _mha_heads(qkv1[:, :Hk], qkv1[:, Hk:2 * Hk], qkv1[:, 2 * Hk:],
                       causal_bias[None], wp1_ref[...],
                       n_heads=n_heads, d_k=d_k, d_v=d_v, cd=cd)
    norm1 = _layer_norm(x + attn1, g1_ref[...], be1_ref[...])

    # ---- 2) cross attention (fused K|V matmul over encoder context) ----
    q2 = mm(norm1, wq2_ref[...])
    kv2 = mm(ctx, wkv2_ref[...])                        # (Se, Hk + Hv)
    attn2 = _mha_heads(q2, kv2[:, :Hk], kv2[:, Hk:],
                       pad_bias[None], wp2_ref[...],
                       n_heads=n_heads, d_k=d_k, d_v=d_v, cd=cd)
    norm2 = _layer_norm(norm1 + attn2, g2_ref[...], be2_ref[...])

    # ---- 3) position-wise FFN + residual + LN ----
    hidden = jnp.maximum(mm(norm2, w1_ref[...]) + b1_ref[...], 0.0)
    ffn = mm(hidden, w2_ref[...]) + b2_ref[...]
    out_ref[0] = _layer_norm(norm2 + ffn, g3_ref[...], be3_ref[...])


# ------------------------------ host wrapper ------------------------------

def _validate_masks(causal_mask, pad_mask, Sd):
    """Best-effort validation of the assumptions baked into the kernel.

    Skipped when the masks are traced values (e.g. under jit)."""
    try:
        cm = np.asarray(causal_mask)
        pm = np.asarray(pad_mask)
    except Exception:        # TracerArrayConversionError and friends
        return
    tril = np.tril(np.ones((Sd, Sd), dtype=bool))
    if not np.array_equal(cm != 0, np.broadcast_to(tril, cm.shape)):
        raise ValueError("kernel regenerates a lower-triangular causal mask; "
                         "non-triangular causal_mask is not supported")
    if not np.array_equal(pm != 0, np.broadcast_to(pm[:, :1, :] != 0, pm.shape)):
        raise ValueError("pad_mask must be query-independent (per-key padding)")


def decoder_block(inputs, context, causal_mask, pad_mask, params,
                  *, n_heads, d_k, d_v, compute_dtype=jnp.float32):
    B, Sd, D = inputs.shape
    _, Se, _ = context.shape
    _validate_masks(causal_mask, pad_mask, Sd)

    # padding mask is key-only: compress (B, Sd, Se) -> (B, 1, Se) additive bias
    # so only O(B*Se) is streamed instead of O(B*Sd*Se).
    pad_bias = jnp.where(pad_mask[:, :1, :] == 0, NEG_INF, 0.0).astype(jnp.float32)

    # fused projection weights: one MXU push for Q|K|V and for K|V of cross attn
    wqkv1 = jnp.concatenate([params["wq1"], params["wk1"], params["wv1"]], axis=1)
    wkv2 = jnp.concatenate([params["wk2"], params["wv2"]], axis=1)

    operands = [
        inputs.astype(jnp.float32), context.astype(jnp.float32), pad_bias,
        wqkv1, params["wp1"],
        params["wq2"], wkv2, params["wp2"],
        params["w1"], params["b1"], params["w2"], params["b2"],
        params["g1"], params["be1"], params["g2"], params["be2"],
        params["g3"], params["be3"],
    ]

    def replicated(shape):
        nd = len(shape)

        def imap(b):
            return (0,) * nd

        return pl.BlockSpec(shape, imap)

    in_specs = [
        pl.BlockSpec((1, Sd, D), lambda b: (b, 0, 0)),   # decoder inputs
        pl.BlockSpec((1, Se, D), lambda b: (b, 0, 0)),   # encoder context
        pl.BlockSpec((1, 1, Se), lambda b: (b, 0, 0)),   # per-key pad bias
    ] + [replicated(op.shape) for op in operands[3:]]    # weights: VMEM-resident
    out_specs = pl.BlockSpec((1, Sd, D), lambda b: (b, 0, 0))

    # vmem_limit sized to the resident footprint (generous headroom), capped at
    # a value that is safe on every generation (v7x has 64 MiB per TC).
    footprint = sum(int(np.prod(op.shape)) * op.dtype.itemsize for op in operands)
    footprint += B * Sd * D * 4
    vmem_limit = int(min(max(8 * footprint, 16 << 20), 64 << 20))

    kernel = functools.partial(_decoder_block_kernel, n_heads=n_heads,
                               d_k=d_k, d_v=d_v, compute_dtype=compute_dtype)

    # Batch is a "parallel" grid axis: no in-kernel Python loop over B, and on
    # v7x the two TensorCores split the batch.  Weight BlockSpecs use constant
    # index maps, so they are not re-fetched across grid steps.
    # TODO(synk): for large Sd/Se/d_ff, add flash-style query/key tiling
    # (online softmax, "arbitrary" reduction axis) so the per-step footprint
    # stays within v7x's 64 MiB VMEM, and pad d_model-facing dims to 128 lanes
    # for dense (unmasked) stores.
    out = pl.pallas_call(
        kernel,
        grid=(B,),
        in_specs=in_specs,
        out_specs=out_specs,
        out_shape=jax.ShapeDtypeStruct((B, Sd, D), jnp.float32),
        compiler_params=pltpu.CompilerParams(
            dimension_semantics=("parallel",),
            vmem_limit_bytes=vmem_limit),
    )(*operands)
    return out


# ------------------------- pure-JAX reference -------------------------

def _ref_mha(x_q, x_kv, mask, wq, wk, wv, wp, n_heads, d_k, d_v):
    B, Sq, _ = x_q.shape
    Sk = x_kv.shape[1]
    q = (x_q @ wq).reshape(B, Sq, n_heads, d_k).transpose(0, 2, 1, 3)
    k = (x_kv @ wk).reshape(B, Sk, n_heads, d_k).transpose(0, 2, 1, 3)
    v = (x_kv @ wv).reshape(B, Sk, n_heads, d_v).transpose(0, 2, 1, 3)
    scores = jnp.einsum("bhqd,bhkd->bhqk", q, k) / jnp.sqrt(jnp.float32(d_k))
    scores = jnp.where(mask[:, None, :, :] == 0, -jnp.inf, scores)
    scores = jax.nn.softmax(scores, axis=-1)
    out = jnp.einsum("bhqk,bhkd->bhqd", scores, v)
    out = out.transpose(0, 2, 1, 3).reshape(B, Sq, n_heads * d_v)
    return out @ wp


def _ref_ln(x, g, b, eps=1e-5):
    mu = jnp.mean(x, axis=-1, keepdims=True)
    var = jnp.mean((x - mu) ** 2, axis=-1, keepdims=True)
    return (x - mu) / jnp.sqrt(var + eps) * g + b


def decoder_block_reference(inputs, context, causal_mask, pad_mask, p,
                            *, n_heads, d_k, d_v):
    ca = _ref_mha(inputs, inputs, causal_mask,
                  p["wq1"], p["wk1"], p["wv1"], p["wp1"], n_heads, d_k, d_v)
    n1 = _ref_ln(inputs + ca, p["g1"], p["be1"])
    cr = _ref_mha(n1, context, pad_mask,
                  p["wq2"], p["wk2"], p["wv2"], p["wp2"], n_heads, d_k, d_v)
    n2 = _ref_ln(n1 + cr, p["g2"], p["be2"])
    ff = jnp.maximum(n2 @ p["w1"] + p["b1"], 0.0) @ p["w2"] + p["b2"]
    return _ref_ln(n2 + ff, p["g3"], p["be3"])


# --------------------------------- main ---------------------------------

if __name__ == "__main__":
    B, Sd, Se = 2, 8, 8
    d_model, d_k, d_v, n_heads, d_ff = 32, 16, 16, 4, 64

    key = jax.random.PRNGKey(0)
    ks = jax.random.split(key, 16)

    def w(k, shape, scale=0.05):
        return (scale * jax.random.normal(k, shape)).astype(jnp.float32)

    params = {
        # causal self-attention projections, stored (in, out) = W^T
        "wq1": w(ks[0], (d_model, n_heads * d_k)),
        "wk1": w(ks[1], (d_model, n_heads * d_k)),
        "wv1": w(ks[2], (d_model, n_heads * d_v)),
        "wp1": w(ks[3], (n_heads * d_v, d_model)),
        # cross-attention projections
        "wq2": w(ks[4], (d_model, n_heads * d_k)),
        "wk2": w(ks[5], (d_model, n_heads * d_k)),
        "wv2": w(ks[6], (d_model, n_heads * d_v)),
        "wp2": w(ks[7], (n_heads * d_v, d_model)),
        # FFN (biases kept 2-D (1, F) for clean lane layout / broadcasting)
        "w1": w(ks[8], (d_model, d_ff)),
        "b1": w(ks[9], (1, d_ff)),
        "w2": w(ks[10], (d_ff, d_model)),
        "b2": w(ks[11], (1, d_model)),
        # LayerNorms (PyTorch default init: gamma=1, beta=0)
        "g1": jnp.ones((1, d_model), jnp.float32),
        "be1": jnp.zeros((1, d_model), jnp.float32),
        "g2": jnp.ones((1, d_model), jnp.float32),
        "be2": jnp.zeros((1, d_model), jnp.float32),
        "g3": jnp.ones((1, d_model), jnp.float32),
        "be3": jnp.zeros((1, d_model), jnp.float32),
    }

    inputs = w(ks[12], (B, Sd, d_model), scale=1.0)
    context = w(ks[13], (B, Se, d_model), scale=1.0)
    # causal mask: lower-triangular, 1 = attend, 0 = masked
    causal_mask = jnp.tril(jnp.ones((Sd, Sd), jnp.float32))
    causal_mask = jnp.broadcast_to(causal_mask, (B, Sd, Sd))
    # pad mask: mask out the last encoder position of batch element 1
    pad_mask = jnp.ones((B, Sd, Se), jnp.float32)
    pad_mask = pad_mask.at[1, :, Se - 1].set(0.0)

    # default compute_dtype=f32 keeps the 1e-4 match with the f32 reference;
    # pass compute_dtype=jnp.bfloat16 for native-MXU throughput at larger shapes.
    out = decoder_block(inputs, context, causal_mask, pad_mask, params,
                        n_heads=n_heads, d_k=d_k, d_v=d_v)
    out = jax.block_until_ready(out)

    ref = decoder_block_reference(inputs, context, causal_mask, pad_mask, params,
                                  n_heads=n_heads, d_k=d_k, d_v=d_v)
    np.testing.assert_allclose(np.asarray(out), np.asarray(ref),
                               rtol=1e-4, atol=1e-4)
    print("KERNEL_OK")
</pallas_src>

<mosaic_0001>
module attributes {stable_mosaic.version = 11 : i64} {
  func.func @_decoder_block_kernel(%arg0: i32, %arg1: memref<1x8x32xf32, #tpu.memory_space<vmem>>, %arg2: memref<1x8x32xf32, #tpu.memory_space<vmem>>, %arg3: memref<1x1x8xf32, #tpu.memory_space<vmem>>, %arg4: memref<32x192xf32, #tpu.memory_space<vmem>>, %arg5: memref<64x32xf32, #tpu.memory_space<vmem>>, %arg6: memref<32x64xf32, #tpu.memory_space<vmem>>, %arg7: memref<32x128xf32, #tpu.memory_space<vmem>>, %arg8: memref<64x32xf32, #tpu.memory_space<vmem>>, %arg9: memref<32x64xf32, #tpu.memory_space<vmem>>, %arg10: memref<1x64xf32, #tpu.memory_space<vmem>>, %arg11: memref<64x32xf32, #tpu.memory_space<vmem>>, %arg12: memref<1x32xf32, #tpu.memory_space<vmem>>, %arg13: memref<1x32xf32, #tpu.memory_space<vmem>>, %arg14: memref<1x32xf32, #tpu.memory_space<vmem>>, %arg15: memref<1x32xf32, #tpu.memory_space<vmem>>, %arg16: memref<1x32xf32, #tpu.memory_space<vmem>>, %arg17: memref<1x32xf32, #tpu.memory_space<vmem>>, %arg18: memref<1x32xf32, #tpu.memory_space<vmem>>, %arg19: memref<1x8x32xf32, #tpu.memory_space<vmem>>) attributes {dimension_semantics = [#tpu.dimension_semantics<parallel>], iteration_bounds = array<i64: 2>, scalar_prefetch = 0 : i64, scratch_operands = 0 : i64, tpu.core_type = #tpu.core_type<tc>, window_params = [{transform_indices = @transform_0, window_bounds = array<i64: 1, 8, 32>}, {transform_indices = @transform_1, window_bounds = array<i64: 1, 8, 32>}, {transform_indices = @transform_2, window_bounds = array<i64: 1, 1, 8>}, {pipeline_mode = #tpu.pipeline_mode<synchronous>, transform_indices = @transform_3, window_bounds = array<i64: 32, 192>}, {pipeline_mode = #tpu.pipeline_mode<synchronous>, transform_indices = @transform_4, window_bounds = array<i64: 64, 32>}, {pipeline_mode = #tpu.pipeline_mode<synchronous>, transform_indices = @transform_5, window_bounds = array<i64: 32, 64>}, {pipeline_mode = #tpu.pipeline_mode<synchronous>, transform_indices = @transform_6, window_bounds = array<i64: 32, 128>}, {pipeline_mode = #tpu.pipeline_mode<synchronous>, transform_indices = @transform_7, window_bounds = array<i64: 64, 32>}, {pipeline_mode = #tpu.pipeline_mode<synchronous>, transform_indices = @transform_8, window_bounds = array<i64: 32, 64>}, {pipeline_mode = #tpu.pipeline_mode<synchronous>, transform_indices = @transform_9, window_bounds = array<i64: 1, 64>}, {pipeline_mode = #tpu.pipeline_mode<synchronous>, transform_indices = @transform_10, window_bounds = array<i64: 64, 32>}, {pipeline_mode = #tpu.pipeline_mode<synchronous>, transform_indices = @transform_11, window_bounds = array<i64: 1, 32>}, {pipeline_mode = #tpu.pipeline_mode<synchronous>, transform_indices = @transform_12, window_bounds = array<i64: 1, 32>}, {pipeline_mode = #tpu.pipeline_mode<synchronous>, transform_indices = @transform_13, window_bounds = array<i64: 1, 32>}, {pipeline_mode = #tpu.pipeline_mode<synchronous>, transform_indices = @transform_14, window_bounds = array<i64: 1, 32>}, {pipeline_mode = #tpu.pipeline_mode<synchronous>, transform_indices = @transform_15, window_bounds = array<i64: 1, 32>}, {pipeline_mode = #tpu.pipeline_mode<synchronous>, transform_indices = @transform_16, window_bounds = array<i64: 1, 32>}, {pipeline_mode = #tpu.pipeline_mode<synchronous>, transform_indices = @transform_17, window_bounds = array<i64: 1, 32>}, {transform_indices = @transform_18, window_bounds = array<i64: 1, 8, 32>}]} {
    %c0 = arith.constant 0 : index
    %c0_0 = arith.constant 0 : index
    %c0_1 = arith.constant 0 : index
    %0 = vector.load %arg1[%c0, %c0_0, %c0_1] : memref<1x8x32xf32, #tpu.memory_space<vmem>>, vector<1x8x32xf32>
    %1 = vector.shape_cast %0 : vector<1x8x32xf32> to vector<8x32xf32>
    %c0_2 = arith.constant 0 : index
    %c0_3 = arith.constant 0 : index
    %c0_4 = arith.constant 0 : index
    %2 = vector.load %arg2[%c0_2, %c0_3, %c0_4] : memref<1x8x32xf32, #tpu.memory_space<vmem>>, vector<1x8x32xf32>
    %3 = vector.shape_cast %2 : vector<1x8x32xf32> to vector<8x32xf32>
    %c0_5 = arith.constant 0 : index
    %c0_6 = arith.constant 0 : index
    %c0_7 = arith.constant 0 : index
    %4 = vector.load %arg3[%c0_5, %c0_6, %c0_7] : memref<1x1x8xf32, #tpu.memory_space<vmem>>, vector<1x1x8xf32>
    %5 = vector.shape_cast %4 : vector<1x1x8xf32> to vector<1x8xf32>
    %6 = tpu.iota {dimensions = array<i32: 0>} : vector<8x8xi32>
    %7 = tpu.iota {dimensions = array<i32: 1>} : vector<8x8xi32>
    %8 = arith.cmpi sge, %6, %7 : vector<8x8xi32>
    %cst = arith.constant 0.000000e+00 : f32
    %cst_8 = arith.constant -1.000000e+30 : f32
    %9 = vector.broadcast %cst : f32 to vector<8x8xf32>
    %10 = vector.broadcast %cst_8 : f32 to vector<8x8xf32>
    %11 = arith.select %8, %9, %10 : vector<8x8xi1>, vector<8x8xf32>
    %c0_9 = arith.constant 0 : index
    %c0_10 = arith.constant 0 : index
    %12 = vector.load %arg4[%c0_9, %c0_10] : memref<32x192xf32, #tpu.memory_space<vmem>>, vector<32x192xf32>
    %cst_11 = arith.constant dense<0.000000e+00> : vector<8x192xf32>
    %13 = tpu.matmul %1, %12, %cst_11 {dimension_numbers = #tpu.dot_dimension_numbers<[1], [0], [0], [1], [0, 0, 1, 1], [], []>} : vector<8x32xf32>, vector<32x192xf32>, vector<8x192xf32> -> vector<8x192xf32>
    %14 = vector.extract_strided_slice %13 {offsets = [0, 0], sizes = [8, 64], strides = [1, 1]} : vector<8x192xf32> to vector<8x64xf32>
    %15 = vector.extract_strided_slice %13 {offsets = [0, 64], sizes = [8, 64], strides = [1, 1]} : vector<8x192xf32> to vector<8x64xf32>
    %16 = vector.extract_strided_slice %13 {offsets = [0, 128], sizes = [8, 64], strides = [1, 1]} : vector<8x192xf32> to vector<8x64xf32>
    %17 = vector.shape_cast %11 : vector<8x8xf32> to vector<1x8x8xf32>
    %c0_12 = arith.constant 0 : index
    %c0_13 = arith.constant 0 : index
    %18 = vector.load %arg5[%c0_12, %c0_13] : memref<64x32xf32, #tpu.memory_space<vmem>>, vector<64x32xf32>
    %19 = vector.extract_strided_slice %14 {offsets = [0, 0], sizes = [8, 16], strides = [1, 1]} : vector<8x64xf32> to vector<8x16xf32>
    %20 = vector.extract_strided_slice %14 {offsets = [0, 16], sizes = [8, 16], strides = [1, 1]} : vector<8x64xf32> to vector<8x16xf32>
    %21 = vector.extract_strided_slice %14 {offsets = [0, 32], sizes = [8, 16], strides = [1, 1]} : vector<8x64xf32> to vector<8x16xf32>
    %22 = vector.extract_strided_slice %14 {offsets = [0, 48], sizes = [8, 16], strides = [1, 1]} : vector<8x64xf32> to vector<8x16xf32>
    %23 = vector.shape_cast %19 : vector<8x16xf32> to vector<1x8x16xf32>
    %24 = vector.shape_cast %20 : vector<8x16xf32> to vector<1x8x16xf32>
    %25 = vector.shape_cast %21 : vector<8x16xf32> to vector<1x8x16xf32>
    %26 = vector.shape_cast %22 : vector<8x16xf32> to vector<1x8x16xf32>
    %27 = tpu.concatenate %23, %24, %25, %26 in 0 : vector<1x8x16xf32>, vector<1x8x16xf32>, vector<1x8x16xf32>, vector<1x8x16xf32> -> vector<4x8x16xf32>
    %28 = vector.extract_strided_slice %15 {offsets = [0, 0], sizes = [8, 16], strides = [1, 1]} : vector<8x64xf32> to vector<8x16xf32>
    %29 = vector.extract_strided_slice %15 {offsets = [0, 16], sizes = [8, 16], strides = [1, 1]} : vector<8x64xf32> to vector<8x16xf32>
    %30 = vector.extract_strided_slice %15 {offsets = [0, 32], sizes = [8, 16], strides = [1, 1]} : vector<8x64xf32> to vector<8x16xf32>
    %31 = vector.extract_strided_slice %15 {offsets = [0, 48], sizes = [8, 16], strides = [1, 1]} : vector<8x64xf32> to vector<8x16xf32>
    %32 = vector.shape_cast %28 : vector<8x16xf32> to vector<1x8x16xf32>
    %33 = vector.shape_cast %29 : vector<8x16xf32> to vector<1x8x16xf32>
    %34 = vector.shape_cast %30 : vector<8x16xf32> to vector<1x8x16xf32>
    %35 = vector.shape_cast %31 : vector<8x16xf32> to vector<1x8x16xf32>
    %36 = tpu.concatenate %32, %33, %34, %35 in 0 : vector<1x8x16xf32>, vector<1x8x16xf32>, vector<1x8x16xf32>, vector<1x8x16xf32> -> vector<4x8x16xf32>
    %37 = vector.extract_strided_slice %16 {offsets = [0, 0], sizes = [8, 16], strides = [1, 1]} : vector<8x64xf32> to vector<8x16xf32>
    %38 = vector.extract_strided_slice %16 {offsets = [0, 16], sizes = [8, 16], strides = [1, 1]} : vector<8x64xf32> to vector<8x16xf32>
    %39 = vector.extract_strided_slice %16 {offsets = [0, 32], sizes = [8, 16], strides = [1, 1]} : vector<8x64xf32> to vector<8x16xf32>
    %40 = vector.extract_strided_slice %16 {offsets = [0, 48], sizes = [8, 16], strides = [1, 1]} : vector<8x64xf32> to vector<8x16xf32>
    %41 = vector.shape_cast %37 : vector<8x16xf32> to vector<1x8x16xf32>
    %42 = vector.shape_cast %38 : vector<8x16xf32> to vector<1x8x16xf32>
    %43 = vector.shape_cast %39 : vector<8x16xf32> to vector<1x8x16xf32>
    %44 = vector.shape_cast %40 : vector<8x16xf32> to vector<1x8x16xf32>
    %45 = tpu.concatenate %41, %42, %43, %44 in 0 : vector<1x8x16xf32>, vector<1x8x16xf32>, vector<1x8x16xf32>, vector<1x8x16xf32> -> vector<4x8x16xf32>
    "tpu.trace_start"() <{level = 10 : i32, message = "hqd,hkd->hqk"}> : () -> ()
    %cst_14 = arith.constant dense<0.000000e+00> : vector<4x8x8xf32>
    %46 = tpu.matmul %27, %36, %cst_14 {dimension_numbers = #tpu.dot_dimension_numbers<[2], [2], [1], [1], [0, 0, 0, 1, 1, 1], [0], [0]>} : vector<4x8x16xf32>, vector<4x8x16xf32>, vector<4x8x8xf32> -> vector<4x8x8xf32>
    "tpu.trace_stop"() : () -> ()
    %cst_15 = arith.constant 2.500000e-01 : f32
    %47 = vector.broadcast %cst_15 : f32 to vector<4x8x8xf32>
    %48 = arith.mulf %46, %47 : vector<4x8x8xf32>
    %49 = vector.broadcast %17 : vector<1x8x8xf32> to vector<4x8x8xf32>
    %50 = arith.addf %48, %49 : vector<4x8x8xf32>
    %cst_16 = arith.constant dense<0xFF800000> : vector<4x8xf32>
    %51 = vector.multi_reduction <maximumf>, %50, %cst_16 [2] : vector<4x8x8xf32> to vector<4x8xf32>
    %52 = vector.shape_cast %51 : vector<4x8xf32> to vector<4x8x1xf32>
    %53 = vector.broadcast %52 : vector<4x8x1xf32> to vector<4x8x8xf32>
    %54 = arith.subf %50, %53 : vector<4x8x8xf32>
    %55 = math.exp %54 : vector<4x8x8xf32>
    %cst_17 = arith.constant dense<0.000000e+00> : vector<4x8xf32>
    %56 = vector.multi_reduction <add>, %55, %cst_17 [2] : vector<4x8x8xf32> to vector<4x8xf32>
    %57 = vector.shape_cast %56 : vector<4x8xf32> to vector<4x8x1xf32>
    %58 = tpu.reciprocal %57 : vector<4x8x1xf32> -> vector<4x8x1xf32>
    %59 = vector.broadcast %58 : vector<4x8x1xf32> to vector<4x8x8xf32>
    %60 = arith.mulf %55, %59 : vector<4x8x8xf32>
    "tpu.trace_start"() <{level = 10 : i32, message = "hqk,hkd->hqd"}> : () -> ()
    %cst_18 = arith.constant dense<0.000000e+00> : vector<4x8x16xf32>
    %61 = tpu.matmul %60, %45, %cst_18 {dimension_numbers = #tpu.dot_dimension_numbers<[2], [1], [1], [2], [0, 0, 0, 1, 1, 2], [0], [0]>} : vector<4x8x8xf32>, vector<4x8x16xf32>, vector<4x8x16xf32> -> vector<4x8x16xf32>
    "tpu.trace_stop"() : () -> ()
    %62 = vector.extract_strided_slice %61 {offsets = [0, 0, 0], sizes = [1, 8, 16], strides = [1, 1, 1]} : vector<4x8x16xf32> to vector<1x8x16xf32>
    %63 = vector.shape_cast %62 : vector<1x8x16xf32> to vector<8x16xf32>
    %64 = vector.extract_strided_slice %61 {offsets = [1, 0, 0], sizes = [1, 8, 16], strides = [1, 1, 1]} : vector<4x8x16xf32> to vector<1x8x16xf32>
    %65 = vector.shape_cast %64 : vector<1x8x16xf32> to vector<8x16xf32>
    %66 = vector.extract_strided_slice %61 {offsets = [2, 0, 0], sizes = [1, 8, 16], strides = [1, 1, 1]} : vector<4x8x16xf32> to vector<1x8x16xf32>
    %67 = vector.shape_cast %66 : vector<1x8x16xf32> to vector<8x16xf32>
    %68 = vector.extract_strided_slice %61 {offsets = [3, 0, 0], sizes = [1, 8, 16], strides = [1, 1, 1]} : vector<4x8x16xf32> to vector<1x8x16xf32>
    %69 = vector.shape_cast %68 : vector<1x8x16xf32> to vector<8x16xf32>
    %70 = tpu.concatenate %63, %65, %67, %69 in 1 : vector<8x16xf32>, vector<8x16xf32>, vector<8x16xf32>, vector<8x16xf32> -> vector<8x64xf32>
    %cst_19 = arith.constant dense<0.000000e+00> : vector<8x32xf32>
    %71 = tpu.matmul %70, %18, %cst_19 {dimension_numbers = #tpu.dot_dimension_numbers<[1], [0], [0], [1], [0, 0, 1, 1], [], []>} : vector<8x64xf32>, vector<64x32xf32>, vector<8x32xf32> -> vector<8x32xf32>
    %72 = arith.addf %1, %71 : vector<8x32xf32>
    %c0_20 = arith.constant 0 : index
    %c0_21 = arith.constant 0 : index
    %73 = vector.load %arg13[%c0_20, %c0_21] : memref<1x32xf32, #tpu.memory_space<vmem>>, vector<1x32xf32>
    %c0_22 = arith.constant 0 : index
    %c0_23 = arith.constant 0 : index
    %74 = vector.load %arg14[%c0_22, %c0_23] : memref<1x32xf32, #tpu.memory_space<vmem>>, vector<1x32xf32>
    %cst_24 = arith.constant dense<0.000000e+00> : vector<8xf32>
    %75 = vector.multi_reduction <add>, %72, %cst_24 [1] : vector<8x32xf32> to vector<8xf32>
    %76 = vector.shape_cast %75 : vector<8xf32> to vector<8x1xf32>
    %cst_25 = arith.constant 3.200000e+01 : f32
    %77 = vector.broadcast %cst_25 : f32 to vector<8x1xf32>
    %78 = arith.divf %76, %77 : vector<8x1xf32>
    %79 = vector.broadcast %78 : vector<8x1xf32> to vector<8x32xf32>
    %80 = arith.subf %72, %79 : vector<8x32xf32>
    %81 = arith.mulf %80, %80 : vector<8x32xf32>
    %cst_26 = arith.constant dense<0.000000e+00> : vector<8xf32>
    %82 = vector.multi_reduction <add>, %81, %cst_26 [1] : vector<8x32xf32> to vector<8xf32>
    %83 = vector.shape_cast %82 : vector<8xf32> to vector<8x1xf32>
    %cst_27 = arith.constant 3.200000e+01 : f32
    %84 = vector.broadcast %cst_27 : f32 to vector<8x1xf32>
    %85 = arith.divf %83, %84 : vector<8x1xf32>
    %86 = vector.broadcast %78 : vector<8x1xf32> to vector<8x32xf32>
    %87 = arith.subf %72, %86 : vector<8x32xf32>
    %cst_28 = arith.constant 9.99999974E-6 : f32
    %88 = vector.broadcast %cst_28 : f32 to vector<8x1xf32>
    %89 = arith.addf %85, %88 : vector<8x1xf32>
    %90 = math.rsqrt %89 : vector<8x1xf32>
    %91 = vector.broadcast %90 : vector<8x1xf32> to vector<8x32xf32>
    %92 = arith.mulf %87, %91 : vector<8x32xf32>
    %93 = vector.broadcast %73 : vector<1x32xf32> to vector<8x32xf32>
    %94 = arith.mulf %92, %93 : vector<8x32xf32>
    %95 = vector.broadcast %74 : vector<1x32xf32> to vector<8x32xf32>
    %96 = arith.addf %94, %95 : vector<8x32xf32>
    %c0_29 = arith.constant 0 : index
    %c0_30 = arith.constant 0 : index
    %97 = vector.load %arg6[%c0_29, %c0_30] : memref<32x64xf32, #tpu.memory_space<vmem>>, vector<32x64xf32>
    %cst_31 = arith.constant dense<0.000000e+00> : vector<8x64xf32>
    %98 = tpu.matmul %96, %97, %cst_31 {dimension_numbers = #tpu.dot_dimension_numbers<[1], [0], [0], [1], [0, 0, 1, 1], [], []>} : vector<8x32xf32>, vector<32x64xf32>, vector<8x64xf32> -> vector<8x64xf32>
    %c0_32 = arith.constant 0 : index
    %c0_33 = arith.constant 0 : index
    %99 = vector.load %arg7[%c0_32, %c0_33] : memref<32x128xf32, #tpu.memory_space<vmem>>, vector<32x128xf32>
    %cst_34 = arith.constant dense<0.000000e+00> : vector<8x128xf32>
    %100 = tpu.matmul %3, %99, %cst_34 {dimension_numbers = #tpu.dot_dimension_numbers<[1], [0], [0], [1], [0, 0, 1, 1], [], []>} : vector<8x32xf32>, vector<32x128xf32>, vector<8x128xf32> -> vector<8x128xf32>
    %101 = vector.extract_strided_slice %100 {offsets = [0, 0], sizes = [8, 64], strides = [1, 1]} : vector<8x128xf32> to vector<8x64xf32>
    %102 = vector.extract_strided_slice %100 {offsets = [0, 64], sizes = [8, 64], strides = [1, 1]} : vector<8x128xf32> to vector<8x64xf32>
    %103 = vector.shape_cast %5 : vector<1x8xf32> to vector<1x1x8xf32>
    %c0_35 = arith.constant 0 : index
    %c0_36 = arith.constant 0 : index
    %104 = vector.load %arg8[%c0_35, %c0_36] : memref<64x32xf32, #tpu.memory_space<vmem>>, vector<64x32xf32>
    %105 = vector.extract_strided_slice %98 {offsets = [0, 0], sizes = [8, 16], strides = [1, 1]} : vector<8x64xf32> to vector<8x16xf32>
    %106 = vector.extract_strided_slice %98 {offsets = [0, 16], sizes = [8, 16], strides = [1, 1]} : vector<8x64xf32> to vector<8x16xf32>
    %107 = vector.extract_strided_slice %98 {offsets = [0, 32], sizes = [8, 16], strides = [1, 1]} : vector<8x64xf32> to vector<8x16xf32>
    %108 = vector.extract_strided_slice %98 {offsets = [0, 48], sizes = [8, 16], strides = [1, 1]} : vector<8x64xf32> to vector<8x16xf32>
    %109 = vector.shape_cast %105 : vector<8x16xf32> to vector<1x8x16xf32>
    %110 = vector.shape_cast %106 : vector<8x16xf32> to vector<1x8x16xf32>
    %111 = vector.shape_cast %107 : vector<8x16xf32> to vector<1x8x16xf32>
    %112 = vector.shape_cast %108 : vector<8x16xf32> to vector<1x8x16xf32>
    %113 = tpu.concatenate %109, %110, %111, %112 in 0 : vector<1x8x16xf32>, vector<1x8x16xf32>, vector<1x8x16xf32>, vector<1x8x16xf32> -> vector<4x8x16xf32>
    %114 = vector.extract_strided_slice %101 {offsets = [0, 0], sizes = [8, 16], strides = [1, 1]} : vector<8x64xf32> to vector<8x16xf32>
    %115 = vector.extract_strided_slice %101 {offsets = [0, 16], sizes = [8, 16], strides = [1, 1]} : vector<8x64xf32> to vector<8x16xf32>
    %116 = vector.extract_strided_slice %101 {offsets = [0, 32], sizes = [8, 16], strides = [1, 1]} : vector<8x64xf32> to vector<8x16xf32>
    %117 = vector.extract_strided_slice %101 {offsets = [0, 48], sizes = [8, 16], strides = [1, 1]} : vector<8x64xf32> to vector<8x16xf32>
    %118 = vector.shape_cast %114 : vector<8x16xf32> to vector<1x8x16xf32>
    %119 = vector.shape_cast %115 : vector<8x16xf32> to vector<1x8x16xf32>
    %120 = vector.shape_cast %116 : vector<8x16xf32> to vector<1x8x16xf32>
    %121 = vector.shape_cast %117 : vector<8x16xf32> to vector<1x8x16xf32>
    %122 = tpu.concatenate %118, %119, %120, %121 in 0 : vector<1x8x16xf32>, vector<1x8x16xf32>, vector<1x8x16xf32>, vector<1x8x16xf32> -> vector<4x8x16xf32>
    %123 = vector.extract_strided_slice %102 {offsets = [0, 0], sizes = [8, 16], strides = [1, 1]} : vector<8x64xf32> to vector<8x16xf32>
    %124 = vector.extract_strided_slice %102 {offsets = [0, 16], sizes = [8, 16], strides = [1, 1]} : vector<8x64xf32> to vector<8x16xf32>
    %125 = vector.extract_strided_slice %102 {offsets = [0, 32], sizes = [8, 16], strides = [1, 1]} : vector<8x64xf32> to vector<8x16xf32>
    %126 = vector.extract_strided_slice %102 {offsets = [0, 48], sizes = [8, 16], strides = [1, 1]} : vector<8x64xf32> to vector<8x16xf32>
    %127 = vector.shape_cast %123 : vector<8x16xf32> to vector<1x8x16xf32>
    %128 = vector.shape_cast %124 : vector<8x16xf32> to vector<1x8x16xf32>
    %129 = vector.shape_cast %125 : vector<8x16xf32> to vector<1x8x16xf32>
    %130 = vector.shape_cast %126 : vector<8x16xf32> to vector<1x8x16xf32>
    %131 = tpu.concatenate %127, %128, %129, %130 in 0 : vector<1x8x16xf32>, vector<1x8x16xf32>, vector<1x8x16xf32>, vector<1x8x16xf32> -> vector<4x8x16xf32>
    "tpu.trace_start"() <{level = 10 : i32, message = "hqd,hkd->hqk"}> : () -> ()
    %cst_37 = arith.constant dense<0.000000e+00> : vector<4x8x8xf32>
    %132 = tpu.matmul %113, %122, %cst_37 {dimension_numbers = #tpu.dot_dimension_numbers<[2], [2], [1], [1], [0, 0, 0, 1, 1, 1], [0], [0]>} : vector<4x8x16xf32>, vector<4x8x16xf32>, vector<4x8x8xf32> -> vector<4x8x8xf32>
    "tpu.trace_stop"() : () -> ()
    %cst_38 = arith.constant 2.500000e-01 : f32
    %133 = vector.broadcast %cst_38 : f32 to vector<4x8x8xf32>
    %134 = arith.mulf %132, %133 : vector<4x8x8xf32>
    %135 = vector.broadcast %103 : vector<1x1x8xf32> to vector<4x8x8xf32>
    %136 = arith.addf %134, %135 : vector<4x8x8xf32>
    %cst_39 = arith.constant dense<0xFF800000> : vector<4x8xf32>
    %137 = vector.multi_reduction <maximumf>, %136, %cst_39 [2] : vector<4x8x8xf32> to vector<4x8xf32>
    %138 = vector.shape_cast %137 : vector<4x8xf32> to vector<4x8x1xf32>
    %139 = vector.broadcast %138 : vector<4x8x1xf32> to vector<4x8x8xf32>
    %140 = arith.subf %136, %139 : vector<4x8x8xf32>
    %141 = math.exp %140 : vector<4x8x8xf32>
    %cst_40 = arith.constant dense<0.000000e+00> : vector<4x8xf32>
    %142 = vector.multi_reduction <add>, %141, %cst_40 [2] : vector<4x8x8xf32> to vector<4x8xf32>
    %143 = vector.shape_cast %142 : vector<4x8xf32> to vector<4x8x1xf32>
    %144 = tpu.reciprocal %143 : vector<4x8x1xf32> -> vector<4x8x1xf32>
    %145 = vector.broadcast %144 : vector<4x8x1xf32> to vector<4x8x8xf32>
    %146 = arith.mulf %141, %145 : vector<4x8x8xf32>
    "tpu.trace_start"() <{level = 10 : i32, message = "hqk,hkd->hqd"}> : () -> ()
    %cst_41 = arith.constant dense<0.000000e+00> : vector<4x8x16xf32>
    %147 = tpu.matmul %146, %131, %cst_41 {dimension_numbers = #tpu.dot_dimension_numbers<[2], [1], [1], [2], [0, 0, 0, 1, 1, 2], [0], [0]>} : vector<4x8x8xf32>, vector<4x8x16xf32>, vector<4x8x16xf32> -> vector<4x8x16xf32>
    "tpu.trace_stop"() : () -> ()
    %148 = vector.extract_strided_slice %147 {offsets = [0, 0, 0], sizes = [1, 8, 16], strides = [1, 1, 1]} : vector<4x8x16xf32> to vector<1x8x16xf32>
    %149 = vector.shape_cast %148 : vector<1x8x16xf32> to vector<8x16xf32>
    %150 = vector.extract_strided_slice %147 {offsets = [1, 0, 0], sizes = [1, 8, 16], strides = [1, 1, 1]} : vector<4x8x16xf32> to vector<1x8x16xf32>
    %151 = vector.shape_cast %150 : vector<1x8x16xf32> to vector<8x16xf32>
    %152 = vector.extract_strided_slice %147 {offsets = [2, 0, 0], sizes = [1, 8, 16], strides = [1, 1, 1]} : vector<4x8x16xf32> to vector<1x8x16xf32>
    %153 = vector.shape_cast %152 : vector<1x8x16xf32> to vector<8x16xf32>
    %154 = vector.extract_strided_slice %147 {offsets = [3, 0, 0], sizes = [1, 8, 16], strides = [1, 1, 1]} : vector<4x8x16xf32> to vector<1x8x16xf32>
    %155 = vector.shape_cast %154 : vector<1x8x16xf32> to vector<8x16xf32>
    %156 = tpu.concatenate %149, %151, %153, %155 in 1 : vector<8x16xf32>, vector<8x16xf32>, vector<8x16xf32>, vector<8x16xf32> -> vector<8x64xf32>
    %cst_42 = arith.constant dense<0.000000e+00> : vector<8x32xf32>
    %157 = tpu.matmul %156, %104, %cst_42 {dimension_numbers = #tpu.dot_dimension_numbers<[1], [0], [0], [1], [0, 0, 1, 1], [], []>} : vector<8x64xf32>, vector<64x32xf32>, vector<8x32xf32> -> vector<8x32xf32>
    %158 = arith.addf %96, %157 : vector<8x32xf32>
    %c0_43 = arith.constant 0 : index
    %c0_44 = arith.constant 0 : index
    %159 = vector.load %arg15[%c0_43, %c0_44] : memref<1x32xf32, #tpu.memory_space<vmem>>, vector<1x32xf32>
    %c0_45 = arith.constant 0 : index
    %c0_46 = arith.constant 0 : index
    %160 = vector.load %arg16[%c0_45, %c0_46] : memref<1x32xf32, #tpu.memory_space<vmem>>, vector<1x32xf32>
    %cst_47 = arith.constant dense<0.000000e+00> : vector<8xf32>
    %161 = vector.multi_reduction <add>, %158, %cst_47 [1] : vector<8x32xf32> to vector<8xf32>
    %162 = vector.shape_cast %161 : vector<8xf32> to vector<8x1xf32>
    %cst_48 = arith.constant 3.200000e+01 : f32
    %163 = vector.broadcast %cst_48 : f32 to vector<8x1xf32>
    %164 = arith.divf %162, %163 : vector<8x1xf32>
    %165 = vector.broadcast %164 : vector<8x1xf32> to vector<8x32xf32>
    %166 = arith.subf %158, %165 : vector<8x32xf32>
    %167 = arith.mulf %166, %166 : vector<8x32xf32>
    %cst_49 = arith.constant dense<0.000000e+00> : vector<8xf32>
    %168 = vector.multi_reduction <add>, %167, %cst_49 [1] : vector<8x32xf32> to vector<8xf32>
    %169 = vector.shape_cast %168 : vector<8xf32> to vector<8x1xf32>
    %cst_50 = arith.constant 3.200000e+01 : f32
    %170 = vector.broadcast %cst_50 : f32 to vector<8x1xf32>
    %171 = arith.divf %169, %170 : vector<8x1xf32>
    %172 = vector.broadcast %164 : vector<8x1xf32> to vector<8x32xf32>
    %173 = arith.subf %158, %172 : vector<8x32xf32>
    %cst_51 = arith.constant 9.99999974E-6 : f32
    %174 = vector.broadcast %cst_51 : f32 to vector<8x1xf32>
    %175 = arith.addf %171, %174 : vector<8x1xf32>
    %176 = math.rsqrt %175 : vector<8x1xf32>
    %177 = vector.broadcast %176 : vector<8x1xf32> to vector<8x32xf32>
    %178 = arith.mulf %173, %177 : vector<8x32xf32>
    %179 = vector.broadcast %159 : vector<1x32xf32> to vector<8x32xf32>
    %180 = arith.mulf %178, %179 : vector<8x32xf32>
    %181 = vector.broadcast %160 : vector<1x32xf32> to vector<8x32xf32>
    %182 = arith.addf %180, %181 : vector<8x32xf32>
    %c0_52 = arith.constant 0 : index
    %c0_53 = arith.constant 0 : index
    %183 = vector.load %arg9[%c0_52, %c0_53] : memref<32x64xf32, #tpu.memory_space<vmem>>, vector<32x64xf32>
    %cst_54 = arith.constant dense<0.000000e+00> : vector<8x64xf32>
    %184 = tpu.matmul %182, %183, %cst_54 {dimension_numbers = #tpu.dot_dimension_numbers<[1], [0], [0], [1], [0, 0, 1, 1], [], []>} : vector<8x32xf32>, vector<32x64xf32>, vector<8x64xf32> -> vector<8x64xf32>
    %c0_55 = arith.constant 0 : index
    %c0_56 = arith.constant 0 : index
    %185 = vector.load %arg10[%c0_55, %c0_56] : memref<1x64xf32, #tpu.memory_space<vmem>>, vector<1x64xf32>
    %186 = vector.broadcast %185 : vector<1x64xf32> to vector<8x64xf32>
    %187 = arith.addf %184, %186 : vector<8x64xf32>
    %cst_57 = arith.constant 0.000000e+00 : f32
    %188 = vector.broadcast %cst_57 : f32 to vector<8x64xf32>
    %189 = arith.maximumf %187, %188 : vector<8x64xf32>
    %c0_58 = arith.constant 0 : index
    %c0_59 = arith.constant 0 : index
    %190 = vector.load %arg11[%c0_58, %c0_59] : memref<64x32xf32, #tpu.memory_space<vmem>>, vector<64x32xf32>
    %cst_60 = arith.constant dense<0.000000e+00> : vector<8x32xf32>
    %191 = tpu.matmul %189, %190, %cst_60 {dimension_numbers = #tpu.dot_dimension_numbers<[1], [0], [0], [1], [0, 0, 1, 1], [], []>} : vector<8x64xf32>, vector<64x32xf32>, vector<8x32xf32> -> vector<8x32xf32>
    %c0_61 = arith.constant 0 : index
    %c0_62 = arith.constant 0 : index
    %192 = vector.load %arg12[%c0_61, %c0_62] : memref<1x32xf32, #tpu.memory_space<vmem>>, vector<1x32xf32>
    %193 = vector.broadcast %192 : vector<1x32xf32> to vector<8x32xf32>
    %194 = arith.addf %191, %193 : vector<8x32xf32>
    %195 = arith.addf %182, %194 : vector<8x32xf32>
    %c0_63 = arith.constant 0 : index
    %c0_64 = arith.constant 0 : index
    %196 = vector.load %arg17[%c0_63, %c0_64] : memref<1x32xf32, #tpu.memory_space<vmem>>, vector<1x32xf32>
    %c0_65 = arith.constant 0 : index
    %c0_66 = arith.constant 0 : index
    %197 = vector.load %arg18[%c0_65, %c0_66] : memref<1x32xf32, #tpu.memory_space<vmem>>, vector<1x32xf32>
    %cst_67 = arith.constant dense<0.000000e+00> : vector<8xf32>
    %198 = vector.multi_reduction <add>, %195, %cst_67 [1] : vector<8x32xf32> to vector<8xf32>
    %199 = vector.shape_cast %198 : vector<8xf32> to vector<8x1xf32>
    %cst_68 = arith.constant 3.200000e+01 : f32
    %200 = vector.broadcast %cst_68 : f32 to vector<8x1xf32>
    %201 = arith.divf %199, %200 : vector<8x1xf32>
    %202 = vector.broadcast %201 : vector<8x1xf32> to vector<8x32xf32>
    %203 = arith.subf %195, %202 : vector<8x32xf32>
    %204 = arith.mulf %203, %203 : vector<8x32xf32>
    %cst_69 = arith.constant dense<0.000000e+00> : vector<8xf32>
    %205 = vector.multi_reduction <add>, %204, %cst_69 [1] : vector<8x32xf32> to vector<8xf32>
    %206 = vector.shape_cast %205 : vector<8xf32> to vector<8x1xf32>
    %cst_70 = arith.constant 3.200000e+01 : f32
    %207 = vector.broadcast %cst_70 : f32 to vector<8x1xf32>
    %208 = arith.divf %206, %207 : vector<8x1xf32>
    %209 = vector.broadcast %201 : vector<8x1xf32> to vector<8x32xf32>
    %210 = arith.subf %195, %209 : vector<8x32xf32>
    %cst_71 = arith.constant 9.99999974E-6 : f32
    %211 = vector.broadcast %cst_71 : f32 to vector<8x1xf32>
    %212 = arith.addf %208, %211 : vector<8x1xf32>
    %213 = math.rsqrt %212 : vector<8x1xf32>
    %214 = vector.broadcast %213 : vector<8x1xf32> to vector<8x32xf32>
    %215 = arith.mulf %210, %214 : vector<8x32xf32>
    %216 = vector.broadcast %196 : vector<1x32xf32> to vector<8x32xf32>
    %217 = arith.mulf %215, %216 : vector<8x32xf32>
    %218 = vector.broadcast %197 : vector<1x32xf32> to vector<8x32xf32>
    %219 = arith.addf %217, %218 : vector<8x32xf32>
    %c0_72 = arith.constant 0 : index
    %c0_73 = arith.constant 0 : index
    %c0_74 = arith.constant 0 : index
    %220 = vector.load %arg19[%c0_72, %c0_73, %c0_74] : memref<1x8x32xf32, #tpu.memory_space<vmem>>, vector<1x8x32xf32>
    %221 = vector.shape_cast %220 : vector<1x8x32xf32> to vector<8x32xf32>
    %222 = vector.shape_cast %219 : vector<8x32xf32> to vector<1x8x32xf32>
    tpu.vector_store %arg19[%c0_72, %c0_73, %c0_74], %222 {strides = array<i32>} : memref<1x8x32xf32, #tpu.memory_space<vmem>>, vector<1x8x32xf32>,
    return
  }
  func.func @transform_0(%arg0: i32) -> (i32, i32, i32) {
    %c0_i32 = arith.constant 0 : i32
    %c0_i32_0 = arith.constant 0 : i32
    %c0_i32_1 = arith.constant 0 : i32
    return %arg0, %c0_i32, %c0_i32_0 : i32, i32, i32
  }
  func.func @transform_1(%arg0: i32) -> (i32, i32, i32) {
    %c0_i32 = arith.constant 0 : i32
    %c0_i32_0 = arith.constant 0 : i32
    %c0_i32_1 = arith.constant 0 : i32
    return %arg0, %c0_i32, %c0_i32_0 : i32, i32, i32
  }
  func.func @transform_2(%arg0: i32) -> (i32, i32, i32) {
    %c0_i32 = arith.constant 0 : i32
    %c0_i32_0 = arith.constant 0 : i32
    %c0_i32_1 = arith.constant 0 : i32
    return %arg0, %c0_i32, %c0_i32_0 : i32, i32, i32
  }
  func.func @transform_3(%arg0: i32) -> (i32, i32) {
    %c0_i32 = arith.constant 0 : i32
    %c0_i32_0 = arith.constant 0 : i32
    %c0_i32_1 = arith.constant 0 : i32
    return %c0_i32, %c0_i32_0 : i32, i32
  }
  func.func @transform_4(%arg0: i32) -> (i32, i32) {
    %c0_i32 = arith.constant 0 : i32
    %c0_i32_0 = arith.constant 0 : i32
    %c0_i32_1 = arith.constant 0 : i32
    return %c0_i32, %c0_i32_0 : i32, i32
  }
  func.func @transform_5(%arg0: i32) -> (i32, i32) {
    %c0_i32 = arith.constant 0 : i32
    %c0_i32_0 = arith.constant 0 : i32
    %c0_i32_1 = arith.constant 0 : i32
    return %c0_i32, %c0_i32_0 : i32, i32
  }
  func.func @transform_6(%arg0: i32) -> (i32, i32) {
    %c0_i32 = arith.constant 0 : i32
    %c0_i32_0 = arith.constant 0 : i32
    %c0_i32_1 = arith.constant 0 : i32
    return %c0_i32, %c0_i32_0 : i32, i32
  }
  func.func @transform_7(%arg0: i32) -> (i32, i32) {
    %c0_i32 = arith.constant 0 : i32
    %c0_i32_0 = arith.constant 0 : i32
    %c0_i32_1 = arith.constant 0 : i32
    return %c0_i32, %c0_i32_0 : i32, i32
  }
  func.func @transform_8(%arg0: i32) -> (i32, i32) {
    %c0_i32 = arith.constant 0 : i32
    %c0_i32_0 = arith.constant 0 : i32
    %c0_i32_1 = arith.constant 0 : i32
    return %c0_i32, %c0_i32_0 : i32, i32
  }
  func.func @transform_9(%arg0: i32) -> (i32, i32) {
    %c0_i32 = arith.constant 0 : i32
    %c0_i32_0 = arith.constant 0 : i32
    %c0_i32_1 = arith.constant 0 : i32
    return %c0_i32, %c0_i32_0 : i32, i32
  }
  func.func @transform_10(%arg0: i32) -> (i32, i32) {
    %c0_i32 = arith.constant 0 : i32
    %c0_i32_0 = arith.constant 0 : i32
    %c0_i32_1 = arith.constant 0 : i32
    return %c0_i32, %c0_i32_0 : i32, i32
  }
  func.func @transform_11(%arg0: i32) -> (i32, i32) {
    %c0_i32 = arith.constant 0 : i32
    %c0_i32_0 = arith.constant 0 : i32
    %c0_i32_1 = arith.constant 0 : i32
    return %c0_i32, %c0_i32_0 : i32, i32
  }
  func.func @transform_12(%arg0: i32) -> (i32, i32) {
    %c0_i32 = arith.constant 0 : i32
    %c0_i32_0 = arith.constant 0 : i32
    %c0_i32_1 = arith.constant 0 : i32
    return %c0_i32, %c0_i32_0 : i32, i32
  }
  func.func @transform_13(%arg0: i32) -> (i32, i32) {
    %c0_i32 = arith.constant 0 : i32
    %c0_i32_0 = arith.constant 0 : i32
    %c0_i32_1 = arith.constant 0 : i32
    return %c0_i32, %c0_i32_0 : i32, i32
  }
  func.func @transform_14(%arg0: i32) -> (i32, i32) {
    %c0_i32 = arith.constant 0 : i32
    %c0_i32_0 = arith.constant 0 : i32
    %c0_i32_1 = arith.constant 0 : i32
    return %c0_i32, %c0_i32_0 : i32, i32
  }
  func.func @transform_15(%arg0: i32) -> (i32, i32) {
    %c0_i32 = arith.constant 0 : i32
    %c0_i32_0 = arith.constant 0 : i32
    %c0_i32_1 = arith.constant 0 : i32
    return %c0_i32, %c0_i32_0 : i32, i32
  }
  func.func @transform_16(%arg0: i32) -> (i32, i32) {
    %c0_i32 = arith.constant 0 : i32
    %c0_i32_0 = arith.constant 0 : i32
    %c0_i32_1 = arith.constant 0 : i32
    return %c0_i32, %c0_i32_0 : i32, i32
  }
  func.func @transform_17(%arg0: i32) -> (i32, i32) {
    %c0_i32 = arith.constant 0 : i32
    %c0_i32_0 = arith.constant 0 : i32
    %c0_i32_1 = arith.constant 0 : i32
    return %c0_i32, %c0_i32_0 : i32, i32
  }
  func.func @transform_18(%arg0: i32) -> (i32, i32, i32) {
    %c0_i32 = arith.constant 0 : i32
    %c0_i32_0 = arith.constant 0 : i32
    %c0_i32_1 = arith.constant 0 : i32
    return %arg0, %c0_i32, %c0_i32_0 : i32, i32, i32
  }
}

</mosaic_0001>

<llo_original>
// kernel: tpu_custom_call.1
$region0: #{tpu_custom_call.1}
  #allocation0 [shape = 'u32[]', space=smem, size = 0x4, offset = 0x4, fixed_abs, tag = 'smem constant byte address 0x4 - core index']
  #allocation1 [shape = 'u32[144,128]{1,0:T(1,128)}', space=vmem, size = 0x12000, scoped, tag = 'internal scratch']
  %s0 = inlined_call_operand.vmem [shape: f32[2,8,32], index: 0, kind: input, shape index: {}]
  %s1 = inlined_call_operand.vmem [shape: f32[2,8,32], index: 1, kind: input, shape index: {}]
  %s2 = inlined_call_operand.vmem [shape: f32[2,1,8], index: 2, kind: input, shape index: {}]
  %s3 = inlined_call_operand.vmem [shape: f32[32,192], index: 3, kind: input, shape index: {}]
  %s4 = inlined_call_operand.vmem [shape: f32[64,32], index: 4, kind: input, shape index: {}]
  %s5 = inlined_call_operand.vmem [shape: f32[32,64], index: 5, kind: input, shape index: {}]
  %s6 = inlined_call_operand.vmem [shape: f32[32,128], index: 6, kind: input, shape index: {}]
  %s7 = inlined_call_operand.vmem [shape: f32[64,32], index: 7, kind: input, shape index: {}]
  %s8 = inlined_call_operand.vmem [shape: f32[32,64], index: 8, kind: input, shape index: {}]
  %s9 = inlined_call_operand.vmem [shape: f32[1,64], index: 9, kind: input, shape index: {}]
  %s10 = inlined_call_operand.vmem [shape: f32[64,32], index: 10, kind: input, shape index: {}]
  %s11 = inlined_call_operand.vmem [shape: f32[1,32], index: 11, kind: input, shape index: {}]
  %s12 = inlined_call_operand.vmem [shape: f32[1,32], index: 12, kind: input, shape index: {}]
  %s13 = inlined_call_operand.vmem [shape: f32[1,32], index: 13, kind: input, shape index: {}]
  %s14 = inlined_call_operand.vmem [shape: f32[1,32], index: 14, kind: input, shape index: {}]
  %s15 = inlined_call_operand.vmem [shape: f32[1,32], index: 15, kind: input, shape index: {}]
  %s16 = inlined_call_operand.vmem [shape: f32[1,32], index: 16, kind: input, shape index: {}]
  %s17 = inlined_call_operand.vmem [shape: f32[1,32], index: 17, kind: input, shape index: {}]
  %s18 = inlined_call_operand.hbm [shape: f32[2,8,32], index: 18, kind: output, shape index: {}]
  %s19 = sld [smem:[#allocation0]]
  $region105: #{tpu_custom_call.1} parent=0
    _
  %s21 = ssub.s32 1, %s19
  %s22 = scalar_select 0, %s21, %s19
  $region1: #{tpu_custom_call.1} parent=0
    #allocation2 [shape = 'u8[8192]{0}', space=vmem, size = 0x2000, scoped, tag = 'output window, operand 0']
    #allocation3 [shape = 's32[2]{0}', space=sflag, size = 0x8, scoped, tag = 'scoped memory for tpu_custom_call.1']
    %23 = vsyncpa [#allocation3], 0
    %s24 = scalar_lea.sflag [#allocation3], 1
    %25 = vsyncpa %s24, 0
    loop: start=0, step=1, limit=4
    $region2: #{tpu_custom_call.1} parent=1 // loop_pre_header
      _
    $region3: #{tpu_custom_call.1} parent=1 // loop_header
      %s27 = sphi 0, %s31
      %p28 = scmp.ge.s32.totalorder %s27, 4
      %s37 = sphi 0, %s39
      %s40 = sphi 0, %s37
      %s41 = sphi 0, %s40
      %s57 = sphi 0, %s41
      %s63 = sphi 0, %s65
      %s66 = sphi 0, %s63
      %s67 = sphi 0, %s66
      %s83 = sphi 0, %s67
      %s89 = sphi 0, %s91
      %s92 = sphi 0, %s89
      %s93 = sphi 0, %s92
      %s109 = sphi 0, %s93
      %s113 = sphi 0, %s113
      %s115 = sphi 0, %s113
      %s116 = sphi 0, %s115
      %s130 = sphi 0, %s116
      %s134 = sphi 0, %s134
      %s136 = sphi 0, %s134
      %s137 = sphi 0, %s136
      %s151 = sphi 0, %s137
      %s155 = sphi 0, %s155
      %s157 = sphi 0, %s155
      %s158 = sphi 0, %s157
      %s172 = sphi 0, %s158
      %s176 = sphi 0, %s176
      %s178 = sphi 0, %s176
      %s179 = sphi 0, %s178
      %s193 = sphi 0, %s179
      %s197 = sphi 0, %s197
      %s199 = sphi 0, %s197
      %s200 = sphi 0, %s199
      %s214 = sphi 0, %s200
      %s218 = sphi 0, %s218
      %s220 = sphi 0, %s218
      %s221 = sphi 0, %s220
      %s235 = sphi 0, %s221
      %s239 = sphi 0, %s239
      %s241 = sphi 0, %s239
      %s242 = sphi 0, %s241
      %s256 = sphi 0, %s242
      %s260 = sphi 0, %s260
      %s262 = sphi 0, %s260
      %s263 = sphi 0, %s262
      %s277 = sphi 0, %s263
      %s281 = sphi 0, %s281
      %s283 = sphi 0, %s281
      %s284 = sphi 0, %s283
      %s298 = sphi 0, %s284
      %s302 = sphi 0, %s302
      %s304 = sphi 0, %s302
      %s305 = sphi 0, %s304
      %s319 = sphi 0, %s305
      %s323 = sphi 0, %s323
      %s325 = sphi 0, %s323
      %s326 = sphi 0, %s325
      %s340 = sphi 0, %s326
      %s344 = sphi 0, %s344
      %s346 = sphi 0, %s344
      %s347 = sphi 0, %s346
      %s361 = sphi 0, %s347
      %s365 = sphi 0, %s365
      %s367 = sphi 0, %s365
      %s368 = sphi 0, %s367
      %s382 = sphi 0, %s368
      %s386 = sphi 0, %s386
      %s388 = sphi 0, %s386
      %s389 = sphi 0, %s388
      %s403 = sphi 0, %s389
      %s407 = sphi 0, %s407
      %s409 = sphi 0, %s407
      %s410 = sphi 0, %s409
      %s424 = sphi 0, %s410
      %s430 = sphi 0, %s432
      %s433 = sphi 0, %s430
      %s434 = sphi 0, %s433
      %s450 = sphi 0, %s434
    $region4: #{tpu_custom_call.1} parent=1 // loop_header_branch
      %30 = sbr.rel (%p28) target = $region8
    $region5: #{tpu_custom_call.1} parent=1 // loop_body
      %s32 = ssub.s32 %s27, 1
      %s33 = ssub.s32 %s27, 2
      %s34 = sadd.s32 %s27, 1
      %s35 = ssub.s32 %s27, %s34
      %p36 = scmp.eq.s32.totalorder %s35, 0
      %s38 = sadd.s32 %s37, 1
      %s39 = scalar_select %p36, %s37, %s38
      %p42 = pneg %p36
      %p43 = scmp.eq.s32.totalorder %s27, 1
      %p44 = por %p42, %p43
      %p45 = scmp.ne.s32.totalorder %s37, %s40
      %p46 = scmp.eq.s32.totalorder %s27, 0
      %p47 = por %p45, %p46
      %p48 = scmp.ne.s32.totalorder %s37, %s40
      %p49 = scmp.eq.s32.totalorder %s32, 1
      %p50 = por %p48, %p49
      %p51 = scmp.ne.s32.totalorder %s40, %s41
      %p52 = scmp.eq.s32.totalorder %s32, 0
      %p53 = por %p51, %p52
      %p54 = scmp.ne.s32.totalorder %s40, %s41
      %p55 = scmp.eq.s32.totalorder %s33, 1
      %p56 = por %p54, %p55
      %p58 = scmp.ne.s32.totalorder %s41, %s57
      %p59 = scmp.eq.s32.totalorder %s33, 0
      %p60 = por %p58, %p59
      %s61 = ssub.s32 %s27, %s34
      %p62 = scmp.eq.s32.totalorder %s61, 0
      %s64 = sadd.s32 %s63, 1
      %s65 = scalar_select %p62, %s63, %s64
      %p68 = pneg %p62
      %p69 = scmp.eq.s32.totalorder %s27, 1
      %p70 = por %p68, %p69
      %p71 = scmp.ne.s32.totalorder %s63, %s66
      %p72 = scmp.eq.s32.totalorder %s27, 0
      %p73 = por %p71, %p72
      %p74 = scmp.ne.s32.totalorder %s63, %s66
      %p75 = scmp.eq.s32.totalorder %s32, 1
      %p76 = por %p74, %p75
      %p77 = scmp.ne.s32.totalorder %s66, %s67
      %p78 = scmp.eq.s32.totalorder %s32, 0
      %p79 = por %p77, %p78
      %p80 = scmp.ne.s32.totalorder %s66, %s67
      %p81 = scmp.eq.s32.totalorder %s33, 1
      %p82 = por %p80, %p81
      %p84 = scmp.ne.s32.totalorder %s67, %s83
      %p85 = scmp.eq.s32.totalorder %s33, 0
      %p86 = por %p84, %p85
      %s87 = ssub.s32 %s27, %s34
      %p88 = scmp.eq.s32.totalorder %s87, 0
      %s90 = sadd.s32 %s89, 1
      %s91 = scalar_select %p88, %s89, %s90
      %p94 = pneg %p88
      %p95 = scmp.eq.s32.totalorder %s27, 1
      %p96 = por %p94, %p95
      %p97 = scmp.ne.s32.totalorder %s89, %s92
      %p98 = scmp.eq.s32.totalorder %s27, 0
      %p99 = por %p97, %p98
      %p100 = scmp.ne.s32.totalorder %s89, %s92
      %p101 = scmp.eq.s32.totalorder %s32, 1
      %p102 = por %p100, %p101
      %p103 = scmp.ne.s32.totalorder %s92, %s93
      %p104 = scmp.eq.s32.totalorder %s32, 0
      %p105 = por %p103, %p104
      %p106 = scmp.ne.s32.totalorder %s92, %s93
      %p107 = scmp.eq.s32.totalorder %s33, 1
      %p108 = por %p106, %p107
      %p110 = scmp.ne.s32.totalorder %s93, %s109
      %p111 = scmp.eq.s32.totalorder %s33, 0
      %p112 = por %p110, %p111
      %s114 = sadd.s32 %s113, 1
      %p117 = scmp.eq.s32.totalorder %s27, 1
      %p118 = scmp.ne.s32.totalorder %s113, %s115
      %p119 = scmp.eq.s32.totalorder %s27, 0
      %p120 = por %p118, %p119
      %p121 = scmp.ne.s32.totalorder %s113, %s115
      %p122 = scmp.eq.s32.totalorder %s32, 1
      %p123 = por %p121, %p122
      %p124 = scmp.ne.s32.totalorder %s115, %s116
      %p125 = scmp.eq.s32.totalorder %s32, 0
      %p126 = por %p124, %p125
      %p127 = scmp.ne.s32.totalorder %s115, %s116
      %p128 = scmp.eq.s32.totalorder %s33, 1
      %p129 = por %p127, %p128
      %p131 = scmp.ne.s32.totalorder %s116, %s130
      %p132 = scmp.eq.s32.totalorder %s33, 0
      %p133 = por %p131, %p132
      %s135 = sadd.s32 %s134, 1
      %p138 = scmp.eq.s32.totalorder %s27, 1
      %p139 = scmp.ne.s32.totalorder %s134, %s136
      %p140 = scmp.eq.s32.totalorder %s27, 0
      %p141 = por %p139, %p140
      %p142 = scmp.ne.s32.totalorder %s134, %s136
      %p143 = scmp.eq.s32.totalorder %s32, 1
      %p144 = por %p142, %p143
      %p145 = scmp.ne.s32.totalorder %s136, %s137
      %p146 = scmp.eq.s32.totalorder %s32, 0
      %p147 = por %p145, %p146
      %p148 = scmp.ne.s32.totalorder %s136, %s137
      %p149 = scmp.eq.s32.totalorder %s33, 1
      %p150 = por %p148, %p149
      %p152 = scmp.ne.s32.totalorder %s137, %s151
      %p153 = scmp.eq.s32.totalorder %s33, 0
      %p154 = por %p152, %p153
      %s156 = sadd.s32 %s155, 1
      %p159 = scmp.eq.s32.totalorder %s27, 1
      %p160 = scmp.ne.s32.totalorder %s155, %s157
      %p161 = scmp.eq.s32.totalorder %s27, 0
      %p162 = por %p160, %p161
      %p163 = scmp.ne.s32.totalorder %s155, %s157
      %p164 = scmp.eq.s32.totalorder %s32, 1
      %p165 = por %p163, %p164
      %p166 = scmp.ne.s32.totalorder %s157, %s158
      %p167 = scmp.eq.s32.totalorder %s32, 0
      %p168 = por %p166, %p167
      %p169 = scmp.ne.s32.totalorder %s157, %s158
      %p170 = scmp.eq.s32.totalorder %s33, 1
      %p171 = por %p169, %p170
      %p173 = scmp.ne.s32.totalorder %s158, %s172
      %p174 = scmp.eq.s32.totalorder %s33, 0
      %p175 = por %p173, %p174
      %s177 = sadd.s32 %s176, 1
      %p180 = scmp.eq.s32.totalorder %s27, 1
      %p181 = scmp.ne.s32.totalorder %s176, %s178
      %p182 = scmp.eq.s32.totalorder %s27, 0
      %p183 = por %p181, %p182
      %p184 = scmp.ne.s32.totalorder %s176, %s178
      %p185 = scmp.eq.s32.totalorder %s32, 1
      %p186 = por %p184, %p185
      %p187 = scmp.ne.s32.totalorder %s178, %s179
      %p188 = scmp.eq.s32.totalorder %s32, 0
      %p189 = por %p187, %p188
      %p190 = scmp.ne.s32.totalorder %s178, %s179
      %p191 = scmp.eq.s32.totalorder %s33, 1
      %p192 = por %p190, %p191
      %p194 = scmp.ne.s32.totalorder %s179, %s193
      %p195 = scmp.eq.s32.totalorder %s33, 0
      %p196 = por %p194, %p195
      %s198 = sadd.s32 %s197, 1
      %p201 = scmp.eq.s32.totalorder %s27, 1
      %p202 = scmp.ne.s32.totalorder %s197, %s199
      %p203 = scmp.eq.s32.totalorder %s27, 0
      %p204 = por %p202, %p203
      %p205 = scmp.ne.s32.totalorder %s197, %s199
      %p206 = scmp.eq.s32.totalorder %s32, 1
      %p207 = por %p205, %p206
      %p208 = scmp.ne.s32.totalorder %s199, %s200
      %p209 = scmp.eq.s32.totalorder %s32, 0
      %p210 = por %p208, %p209
      %p211 = scmp.ne.s32.totalorder %s199, %s200
      %p212 = scmp.eq.s32.totalorder %s33, 1
      %p213 = por %p211, %p212
      %p215 = scmp.ne.s32.totalorder %s200, %s214
      %p216 = scmp.eq.s32.totalorder %s33, 0
      %p217 = por %p215, %p216
      %s219 = sadd.s32 %s218, 1
      %p222 = scmp.eq.s32.totalorder %s27, 1
      %p223 = scmp.ne.s32.totalorder %s218, %s220
      %p224 = scmp.eq.s32.totalorder %s27, 0
      %p225 = por %p223, %p224
      %p226 = scmp.ne.s32.totalorder %s218, %s220
      %p227 = scmp.eq.s32.totalorder %s32, 1
      %p228 = por %p226, %p227
      %p229 = scmp.ne.s32.totalorder %s220, %s221
      %p230 = scmp.eq.s32.totalorder %s32, 0
      %p231 = por %p229, %p230
      %p232 = scmp.ne.s32.totalorder %s220, %s221
      %p233 = scmp.eq.s32.totalorder %s33, 1
      %p234 = por %p232, %p233
      %p236 = scmp.ne.s32.totalorder %s221, %s235
      %p237 = scmp.eq.s32.totalorder %s33, 0
      %p238 = por %p236, %p237
      %s240 = sadd.s32 %s239, 1
      %p243 = scmp.eq.s32.totalorder %s27, 1
      %p244 = scmp.ne.s32.totalorder %s239, %s241
      %p245 = scmp.eq.s32.totalorder %s27, 0
      %p246 = por %p244, %p245
      %p247 = scmp.ne.s32.totalorder %s239, %s241
      %p248 = scmp.eq.s32.totalorder %s32, 1
      %p249 = por %p247, %p248
      %p250 = scmp.ne.s32.totalorder %s241, %s242
      %p251 = scmp.eq.s32.totalorder %s32, 0
      %p252 = por %p250, %p251
      %p253 = scmp.ne.s32.totalorder %s241, %s242
      %p254 = scmp.eq.s32.totalorder %s33, 1
      %p255 = por %p253, %p254
      %p257 = scmp.ne.s32.totalorder %s242, %s256
      %p258 = scmp.eq.s32.totalorder %s33, 0
      %p259 = por %p257, %p258
      %s261 = sadd.s32 %s260, 1
      %p264 = scmp.eq.s32.totalorder %s27, 1
      %p265 = scmp.ne.s32.totalorder %s260, %s262
      %p266 = scmp.eq.s32.totalorder %s27, 0
      %p267 = por %p265, %p266
      %p268 = scmp.ne.s32.totalorder %s260, %s262
      %p269 = scmp.eq.s32.totalorder %s32, 1
      %p270 = por %p268, %p269
      %p271 = scmp.ne.s32.totalorder %s262, %s263
      %p272 = scmp.eq.s32.totalorder %s32, 0
      %p273 = por %p271, %p272
      %p274 = scmp.ne.s32.totalorder %s262, %s263
      %p275 = scmp.eq.s32.totalorder %s33, 1
      %p276 = por %p274, %p275
      %p278 = scmp.ne.s32.totalorder %s263, %s277
      %p279 = scmp.eq.s32.totalorder %s33, 0
      %p280 = por %p278, %p279
      %s282 = sadd.s32 %s281, 1
      %p285 = scmp.eq.s32.totalorder %s27, 1
      %p286 = scmp.ne.s32.totalorder %s281, %s283
      %p287 = scmp.eq.s32.totalorder %s27, 0
      %p288 = por %p286, %p287
      %p289 = scmp.ne.s32.totalorder %s281, %s283
      %p290 = scmp.eq.s32.totalorder %s32, 1
      %p291 = por %p289, %p290
      %p292 = scmp.ne.s32.totalorder %s283, %s284
      %p293 = scmp.eq.s32.totalorder %s32, 0
      %p294 = por %p292, %p293
      %p295 = scmp.ne.s32.totalorder %s283, %s284
      %p296 = scmp.eq.s32.totalorder %s33, 1
      %p297 = por %p295, %p296
      %p299 = scmp.ne.s32.totalorder %s284, %s298
      %p300 = scmp.eq.s32.totalorder %s33, 0
      %p301 = por %p299, %p300
      %s303 = sadd.s32 %s302, 1
      %p306 = scmp.eq.s32.totalorder %s27, 1
      %p307 = scmp.ne.s32.totalorder %s302, %s304
      %p308 = scmp.eq.s32.totalorder %s27, 0
      %p309 = por %p307, %p308
      %p310 = scmp.ne.s32.totalorder %s302, %s304
      %p311 = scmp.eq.s32.totalorder %s32, 1
      %p312 = por %p310, %p311
      %p313 = scmp.ne.s32.totalorder %s304, %s305
      %p314 = scmp.eq.s32.totalorder %s32, 0
      %p315 = por %p313, %p314
      %p316 = scmp.ne.s32.totalorder %s304, %s305
      %p317 = scmp.eq.s32.totalorder %s33, 1
      %p318 = por %p316, %p317
      %p320 = scmp.ne.s32.totalorder %s305, %s319
      %p321 = scmp.eq.s32.totalorder %s33, 0
      %p322 = por %p320, %p321
      %s324 = sadd.s32 %s323, 1
      %p327 = scmp.eq.s32.totalorder %s27, 1
      %p328 = scmp.ne.s32.totalorder %s323, %s325
      %p329 = scmp.eq.s32.totalorder %s27, 0
      %p330 = por %p328, %p329
      %p331 = scmp.ne.s32.totalorder %s323, %s325
      %p332 = scmp.eq.s32.totalorder %s32, 1
      %p333 = por %p331, %p332
      %p334 = scmp.ne.s32.totalorder %s325, %s326
      %p335 = scmp.eq.s32.totalorder %s32, 0
      %p336 = por %p334, %p335
      %p337 = scmp.ne.s32.totalorder %s325, %s326
      %p338 = scmp.eq.s32.totalorder %s33, 1
      %p339 = por %p337, %p338
      %p341 = scmp.ne.s32.totalorder %s326, %s340
      %p342 = scmp.eq.s32.totalorder %s33, 0
      %p343 = por %p341, %p342
      %s345 = sadd.s32 %s344, 1
      %p348 = scmp.eq.s32.totalorder %s27, 1
      %p349 = scmp.ne.s32.totalorder %s344, %s346
      %p350 = scmp.eq.s32.totalorder %s27, 0
      %p351 = por %p349, %p350
      %p352 = scmp.ne.s32.totalorder %s344, %s346
      %p353 = scmp.eq.s32.totalorder %s32, 1
      %p354 = por %p352, %p353
      %p355 = scmp.ne.s32.totalorder %s346, %s347
      %p356 = scmp.eq.s32.totalorder %s32, 0
      %p357 = por %p355, %p356
      %p358 = scmp.ne.s32.totalorder %s346, %s347
      %p359 = scmp.eq.s32.totalorder %s33, 1
      %p360 = por %p358, %p359
      %p362 = scmp.ne.s32.totalorder %s347, %s361
      %p363 = scmp.eq.s32.totalorder %s33, 0
      %p364 = por %p362, %p363
      %s366 = sadd.s32 %s365, 1
      %p369 = scmp.eq.s32.totalorder %s27, 1
      %p370 = scmp.ne.s32.totalorder %s365, %s367
      %p371 = scmp.eq.s32.totalorder %s27, 0
      %p372 = por %p370, %p371
      %p373 = scmp.ne.s32.totalorder %s365, %s367
      %p374 = scmp.eq.s32.totalorder %s32, 1
      %p375 = por %p373, %p374
      %p376 = scmp.ne.s32.totalorder %s367, %s368
      %p377 = scmp.eq.s32.totalorder %s32, 0
      %p378 = por %p376, %p377
      %p379 = scmp.ne.s32.totalorder %s367, %s368
      %p380 = scmp.eq.s32.totalorder %s33, 1
      %p381 = por %p379, %p380
      %p383 = scmp.ne.s32.totalorder %s368, %s382
      %p384 = scmp.eq.s32.totalorder %s33, 0
      %p385 = por %p383, %p384
      %s387 = sadd.s32 %s386, 1
      %p390 = scmp.eq.s32.totalorder %s27, 1
      %p391 = scmp.ne.s32.totalorder %s386, %s388
      %p392 = scmp.eq.s32.totalorder %s27, 0
      %p393 = por %p391, %p392
      %p394 = scmp.ne.s32.totalorder %s386, %s388
      %p395 = scmp.eq.s32.totalorder %s32, 1
      %p396 = por %p394, %p395
      %p397 = scmp.ne.s32.totalorder %s388, %s389
      %p398 = scmp.eq.s32.totalorder %s32, 0
      %p399 = por %p397, %p398
      %p400 = scmp.ne.s32.totalorder %s388, %s389
      %p401 = scmp.eq.s32.totalorder %s33, 1
      %p402 = por %p400, %p401
      %p404 = scmp.ne.s32.totalorder %s389, %s403
      %p405 = scmp.eq.s32.totalorder %s33, 0
      %p406 = por %p404, %p405
      %s408 = sadd.s32 %s407, 1
      %p411 = scmp.eq.s32.totalorder %s27, 1
      %p412 = scmp.ne.s32.totalorder %s407, %s409
      %p413 = scmp.eq.s32.totalorder %s27, 0
      %p414 = por %p412, %p413
      %p415 = scmp.ne.s32.totalorder %s407, %s409
      %p416 = scmp.eq.s32.totalorder %s32, 1
      %p417 = por %p415, %p416
      %p418 = scmp.ne.s32.totalorder %s409, %s410
      %p419 = scmp.eq.s32.totalorder %s32, 0
      %p420 = por %p418, %p419
      %p421 = scmp.ne.s32.totalorder %s409, %s410
      %p422 = scmp.eq.s32.totalorder %s33, 1
      %p423 = por %p421, %p422
      %p425 = scmp.ne.s32.totalorder %s410, %s424
      %p426 = scmp.eq.s32.totalorder %s33, 0
      %p427 = por %p425, %p426
      %s428 = ssub.s32 %s27, %s34
      %p429 = scmp.eq.s32.totalorder %s428, 0
      %s431 = sadd.s32 %s430, 1
      %s432 = scalar_select %p429, %s430, %s431
      %p435 = pneg %p429
      %p436 = scmp.eq.s32.totalorder %s27, 1
      %p437 = por %p435, %p436
      %p438 = scmp.ne.s32.totalorder %s430, %s433
      %p439 = scmp.eq.s32.totalorder %s27, 0
      %p440 = por %p438, %p439
      %p441 = scmp.ne.s32.totalorder %s430, %s433
      %p442 = scmp.eq.s32.totalorder %s32, 1
      %p443 = por %p441, %p442
      %p444 = scmp.ne.s32.totalorder %s433, %s434
      %p445 = scmp.eq.s32.totalorder %s32, 0
      %p446 = por %p444, %p445
      %p447 = scmp.ne.s32.totalorder %s433, %s434
      %p448 = scmp.eq.s32.totalorder %s33, 1
      %p449 = por %p447, %p448
      %p451 = scmp.ne.s32.totalorder %s434, %s450
      %p452 = scmp.eq.s32.totalorder %s33, 0
      %p453 = por %p451, %p452
      %p454 = scmp.le.s32.totalorder 1, %s27
      %p455 = scmp.lt.s32.totalorder %s27, 3
      %p456 = pnand %p454, %p455
      %p457 = pneg %p456
      // Predicated region
      $region9: #{tpu_custom_call.1} parent=5 // pred_check
        _
      $region10: #{tpu_custom_call.1} parent=5 // pred_check_branch
        %459 = sbr.rel (%p456) target = $region12
      $region11: #{tpu_custom_call.1} parent=5 // pred_region
        %s460 = ssub.s32 %s27, 1
        // Predicated region
        $region13: #{tpu_custom_call.1} parent=11 // pred_check
          %p461 = pneg %p126
        $region14: #{tpu_custom_call.1} parent=11 // pred_check_branch
          %463 = sbr.rel (%p461) target = $region16
        $region15: #{tpu_custom_call.1} parent=11 // pred_region
          _
        $region16: #{tpu_custom_call.1} parent=11 // pred_fallthru
          _
        // Predicated region
        $region17: #{tpu_custom_call.1} parent=11 // pred_check
          %p464 = pneg %p147
        $region18: #{tpu_custom_call.1} parent=11 // pred_check_branch
          %466 = sbr.rel (%p464) target = $region20
        $region19: #{tpu_custom_call.1} parent=11 // pred_region
          _
        $region20: #{tpu_custom_call.1} parent=11 // pred_fallthru
          _
        // Predicated region
        $region21: #{tpu_custom_call.1} parent=11 // pred_check
          %p467 = pneg %p168
        $region22: #{tpu_custom_call.1} parent=11 // pred_check_branch
          %469 = sbr.rel (%p467) target = $region24
        $region23: #{tpu_custom_call.1} parent=11 // pred_region
          _
        $region24: #{tpu_custom_call.1} parent=11 // pred_fallthru
          _
        // Predicated region
        $region25: #{tpu_custom_call.1} parent=11 // pred_check
          %p470 = pneg %p189
        $region26: #{tpu_custom_call.1} parent=11 // pred_check_branch
          %472 = sbr.rel (%p470) target = $region28
        $region27: #{tpu_custom_call.1} parent=11 // pred_region
          _
        $region28: #{tpu_custom_call.1} parent=11 // pred_fallthru
          _
        // Predicated region
        $region29: #{tpu_custom_call.1} parent=11 // pred_check
          %p473 = pneg %p210
        $region30: #{tpu_custom_call.1} parent=11 // pred_check_branch
          %475 = sbr.rel (%p473) target = $region32
        $region31: #{tpu_custom_call.1} parent=11 // pred_region
          _
        $region32: #{tpu_custom_call.1} parent=11 // pred_fallthru
          _
        // Predicated region
        $region33: #{tpu_custom_call.1} parent=11 // pred_check
          %p476 = pneg %p231
        $region34: #{tpu_custom_call.1} parent=11 // pred_check_branch
          %478 = sbr.rel (%p476) target = $region36
        $region35: #{tpu_custom_call.1} parent=11 // pred_region
          _
        $region36: #{tpu_custom_call.1} parent=11 // pred_fallthru
          _
        // Predicated region
        $region37: #{tpu_custom_call.1} parent=11 // pred_check
          %p479 = pneg %p252
        $region38: #{tpu_custom_call.1} parent=11 // pred_check_branch
          %481 = sbr.rel (%p479) target = $region40
        $region39: #{tpu_custom_call.1} parent=11 // pred_region
          _
        $region40: #{tpu_custom_call.1} parent=11 // pred_fallthru
          _
        // Predicated region
        $region41: #{tpu_custom_call.1} parent=11 // pred_check
          %p482 = pneg %p273
        $region42: #{tpu_custom_call.1} parent=11 // pred_check_branch
          %484 = sbr.rel (%p482) target = $region44
        $region43: #{tpu_custom_call.1} parent=11 // pred_region
          _
        $region44: #{tpu_custom_call.1} parent=11 // pred_fallthru
          _
        // Predicated region
        $region45: #{tpu_custom_call.1} parent=11 // pred_check
          %p485 = pneg %p294
        $region46: #{tpu_custom_call.1} parent=11 // pred_check_branch
          %487 = sbr.rel (%p485) target = $region48
        $region47: #{tpu_custom_call.1} parent=11 // pred_region
          _
        $region48: #{tpu_custom_call.1} parent=11 // pred_fallthru
          _
        // Predicated region
        $region49: #{tpu_custom_call.1} parent=11 // pred_check
          %p488 = pneg %p315
        $region50: #{tpu_custom_call.1} parent=11 // pred_check_branch
          %490 = sbr.rel (%p488) target = $region52
        $region51: #{tpu_custom_call.1} parent=11 // pred_region
          _
        $region52: #{tpu_custom_call.1} parent=11 // pred_fallthru
          _
        // Predicated region
        $region53: #{tpu_custom_call.1} parent=11 // pred_check
          %p491 = pneg %p336
        $region54: #{tpu_custom_call.1} parent=11 // pred_check_branch
          %493 = sbr.rel (%p491) target = $region56
        $region55: #{tpu_custom_call.1} parent=11 // pred_region
          _
        $region56: #{tpu_custom_call.1} parent=11 // pred_fallthru
          _
        // Predicated region
        $region57: #{tpu_custom_call.1} parent=11 // pred_check
          %p494 = pneg %p357
        $region58: #{tpu_custom_call.1} parent=11 // pred_check_branch
          %496 = sbr.rel (%p494) target = $region60
        $region59: #{tpu_custom_call.1} parent=11 // pred_region
          _
        $region60: #{tpu_custom_call.1} parent=11 // pred_fallthru
          _
        // Predicated region
        $region61: #{tpu_custom_call.1} parent=11 // pred_check
          %p497 = pneg %p378
        $region62: #{tpu_custom_call.1} parent=11 // pred_check_branch
          %499 = sbr.rel (%p497) target = $region64
        $region63: #{tpu_custom_call.1} parent=11 // pred_region
          _
        $region64: #{tpu_custom_call.1} parent=11 // pred_fallthru
          _
        // Predicated region
        $region65: #{tpu_custom_call.1} parent=11 // pred_check
          %p500 = pneg %p399
        $region66: #{tpu_custom_call.1} parent=11 // pred_check_branch
          %502 = sbr.rel (%p500) target = $region68
        $region67: #{tpu_custom_call.1} parent=11 // pred_region
          _
        $region68: #{tpu_custom_call.1} parent=11 // pred_fallthru
          _
        // Predicated region
        $region69: #{tpu_custom_call.1} parent=11 // pred_check
          %p503 = pneg %p420
        $region70: #{tpu_custom_call.1} parent=11 // pred_check_branch
          %505 = sbr.rel (%p503) target = $region72
        $region71: #{tpu_custom_call.1} parent=11 // pred_region
          _
        $region72: #{tpu_custom_call.1} parent=11 // pred_fallthru
          _
      $region12: #{tpu_custom_call.1} parent=5 // pred_fallthru
        _
      %p506 = scmp.lt.s32.totalorder %s27, 2
      // Predicated region
      $region73: #{tpu_custom_call.1} parent=5 // pred_check
        %p507 = pneg %p506
      $region74: #{tpu_custom_call.1} parent=5 // pred_check_branch
        %509 = sbr.rel (%p507) target = $region76
      $region75: #{tpu_custom_call.1} parent=5 // pred_region
        // Predicated region
        $region77: #{tpu_custom_call.1} parent=75 // pred_check
          %p510 = pneg %p47
        $region78: #{tpu_custom_call.1} parent=75 // pred_check_branch
          %512 = sbr.rel (%p510) target = $region80
        $region79: #{tpu_custom_call.1} parent=75 // pred_region
          %p513 = scmp.lt.s32.totalorder %s27, 1
          %s514 = scalar_select %p513, %s27, 1
          %s515 = smul.addr %s514, 8
          %s516 = scalar_lea.vmem %s0, %s515
        $region80: #{tpu_custom_call.1} parent=75 // pred_fallthru
          _
        // Predicated region
        $region81: #{tpu_custom_call.1} parent=75 // pred_check
          %p517 = pneg %p73
        $region82: #{tpu_custom_call.1} parent=75 // pred_check_branch
          %519 = sbr.rel (%p517) target = $region84
        $region83: #{tpu_custom_call.1} parent=75 // pred_region
          %p520 = scmp.lt.s32.totalorder %s27, 1
          %s521 = scalar_select %p520, %s27, 1
          %s522 = smul.addr %s521, 8
          %s523 = scalar_lea.vmem %s1, %s522
        $region84: #{tpu_custom_call.1} parent=75 // pred_fallthru
          _
        // Predicated region
        $region85: #{tpu_custom_call.1} parent=75 // pred_check
          %p524 = pneg %p99
        $region86: #{tpu_custom_call.1} parent=75 // pred_check_branch
          %526 = sbr.rel (%p524) target = $region88
        $region87: #{tpu_custom_call.1} parent=75 // pred_region
          %p527 = scmp.lt.s32.totalorder %s27, 1
          %s528 = scalar_select %p527, %s27, 1
          %s529 = scalar_lea.vmem %s2, %s528
        $region88: #{tpu_custom_call.1} parent=75 // pred_fallthru
          _
      $region76: #{tpu_custom_call.1} parent=5 // pred_fallthru
        _
      %p530 = scmp.le.s32.totalorder 1, %s27
      %p531 = scmp.lt.s32.totalorder %s27, 3
      %p532 = pnand %p530, %p531
      %p533 = pneg %p532
      // Predicated region
      $region89: #{tpu_custom_call.1} parent=5 // pred_check
        _
      $region90: #{tpu_custom_call.1} parent=5 // pred_check_branch
        %535 = sbr.rel (%p532) target = $region92
      $region91: #{tpu_custom_call.1} parent=5 // pred_region
        %s536 = ssub.s32 %s27, 1
        %p537 = scmp.lt.s32.totalorder %s32, 1
        %s538 = scalar_select %p537, %s32, 1
        %s539 = smul.addr %s538, 8
        %s540 = scalar_lea.vmem %s0, %s539
        %p541 = pneg %p53
        %p542 = pneg %p50
        %p543 = scmp.lt.s32.totalorder %s32, 1
        %s544 = scalar_select %p543, %s32, 1
        %s545 = smul.addr %s544, 8
        %s546 = scalar_lea.vmem %s1, %s545
        %p547 = pneg %p79
        %p548 = pneg %p76
        %p549 = scmp.lt.s32.totalorder %s32, 1
        %s550 = scalar_select %p549, %s32, 1
        %s551 = scalar_lea.vmem %s2, %s550
        %p552 = pneg %p105
        %p553 = pneg %p102
        %p554 = pneg %p126
        %p555 = pneg %p123
        %p556 = pneg %p147
        %p557 = pneg %p144
        %p558 = pneg %p168
        %p559 = pneg %p165
        %p560 = pneg %p189
        %p561 = pneg %p186
        %p562 = pneg %p210
        %p563 = pneg %p207
        %p564 = pneg %p231
        %p565 = pneg %p228
        %p566 = pneg %p252
        %p567 = pneg %p249
        %p568 = pneg %p273
        %p569 = pneg %p270
        %p570 = pneg %p294
        %p571 = pneg %p291
        %p572 = pneg %p315
        %p573 = pneg %p312
        %p574 = pneg %p336
        %p575 = pneg %p333
        %p576 = pneg %p357
        %p577 = pneg %p354
        %p578 = pneg %p378
        %p579 = pneg %p375
        %p580 = pneg %p399
        %p581 = pneg %p396
        %p582 = pneg %p420
        %p583 = pneg %p417
        %p584 = pneg %p446
        %p585 = pneg %p443
        %s586 = sand.u32 %s433, 1
        %s587 = scalar_lea.sflag [#allocation3], %s586
        %s588 = sand.u32 %s433, 1
        %s589 = smul.addr %s588, 8
        %s590 = scalar_lea.vmem [#allocation2], %s589
        %p591 = scmp.lt.s32.totalorder %s32, 1
        %s592 = scalar_select %p591, %s32, 1
        %s593 = smul.addr %s592, 8
        %s594 = scalar_lea.vmem %s0, %s593
        %p595 = scmp.lt.s32.totalorder %s32, 1
        %s596 = scalar_select %p595, %s32, 1
        %s597 = smul.addr %s596, 8
        %s598 = scalar_lea.vmem %s1, %s597
        %p599 = scmp.lt.s32.totalorder %s32, 1
        %s600 = scalar_select %p599, %s32, 1
        %s601 = scalar_lea.vmem %s2, %s600
        %v602 = vld [vmem:[%s594] sm:$0xff]
        %v603 = vld [vmem:[%s598] sm:$0xff]
        %v604 = vld [vmem:[%s601] sm:$0x1]
        %v605 = vlaneseq
        %v606 = vshrl.u32 %v605, 7
        %v607 = vlaneseq
        %v608 = vand.u32 %v607, 127
        %vm609 = vcmp.ge.s32.totalorder %v606, %v608
        %v610 = vsel %vm609, 0.0, -1e+30
        %v611 = vld [vmem:[%s3] sm:$0xff]
        %v612 = vld [vmem:[%s3 + $0x8] sm:$0xff]
        %v613 = vld [vmem:[%s3 + $0x10] sm:$0xff]
        %v614 = vld [vmem:[%s3 + $0x18] sm:$0xff]
        %v615 = vld [vmem:[%s3 + $0x20] sm:$0xff]
        %v616 = vld [vmem:[%s3 + $0x28] sm:$0xff]
        %v617 = vld [vmem:[%s3 + $0x30] sm:$0xff]
        %v618 = vld [vmem:[%s3 + $0x38] sm:$0xff]
        %vm619 = vcmask 261120
        %v621 = vsel %vm619, %v602, 0
        %623 = vmatprep.subr.mxu0 %v612
        %624 = vmatpush1.msra.mxu0 %v611
        %625 = vmatprep.subr.mxu0 %v614
        %626 = vmatpush1.msra.mxu0 %v613
        %627 = vmatprep.subr.mxu0 %v616
        %628 = vmatpush1.msra.mxu0 %v615
        %629 = vmatprep.subr.mxu0 %v618
        %630 = vmatpush1.msra.mxu0 %v617
        %631 = vmatprep.subr.mxu0 0.0
        %632 = vmatpush1.msra.mxu0 0.0
        %633 = vmatprep.subr.mxu0 0.0
        %634 = vmatpush1.msra.mxu0 0.0
        %635 = vmatprep.subr.mxu0 0.0
        %636 = vmatpush1.msra.mxu0 0.0
        %637 = vmatprep.subr.mxu0 0.0
        %638 = vmatpush1.msra.mxu0 0.0
        %639 = vmatprep.subr.mxu0 0.0
        %640 = vmatpush1.msra.mxu0 0.0
        %641 = vmatprep.subr.mxu0 0.0
        %642 = vmatpush1.msra.mxu0 0.0
        %643 = vmatprep.subr.mxu0 0.0
        %644 = vmatpush1.msra.mxu0 0.0
        %645 = vmatprep.subr.mxu0 0.0
        %646 = vmatpush1.msra.mxu0 0.0
        %647 = vmatprep.subr.mxu0 0.0
        %648 = vmatpush1.msra.mxu0 0.0
        %649 = vmatprep.subr.mxu0 0.0
        %650 = vmatpush1.msra.mxu0 0.0
        %651 = vmatprep.subr.mxu0 0.0
        %652 = vmatpush1.msra.mxu0 0.0
        %653 = vmatprep.subr.mxu0 0.0
        %654 = vmatpush1.msra.mxu0 0.0
        %655 = vmatprep.subr.mxu0 0.0
        %656 = vmatpush1.msra.mxu0 0.0
        %657 = vmatprep.subr.mxu0 0.0
        %658 = vmatpush1.msra.mxu0 0.0
        %659 = vmatprep.subr.mxu0 0.0
        %660 = vmatpush1.msra.mxu0 0.0
        %661 = vmatprep.subr.mxu0 0.0
        %662 = vmatpush1.msra.mxu0 0.0
        %663 = vmatprep.subr.mxu0 0.0
        %664 = vmatpush1.msra.mxu0 0.0
        %665 = vmatprep.subr.mxu0 0.0
        %666 = vmatpush1.msra.mxu0 0.0
        %667 = vmatprep.subr.mxu0 0.0
        %668 = vmatpush1.msra.mxu0 0.0
        %669 = vmatprep.subr.mxu0 0.0
        %670 = vmatpush1.msra.mxu0 0.0
        %671 = vmatprep.subr.mxu0 0.0
        %672 = vmatpush1.msra.mxu0 0.0
        %673 = vmatprep.subr.mxu0 0.0
        %674 = vmatpush1.msra.mxu0 0.0
        %675 = vmatprep.subr.mxu0 0.0
        %676 = vmatpush1.msra.mxu0 0.0
        %677 = vmatprep.subr.mxu0 0.0
        %678 = vmatpush1.msra.mxu0 0.0
        %679 = vmatprep.subr.mxu0 0.0
        %680 = vmatpush1.msra.mxu0 0.0
        %681 = vmatprep.subr.mxu0 0.0
        %682 = vmatpush1.msra.mxu0 0.0
        %683 = vmatprep.subr.mxu0 0.0
        %684 = vmatpush1.msra.mxu0 0.0
        %685 = vmatprep.subr.mxu0 0.0
        %686 = vmatpush1.msra.mxu0 0.0
        %687 = vmatprep.mubr.f32.mxu0 0.0
        %688 = vmatmul.mubr.f32.gmra.mrb[0].mxu0 %v621
        %v689 = vpop.f32.mrb[0].mxu0
        %v690 = vadd.f32 0.0, %v689
        %v691 = vpop.f32.mrb[0].mxu0
        %v692 = vadd.f32 0.0, %v691
        %693 = vdwg.mxu0
        %v694 = vld [vmem:[%s4] sm:$0xff]
        %v695 = vld [vmem:[%s4 + $0x8] sm:$0xff]
        %v696 = vld [vmem:[%s4 + $0x10] sm:$0xff]
        %v697 = vld [vmem:[%s4 + $0x18] sm:$0xff]
        %v698 = vld [vmem:[%s4 + $0x20] sm:$0xff]
        %v699 = vld [vmem:[%s4 + $0x28] sm:$0xff]
        %v700 = vld [vmem:[%s4 + $0x30] sm:$0xff]
        %v701 = vld [vmem:[%s4 + $0x38] sm:$0xff]
        %703 = vrot.lane.b32.xlu0 %v690, 112
        %v704 = vpop.permute.xlu0 %703
        %705 = vrot.lane.b32.xlu0 %v690, 96
        %v706 = vpop.permute.xlu0 %705
        %707 = vrot.lane.b32.xlu0 %v690, 80
        %v708 = vpop.permute.xlu0 %707
        %710 = vrot.lane.b32.xlu0 %v692, 112
        %v711 = vpop.permute.xlu0 %710
        %713 = vrot.lane.b32.xlu0 %v692, 96
        %v714 = vpop.permute.xlu0 %713
        %716 = vrot.lane.b32.xlu0 %v692, 80
        %v717 = vpop.permute.xlu0 %716
        %719 = vrot.lane.b32.xlu0 %v690, 64
        %v720 = vpop.permute.xlu0 %719
        %vm721 = vcmask 130048
        %v722 = vsel %vm721, %v690, 0
        %v724 = vsel %vm721, %v720, 0
        %726 = vmatprep.subr.mxu0 0.0
        %727 = vmatpush1.xpose.msra.mxu0 %v724
        %728 = vmatprep.subr.mxu0 0.0
        %729 = vmatpush1.xpose.msra.mxu0 0.0
        %730 = vmatprep.subr.mxu0 0.0
        %731 = vmatpush1.xpose.msra.mxu0 0.0
        %732 = vmatprep.subr.mxu0 0.0
        %733 = vmatpush1.xpose.msra.mxu0 0.0
        %734 = vmatprep.subr.mxu0 0.0
        %735 = vmatpush1.xpose.msra.mxu0 0.0
        %736 = vmatprep.subr.mxu0 0.0
        %737 = vmatpush1.xpose.msra.mxu0 0.0
        %738 = vmatprep.subr.mxu0 0.0
        %739 = vmatpush1.xpose.msra.mxu0 0.0
        %740 = vmatprep.subr.mxu0 0.0
        %741 = vmatpush1.xpose.msra.mxu0 0.0
        %742 = vmatprep.subr.mxu0 0.0
        %743 = vmatpush1.xpose.msra.mxu0 0.0
        %744 = vmatprep.subr.mxu0 0.0
        %745 = vmatpush1.xpose.msra.mxu0 0.0
        %746 = vmatprep.subr.mxu0 0.0
        %747 = vmatpush1.xpose.msra.mxu0 0.0
        %748 = vmatprep.subr.mxu0 0.0
        %749 = vmatpush1.xpose.msra.mxu0 0.0
        %750 = vmatprep.subr.mxu0 0.0
        %751 = vmatpush1.xpose.msra.mxu0 0.0
        %752 = vmatprep.subr.mxu0 0.0
        %753 = vmatpush1.xpose.msra.mxu0 0.0
        %754 = vmatprep.subr.mxu0 0.0
        %755 = vmatpush1.xpose.msra.mxu0 0.0
        %756 = vmatprep.subr.mxu0 0.0
        %757 = vmatpush1.xpose.msra.mxu0 0.0
        %758 = vmatprep.subr.mxu0 0.0
        %759 = vmatpush1.xpose.msra.mxu0 0.0
        %760 = vmatprep.subr.mxu0 0.0
        %761 = vmatpush1.xpose.msra.mxu0 0.0
        %762 = vmatprep.subr.mxu0 0.0
        %763 = vmatpush1.xpose.msra.mxu0 0.0
        %764 = vmatprep.subr.mxu0 0.0
        %765 = vmatpush1.xpose.msra.mxu0 0.0
        %766 = vmatprep.subr.mxu0 0.0
        %767 = vmatpush1.xpose.msra.mxu0 0.0
        %768 = vmatprep.subr.mxu0 0.0
        %769 = vmatpush1.xpose.msra.mxu0 0.0
        %770 = vmatprep.subr.mxu0 0.0
        %771 = vmatpush1.xpose.msra.mxu0 0.0
        %772 = vmatprep.subr.mxu0 0.0
        %773 = vmatpush1.xpose.msra.mxu0 0.0
        %774 = vmatprep.subr.mxu0 0.0
        %775 = vmatpush1.xpose.msra.mxu0 0.0
        %776 = vmatprep.subr.mxu0 0.0
        %777 = vmatpush1.xpose.msra.mxu0 0.0
        %778 = vmatprep.subr.mxu0 0.0
        %779 = vmatpush1.xpose.msra.mxu0 0.0
        %780 = vmatprep.subr.mxu0 0.0
        %781 = vmatpush1.xpose.msra.mxu0 0.0
        %782 = vmatprep.subr.mxu0 0.0
        %783 = vmatpush1.xpose.msra.mxu0 0.0
        %784 = vmatprep.subr.mxu0 0.0
        %785 = vmatpush1.xpose.msra.mxu0 0.0
        %786 = vmatprep.subr.mxu0 0.0
        %787 = vmatpush1.xpose.msra.mxu0 0.0
        %788 = vmatprep.subr.mxu0 0.0
        %789 = vmatpush1.xpose.msra.mxu0 0.0
        %790 = vmatprep.mubr.f32.mxu0 0.0
        %791 = vmatmul.mubr.f32.gmra.mrb[0].mxu0 %v722
        %v792 = vpop.f32.mrb[0].mxu0
        %v793 = vadd.f32 0.0, %v792
        %v794 = vpop.f32.mrb[0].mxu0
        %795 = vdwg.mxu0
        %796 = vrot.lane.b32.xlu0 %v704, 64
        %v797 = vpop.permute.xlu0 %796
        %v798 = vsel %vm721, %v704, 0
        %v800 = vsel %vm721, %v797, 0
        %802 = vmatprep.subr.mxu0 0.0
        %803 = vmatpush1.xpose.msra.mxu0 %v800
        %804 = vmatprep.subr.mxu0 0.0
        %805 = vmatpush1.xpose.msra.mxu0 0.0
        %806 = vmatprep.subr.mxu0 0.0
        %807 = vmatpush1.xpose.msra.mxu0 0.0
        %808 = vmatprep.subr.mxu0 0.0
        %809 = vmatpush1.xpose.msra.mxu0 0.0
        %810 = vmatprep.subr.mxu0 0.0
        %811 = vmatpush1.xpose.msra.mxu0 0.0
        %812 = vmatprep.subr.mxu0 0.0
        %813 = vmatpush1.xpose.msra.mxu0 0.0
        %814 = vmatprep.subr.mxu0 0.0
        %815 = vmatpush1.xpose.msra.mxu0 0.0
        %816 = vmatprep.subr.mxu0 0.0
        %817 = vmatpush1.xpose.msra.mxu0 0.0
        %818 = vmatprep.subr.mxu0 0.0
        %819 = vmatpush1.xpose.msra.mxu0 0.0
        %820 = vmatprep.subr.mxu0 0.0
        %821 = vmatpush1.xpose.msra.mxu0 0.0
        %822 = vmatprep.subr.mxu0 0.0
        %823 = vmatpush1.xpose.msra.mxu0 0.0
        %824 = vmatprep.subr.mxu0 0.0
        %825 = vmatpush1.xpose.msra.mxu0 0.0
        %826 = vmatprep.subr.mxu0 0.0
        %827 = vmatpush1.xpose.msra.mxu0 0.0
        %828 = vmatprep.subr.mxu0 0.0
        %829 = vmatpush1.xpose.msra.mxu0 0.0
        %830 = vmatprep.subr.mxu0 0.0
        %831 = vmatpush1.xpose.msra.mxu0 0.0
        %832 = vmatprep.subr.mxu0 0.0
        %833 = vmatpush1.xpose.msra.mxu0 0.0
        %834 = vmatprep.subr.mxu0 0.0
        %835 = vmatpush1.xpose.msra.mxu0 0.0
        %836 = vmatprep.subr.mxu0 0.0
        %837 = vmatpush1.xpose.msra.mxu0 0.0
        %838 = vmatprep.subr.mxu0 0.0
        %839 = vmatpush1.xpose.msra.mxu0 0.0
        %840 = vmatprep.subr.mxu0 0.0
        %841 = vmatpush1.xpose.msra.mxu0 0.0
        %842 = vmatprep.subr.mxu0 0.0
        %843 = vmatpush1.xpose.msra.mxu0 0.0
        %844 = vmatprep.subr.mxu0 0.0
        %845 = vmatpush1.xpose.msra.mxu0 0.0
        %846 = vmatprep.subr.mxu0 0.0
        %847 = vmatpush1.xpose.msra.mxu0 0.0
        %848 = vmatprep.subr.mxu0 0.0
        %849 = vmatpush1.xpose.msra.mxu0 0.0
        %850 = vmatprep.subr.mxu0 0.0
        %851 = vmatpush1.xpose.msra.mxu0 0.0
        %852 = vmatprep.subr.mxu0 0.0
        %853 = vmatpush1.xpose.msra.mxu0 0.0
        %854 = vmatprep.subr.mxu0 0.0
        %855 = vmatpush1.xpose.msra.mxu0 0.0
        %856 = vmatprep.subr.mxu0 0.0
        %857 = vmatpush1.xpose.msra.mxu0 0.0
        %858 = vmatprep.subr.mxu0 0.0
        %859 = vmatpush1.xpose.msra.mxu0 0.0
        %860 = vmatprep.subr.mxu0 0.0
        %861 = vmatpush1.xpose.msra.mxu0 0.0
        %862 = vmatprep.subr.mxu0 0.0
        %863 = vmatpush1.xpose.msra.mxu0 0.0
        %864 = vmatprep.subr.mxu0 0.0
        %865 = vmatpush1.xpose.msra.mxu0 0.0
        %866 = vmatprep.mubr.f32.mxu0 0.0
        %867 = vmatmul.mubr.f32.gmra.mrb[0].mxu0 %v798
        %v868 = vpop.f32.mrb[0].mxu0
        %v869 = vadd.f32 0.0, %v868
        %v870 = vpop.f32.mrb[0].mxu0
        %871 = vdwg.mxu0
        %872 = vrot.lane.b32.xlu0 %v706, 64
        %v873 = vpop.permute.xlu0 %872
        %v874 = vsel %vm721, %v706, 0
        %v876 = vsel %vm721, %v873, 0
        %878 = vmatprep.subr.mxu0 0.0
        %879 = vmatpush1.xpose.msra.mxu0 %v876
        %880 = vmatprep.subr.mxu0 0.0
        %881 = vmatpush1.xpose.msra.mxu0 0.0
        %882 = vmatprep.subr.mxu0 0.0
        %883 = vmatpush1.xpose.msra.mxu0 0.0
        %884 = vmatprep.subr.mxu0 0.0
        %885 = vmatpush1.xpose.msra.mxu0 0.0
        %886 = vmatprep.subr.mxu0 0.0
        %887 = vmatpush1.xpose.msra.mxu0 0.0
        %888 = vmatprep.subr.mxu0 0.0
        %889 = vmatpush1.xpose.msra.mxu0 0.0
        %890 = vmatprep.subr.mxu0 0.0
        %891 = vmatpush1.xpose.msra.mxu0 0.0
        %892 = vmatprep.subr.mxu0 0.0
        %893 = vmatpush1.xpose.msra.mxu0 0.0
        %894 = vmatprep.subr.mxu0 0.0
        %895 = vmatpush1.xpose.msra.mxu0 0.0
        %896 = vmatprep.subr.mxu0 0.0
        %897 = vmatpush1.xpose.msra.mxu0 0.0
        %898 = vmatprep.subr.mxu0 0.0
        %899 = vmatpush1.xpose.msra.mxu0 0.0
        %900 = vmatprep.subr.mxu0 0.0
        %901 = vmatpush1.xpose.msra.mxu0 0.0
        %902 = vmatprep.subr.mxu0 0.0
        %903 = vmatpush1.xpose.msra.mxu0 0.0
        %904 = vmatprep.subr.mxu0 0.0
        %905 = vmatpush1.xpose.msra.mxu0 0.0
        %906 = vmatprep.subr.mxu0 0.0
        %907 = vmatpush1.xpose.msra.mxu0 0.0
        %908 = vmatprep.subr.mxu0 0.0
        %909 = vmatpush1.xpose.msra.mxu0 0.0
        %910 = vmatprep.subr.mxu0 0.0
        %911 = vmatpush1.xpose.msra.mxu0 0.0
        %912 = vmatprep.subr.mxu0 0.0
        %913 = vmatpush1.xpose.msra.mxu0 0.0
        %914 = vmatprep.subr.mxu0 0.0
        %915 = vmatpush1.xpose.msra.mxu0 0.0
        %916 = vmatprep.subr.mxu0 0.0
        %917 = vmatpush1.xpose.msra.mxu0 0.0
        %918 = vmatprep.subr.mxu0 0.0
        %919 = vmatpush1.xpose.msra.mxu0 0.0
        %920 = vmatprep.subr.mxu0 0.0
        %921 = vmatpush1.xpose.msra.mxu0 0.0
        %922 = vmatprep.subr.mxu0 0.0
        %923 = vmatpush1.xpose.msra.mxu0 0.0
        %924 = vmatprep.subr.mxu0 0.0
        %925 = vmatpush1.xpose.msra.mxu0 0.0
        %926 = vmatprep.subr.mxu0 0.0
        %927 = vmatpush1.xpose.msra.mxu0 0.0
        %928 = vmatprep.subr.mxu0 0.0
        %929 = vmatpush1.xpose.msra.mxu0 0.0
        %930 = vmatprep.subr.mxu0 0.0
        %931 = vmatpush1.xpose.msra.mxu0 0.0
        %932 = vmatprep.subr.mxu0 0.0
        %933 = vmatpush1.xpose.msra.mxu0 0.0
        %934 = vmatprep.subr.mxu0 0.0
        %935 = vmatpush1.xpose.msra.mxu0 0.0
        %936 = vmatprep.subr.mxu0 0.0
        %937 = vmatpush1.xpose.msra.mxu0 0.0
        %938 = vmatprep.subr.mxu0 0.0
        %939 = vmatpush1.xpose.msra.mxu0 0.0
        %940 = vmatprep.subr.mxu0 0.0
        %941 = vmatpush1.xpose.msra.mxu0 0.0
        %942 = vmatprep.mubr.f32.mxu0 0.0
        %943 = vmatmul.mubr.f32.gmra.mrb[0].mxu0 %v874
        %v944 = vpop.f32.mrb[0].mxu0
        %v945 = vadd.f32 0.0, %v944
        %v946 = vpop.f32.mrb[0].mxu0
        %947 = vdwg.mxu0
        %948 = vrot.lane.b32.xlu0 %v708, 64
        %v949 = vpop.permute.xlu0 %948
        %v950 = vsel %vm721, %v708, 0
        %v952 = vsel %vm721, %v949, 0
        %954 = vmatprep.subr.mxu0 0.0
        %955 = vmatpush1.xpose.msra.mxu0 %v952
        %956 = vmatprep.subr.mxu0 0.0
        %957 = vmatpush1.xpose.msra.mxu0 0.0
        %958 = vmatprep.subr.mxu0 0.0
        %959 = vmatpush1.xpose.msra.mxu0 0.0
        %960 = vmatprep.subr.mxu0 0.0
        %961 = vmatpush1.xpose.msra.mxu0 0.0
        %962 = vmatprep.subr.mxu0 0.0
        %963 = vmatpush1.xpose.msra.mxu0 0.0
        %964 = vmatprep.subr.mxu0 0.0
        %965 = vmatpush1.xpose.msra.mxu0 0.0
        %966 = vmatprep.subr.mxu0 0.0
        %967 = vmatpush1.xpose.msra.mxu0 0.0
        %968 = vmatprep.subr.mxu0 0.0
        %969 = vmatpush1.xpose.msra.mxu0 0.0
        %970 = vmatprep.subr.mxu0 0.0
        %971 = vmatpush1.xpose.msra.mxu0 0.0
        %972 = vmatprep.subr.mxu0 0.0
        %973 = vmatpush1.xpose.msra.mxu0 0.0
        %974 = vmatprep.subr.mxu0 0.0
        %975 = vmatpush1.xpose.msra.mxu0 0.0
        %976 = vmatprep.subr.mxu0 0.0
        %977 = vmatpush1.xpose.msra.mxu0 0.0
        %978 = vmatprep.subr.mxu0 0.0
        %979 = vmatpush1.xpose.msra.mxu0 0.0
        %980 = vmatprep.subr.mxu0 0.0
        %981 = vmatpush1.xpose.msra.mxu0 0.0
        %982 = vmatprep.subr.mxu0 0.0
        %983 = vmatpush1.xpose.msra.mxu0 0.0
        %984 = vmatprep.subr.mxu0 0.0
        %985 = vmatpush1.xpose.msra.mxu0 0.0
        %986 = vmatprep.subr.mxu0 0.0
        %987 = vmatpush1.xpose.msra.mxu0 0.0
        %988 = vmatprep.subr.mxu0 0.0
        %989 = vmatpush1.xpose.msra.mxu0 0.0
        %990 = vmatprep.subr.mxu0 0.0
        %991 = vmatpush1.xpose.msra.mxu0 0.0
        %992 = vmatprep.subr.mxu0 0.0
        %993 = vmatpush1.xpose.msra.mxu0 0.0
        %994 = vmatprep.subr.mxu0 0.0
        %995 = vmatpush1.xpose.msra.mxu0 0.0
        %996 = vmatprep.subr.mxu0 0.0
        %997 = vmatpush1.xpose.msra.mxu0 0.0
        %998 = vmatprep.subr.mxu0 0.0
        %999 = vmatpush1.xpose.msra.mxu0 0.0
        %1000 = vmatprep.subr.mxu0 0.0
        %1001 = vmatpush1.xpose.msra.mxu0 0.0
        %1002 = vmatprep.subr.mxu0 0.0
        %1003 = vmatpush1.xpose.msra.mxu0 0.0
        %1004 = vmatprep.subr.mxu0 0.0
        %1005 = vmatpush1.xpose.msra.mxu0 0.0
        %1006 = vmatprep.subr.mxu0 0.0
        %1007 = vmatpush1.xpose.msra.mxu0 0.0
        %1008 = vmatprep.subr.mxu0 0.0
        %1009 = vmatpush1.xpose.msra.mxu0 0.0
        %1010 = vmatprep.subr.mxu0 0.0
        %1011 = vmatpush1.xpose.msra.mxu0 0.0
        %1012 = vmatprep.subr.mxu0 0.0
        %1013 = vmatpush1.xpose.msra.mxu0 0.0
        %1014 = vmatprep.subr.mxu0 0.0
        %1015 = vmatpush1.xpose.msra.mxu0 0.0
        %1016 = vmatprep.subr.mxu0 0.0
        %1017 = vmatpush1.xpose.msra.mxu0 0.0
        %1018 = vmatprep.mubr.f32.mxu0 0.0
        %1019 = vmatmul.mubr.f32.gmra.mrb[0].mxu0 %v950
        %v1020 = vpop.f32.mrb[0].mxu0
        %v1021 = vadd.f32 0.0, %v1020
        %v1022 = vpop.f32.mrb[0].mxu0
        %1023 = vdwg.mxu0
        %v1024 = vmul.f32 %v793, 0.25
        %v1025 = vmul.f32 %v869, 0.25
        %v1026 = vmul.f32 %v945, 0.25
        %v1027 = vmul.f32 %v1021, 0.25
        %v1028 = vadd.f32 %v1024, %v610
        %v1029 = vadd.f32 %v1025, %v610
        %v1030 = vadd.f32 %v1026, %v610
        %v1031 = vadd.f32 %v1027, %v610
        %vm1032 = vcmask 64512
        %v1033 = vsel %vm1032, %v1028, -inf
        %1034 = vmax.xlane.f32.xlu0 %v1033
        %v1035 = vpop.xlane.xlu0 %1034
        %v1036 = vsel %vm1032, %v1029, -inf
        %1037 = vmax.xlane.f32.xlu0 %v1036
        %v1038 = vpop.xlane.xlu0 %1037
        %v1039 = vsel %vm1032, %v1030, -inf
        %1040 = vmax.xlane.f32.xlu0 %v1039
        %v1041 = vpop.xlane.xlu0 %1040
        %v1042 = vsel %vm1032, %v1031, -inf
        %1043 = vmax.xlane.f32.xlu0 %v1042
        %v1044 = vpop.xlane.xlu0 %1043
        %v1045 = vsub.f32 %v1028, %v1035
        %v1046 = vsub.f32 %v1029, %v1038
        %v1047 = vsub.f32 %v1030, %v1041
        %v1048 = vsub.f32 %v1031, %v1044
        %v1049 = vmul.f32 %v1045, 1.442695
        %v1050 = vpow.pop %v1049
        %v1051 = vmul.f32 %v1046, 1.442695
        %v1052 = vpow.pop %v1051
        %v1053 = vmul.f32 %v1047, 1.442695
        %v1054 = vpow.pop %v1053
        %v1055 = vmul.f32 %v1048, 1.442695
        %v1056 = vpow.pop %v1055
        %v1057 = vsel %vm1032, %v1050, 0.0
        %1058 = vadd.xlane.f32.xlu0 %v1057
        %v1059 = vpop.xlane.xlu0 %1058
        %v1060 = vsel %vm1032, %v1052, 0.0
        %1061 = vadd.xlane.f32.xlu0 %v1060
        %v1062 = vpop.xlane.xlu0 %1061
        %v1063 = vsel %vm1032, %v1054, 0.0
        %1064 = vadd.xlane.f32.xlu0 %v1063
        %v1065 = vpop.xlane.xlu0 %1064
        %v1066 = vsel %vm1032, %v1056, 0.0
        %1067 = vadd.xlane.f32.xlu0 %v1066
        %v1068 = vpop.xlane.xlu0 %1067
        %v1069 = vrcp.pop %v1059
        %v1070 = vrcp.pop %v1062
        %v1071 = vrcp.pop %v1065
        %v1072 = vrcp.pop %v1068
        %v1073 = vmul.f32 %v1050, %v1069
        %v1074 = vmul.f32 %v1052, %v1070
        %v1075 = vmul.f32 %v1054, %v1071
        %v1076 = vmul.f32 %v1056, %v1072
        %v1078 = vsel %vm1032, %v1073, 0
        %1080 = vmatprep.subr.mxu0 0.0
        %1081 = vmatpush1.msra.mxu0 %v692
        %1082 = vmatprep.subr.mxu0 0.0
        %1083 = vmatpush1.msra.mxu0 0.0
        %1084 = vmatprep.subr.mxu0 0.0
        %1085 = vmatpush1.msra.mxu0 0.0
        %1086 = vmatprep.subr.mxu0 0.0
        %1087 = vmatpush1.msra.mxu0 0.0
        %1088 = vmatprep.subr.mxu0 0.0
        %1089 = vmatpush1.msra.mxu0 0.0
        %1090 = vmatprep.subr.mxu0 0.0
        %1091 = vmatpush1.msra.mxu0 0.0
        %1092 = vmatprep.subr.mxu0 0.0
        %1093 = vmatpush1.msra.mxu0 0.0
        %1094 = vmatprep.subr.mxu0 0.0
        %1095 = vmatpush1.msra.mxu0 0.0
        %1096 = vmatprep.subr.mxu0 0.0
        %1097 = vmatpush1.msra.mxu0 0.0
        %1098 = vmatprep.subr.mxu0 0.0
        %1099 = vmatpush1.msra.mxu0 0.0
        %1100 = vmatprep.subr.mxu0 0.0
        %1101 = vmatpush1.msra.mxu0 0.0
        %1102 = vmatprep.subr.mxu0 0.0
        %1103 = vmatpush1.msra.mxu0 0.0
        %1104 = vmatprep.subr.mxu0 0.0
        %1105 = vmatpush1.msra.mxu0 0.0
        %1106 = vmatprep.subr.mxu0 0.0
        %1107 = vmatpush1.msra.mxu0 0.0
        %1108 = vmatprep.subr.mxu0 0.0
        %1109 = vmatpush1.msra.mxu0 0.0
        %1110 = vmatprep.subr.mxu0 0.0
        %1111 = vmatpush1.msra.mxu0 0.0
        %1112 = vmatprep.subr.mxu0 0.0
        %1113 = vmatpush1.msra.mxu0 0.0
        %1114 = vmatprep.subr.mxu0 0.0
        %1115 = vmatpush1.msra.mxu0 0.0
        %1116 = vmatprep.subr.mxu0 0.0
        %1117 = vmatpush1.msra.mxu0 0.0
        %1118 = vmatprep.subr.mxu0 0.0
        %1119 = vmatpush1.msra.mxu0 0.0
        %1120 = vmatprep.subr.mxu0 0.0
        %1121 = vmatpush1.msra.mxu0 0.0
        %1122 = vmatprep.subr.mxu0 0.0
        %1123 = vmatpush1.msra.mxu0 0.0
        %1124 = vmatprep.subr.mxu0 0.0
        %1125 = vmatpush1.msra.mxu0 0.0
        %1126 = vmatprep.subr.mxu0 0.0
        %1127 = vmatpush1.msra.mxu0 0.0
        %1128 = vmatprep.subr.mxu0 0.0
        %1129 = vmatpush1.msra.mxu0 0.0
        %1130 = vmatprep.subr.mxu0 0.0
        %1131 = vmatpush1.msra.mxu0 0.0
        %1132 = vmatprep.subr.mxu0 0.0
        %1133 = vmatpush1.msra.mxu0 0.0
        %1134 = vmatprep.subr.mxu0 0.0
        %1135 = vmatpush1.msra.mxu0 0.0
        %1136 = vmatprep.subr.mxu0 0.0
        %1137 = vmatpush1.msra.mxu0 0.0
        %1138 = vmatprep.subr.mxu0 0.0
        %1139 = vmatpush1.msra.mxu0 0.0
        %1140 = vmatprep.subr.mxu0 0.0
        %1141 = vmatpush1.msra.mxu0 0.0
        %1142 = vmatprep.subr.mxu0 0.0
        %1143 = vmatpush1.msra.mxu0 0.0
        %1144 = vmatprep.mubr.f32.mxu0 0.0
        %1145 = vmatmul.mubr.f32.gmra.mrb[0].mxu0 %v1078
        %v1146 = vpop.f32.mrb[0].mxu0
        %v1147 = vadd.f32 0.0, %v1146
        %v1148 = vpop.f32.mrb[0].mxu0
        %1149 = vdwg.mxu0
        %v1151 = vsel %vm1032, %v1074, 0
        %1153 = vmatprep.subr.mxu0 0.0
        %1154 = vmatpush1.msra.mxu0 %v711
        %1155 = vmatprep.subr.mxu0 0.0
        %1156 = vmatpush1.msra.mxu0 0.0
        %1157 = vmatprep.subr.mxu0 0.0
        %1158 = vmatpush1.msra.mxu0 0.0
        %1159 = vmatprep.subr.mxu0 0.0
        %1160 = vmatpush1.msra.mxu0 0.0
        %1161 = vmatprep.subr.mxu0 0.0
        %1162 = vmatpush1.msra.mxu0 0.0
        %1163 = vmatprep.subr.mxu0 0.0
        %1164 = vmatpush1.msra.mxu0 0.0
        %1165 = vmatprep.subr.mxu0 0.0
        %1166 = vmatpush1.msra.mxu0 0.0
        %1167 = vmatprep.subr.mxu0 0.0
        %1168 = vmatpush1.msra.mxu0 0.0
        %1169 = vmatprep.subr.mxu0 0.0
        %1170 = vmatpush1.msra.mxu0 0.0
        %1171 = vmatprep.subr.mxu0 0.0
        %1172 = vmatpush1.msra.mxu0 0.0
        %1173 = vmatprep.subr.mxu0 0.0
        %1174 = vmatpush1.msra.mxu0 0.0
        %1175 = vmatprep.subr.mxu0 0.0
        %1176 = vmatpush1.msra.mxu0 0.0
        %1177 = vmatprep.subr.mxu0 0.0
        %1178 = vmatpush1.msra.mxu0 0.0
        %1179 = vmatprep.subr.mxu0 0.0
        %1180 = vmatpush1.msra.mxu0 0.0
        %1181 = vmatprep.subr.mxu0 0.0
        %1182 = vmatpush1.msra.mxu0 0.0
        %1183 = vmatprep.subr.mxu0 0.0
        %1184 = vmatpush1.msra.mxu0 0.0
        %1185 = vmatprep.subr.mxu0 0.0
        %1186 = vmatpush1.msra.mxu0 0.0
        %1187 = vmatprep.subr.mxu0 0.0
        %1188 = vmatpush1.msra.mxu0 0.0
        %1189 = vmatprep.subr.mxu0 0.0
        %1190 = vmatpush1.msra.mxu0 0.0
        %1191 = vmatprep.subr.mxu0 0.0
        %1192 = vmatpush1.msra.mxu0 0.0
        %1193 = vmatprep.subr.mxu0 0.0
        %1194 = vmatpush1.msra.mxu0 0.0
        %1195 = vmatprep.subr.mxu0 0.0
        %1196 = vmatpush1.msra.mxu0 0.0
        %1197 = vmatprep.subr.mxu0 0.0
        %1198 = vmatpush1.msra.mxu0 0.0
        %1199 = vmatprep.subr.mxu0 0.0
        %1200 = vmatpush1.msra.mxu0 0.0
        %1201 = vmatprep.subr.mxu0 0.0
        %1202 = vmatpush1.msra.mxu0 0.0
        %1203 = vmatprep.subr.mxu0 0.0
        %1204 = vmatpush1.msra.mxu0 0.0
        %1205 = vmatprep.subr.mxu0 0.0
        %1206 = vmatpush1.msra.mxu0 0.0
        %1207 = vmatprep.subr.mxu0 0.0
        %1208 = vmatpush1.msra.mxu0 0.0
        %1209 = vmatprep.subr.mxu0 0.0
        %1210 = vmatpush1.msra.mxu0 0.0
        %1211 = vmatprep.subr.mxu0 0.0
        %1212 = vmatpush1.msra.mxu0 0.0
        %1213 = vmatprep.subr.mxu0 0.0
        %1214 = vmatpush1.msra.mxu0 0.0
        %1215 = vmatprep.subr.mxu0 0.0
        %1216 = vmatpush1.msra.mxu0 0.0
        %1217 = vmatprep.mubr.f32.mxu0 0.0
        %1218 = vmatmul.mubr.f32.gmra.mrb[0].mxu0 %v1151
        %v1219 = vpop.f32.mrb[0].mxu0
        %v1220 = vadd.f32 0.0, %v1219
        %v1221 = vpop.f32.mrb[0].mxu0
        %1222 = vdwg.mxu0
        %v1224 = vsel %vm1032, %v1075, 0
        %1226 = vmatprep.subr.mxu0 0.0
        %1227 = vmatpush1.msra.mxu0 %v714
        %1228 = vmatprep.subr.mxu0 0.0
        %1229 = vmatpush1.msra.mxu0 0.0
        %1230 = vmatprep.subr.mxu0 0.0
        %1231 = vmatpush1.msra.mxu0 0.0
        %1232 = vmatprep.subr.mxu0 0.0
        %1233 = vmatpush1.msra.mxu0 0.0
        %1234 = vmatprep.subr.mxu0 0.0
        %1235 = vmatpush1.msra.mxu0 0.0
        %1236 = vmatprep.subr.mxu0 0.0
        %1237 = vmatpush1.msra.mxu0 0.0
        %1238 = vmatprep.subr.mxu0 0.0
        %1239 = vmatpush1.msra.mxu0 0.0
        %1240 = vmatprep.subr.mxu0 0.0
        %1241 = vmatpush1.msra.mxu0 0.0
        %1242 = vmatprep.subr.mxu0 0.0
        %1243 = vmatpush1.msra.mxu0 0.0
        %1244 = vmatprep.subr.mxu0 0.0
        %1245 = vmatpush1.msra.mxu0 0.0
        %1246 = vmatprep.subr.mxu0 0.0
        %1247 = vmatpush1.msra.mxu0 0.0
        %1248 = vmatprep.subr.mxu0 0.0
        %1249 = vmatpush1.msra.mxu0 0.0
        %1250 = vmatprep.subr.mxu0 0.0
        %1251 = vmatpush1.msra.mxu0 0.0
        %1252 = vmatprep.subr.mxu0 0.0
        %1253 = vmatpush1.msra.mxu0 0.0
        %1254 = vmatprep.subr.mxu0 0.0
        %1255 = vmatpush1.msra.mxu0 0.0
        %1256 = vmatprep.subr.mxu0 0.0
        %1257 = vmatpush1.msra.mxu0 0.0
        %1258 = vmatprep.subr.mxu0 0.0
        %1259 = vmatpush1.msra.mxu0 0.0
        %1260 = vmatprep.subr.mxu0 0.0
        %1261 = vmatpush1.msra.mxu0 0.0
        %1262 = vmatprep.subr.mxu0 0.0
        %1263 = vmatpush1.msra.mxu0 0.0
        %1264 = vmatprep.subr.mxu0 0.0
        %1265 = vmatpush1.msra.mxu0 0.0
        %1266 = vmatprep.subr.mxu0 0.0
        %1267 = vmatpush1.msra.mxu0 0.0
        %1268 = vmatprep.subr.mxu0 0.0
        %1269 = vmatpush1.msra.mxu0 0.0
        %1270 = vmatprep.subr.mxu0 0.0
        %1271 = vmatpush1.msra.mxu0 0.0
        %1272 = vmatprep.subr.mxu0 0.0
        %1273 = vmatpush1.msra.mxu0 0.0
        %1274 = vmatprep.subr.mxu0 0.0
        %1275 = vmatpush1.msra.mxu0 0.0
        %1276 = vmatprep.subr.mxu0 0.0
        %1277 = vmatpush1.msra.mxu0 0.0
        %1278 = vmatprep.subr.mxu0 0.0
        %1279 = vmatpush1.msra.mxu0 0.0
        %1280 = vmatprep.subr.mxu0 0.0
        %1281 = vmatpush1.msra.mxu0 0.0
        %1282 = vmatprep.subr.mxu0 0.0
        %1283 = vmatpush1.msra.mxu0 0.0
        %1284 = vmatprep.subr.mxu0 0.0
        %1285 = vmatpush1.msra.mxu0 0.0
        %1286 = vmatprep.subr.mxu0 0.0
        %1287 = vmatpush1.msra.mxu0 0.0
        %1288 = vmatprep.subr.mxu0 0.0
        %1289 = vmatpush1.msra.mxu0 0.0
        %1290 = vmatprep.mubr.f32.mxu0 0.0
        %1291 = vmatmul.mubr.f32.gmra.mrb[0].mxu0 %v1224
        %v1292 = vpop.f32.mrb[0].mxu0
        %v1293 = vadd.f32 0.0, %v1292
        %v1294 = vpop.f32.mrb[0].mxu0
        %1295 = vdwg.mxu0
        %v1297 = vsel %vm1032, %v1076, 0
        %1299 = vmatprep.subr.mxu0 0.0
        %1300 = vmatpush1.msra.mxu0 %v717
        %1301 = vmatprep.subr.mxu0 0.0
        %1302 = vmatpush1.msra.mxu0 0.0
        %1303 = vmatprep.subr.mxu0 0.0
        %1304 = vmatpush1.msra.mxu0 0.0
        %1305 = vmatprep.subr.mxu0 0.0
        %1306 = vmatpush1.msra.mxu0 0.0
        %1307 = vmatprep.subr.mxu0 0.0
        %1308 = vmatpush1.msra.mxu0 0.0
        %1309 = vmatprep.subr.mxu0 0.0
        %1310 = vmatpush1.msra.mxu0 0.0
        %1311 = vmatprep.subr.mxu0 0.0
        %1312 = vmatpush1.msra.mxu0 0.0
        %1313 = vmatprep.subr.mxu0 0.0
        %1314 = vmatpush1.msra.mxu0 0.0
        %1315 = vmatprep.subr.mxu0 0.0
        %1316 = vmatpush1.msra.mxu0 0.0
        %1317 = vmatprep.subr.mxu0 0.0
        %1318 = vmatpush1.msra.mxu0 0.0
        %1319 = vmatprep.subr.mxu0 0.0
        %1320 = vmatpush1.msra.mxu0 0.0
        %1321 = vmatprep.subr.mxu0 0.0
        %1322 = vmatpush1.msra.mxu0 0.0
        %1323 = vmatprep.subr.mxu0 0.0
        %1324 = vmatpush1.msra.mxu0 0.0
        %1325 = vmatprep.subr.mxu0 0.0
        %1326 = vmatpush1.msra.mxu0 0.0
        %1327 = vmatprep.subr.mxu0 0.0
        %1328 = vmatpush1.msra.mxu0 0.0
        %1329 = vmatprep.subr.mxu0 0.0
        %1330 = vmatpush1.msra.mxu0 0.0
        %1331 = vmatprep.subr.mxu0 0.0
        %1332 = vmatpush1.msra.mxu0 0.0
        %1333 = vmatprep.subr.mxu0 0.0
        %1334 = vmatpush1.msra.mxu0 0.0
        %1335 = vmatprep.subr.mxu0 0.0
        %1336 = vmatpush1.msra.mxu0 0.0
        %1337 = vmatprep.subr.mxu0 0.0
        %1338 = vmatpush1.msra.mxu0 0.0
        %1339 = vmatprep.subr.mxu0 0.0
        %1340 = vmatpush1.msra.mxu0 0.0
        %1341 = vmatprep.subr.mxu0 0.0
        %1342 = vmatpush1.msra.mxu0 0.0
        %1343 = vmatprep.subr.mxu0 0.0
        %1344 = vmatpush1.msra.mxu0 0.0
        %1345 = vmatprep.subr.mxu0 0.0
        %1346 = vmatpush1.msra.mxu0 0.0
        %1347 = vmatprep.subr.mxu0 0.0
        %1348 = vmatpush1.msra.mxu0 0.0
        %1349 = vmatprep.subr.mxu0 0.0
        %1350 = vmatpush1.msra.mxu0 0.0
        %1351 = vmatprep.subr.mxu0 0.0
        %1352 = vmatpush1.msra.mxu0 0.0
        %1353 = vmatprep.subr.mxu0 0.0
        %1354 = vmatpush1.msra.mxu0 0.0
        %1355 = vmatprep.subr.mxu0 0.0
        %1356 = vmatpush1.msra.mxu0 0.0
        %1357 = vmatprep.subr.mxu0 0.0
        %1358 = vmatpush1.msra.mxu0 0.0
        %1359 = vmatprep.subr.mxu0 0.0
        %1360 = vmatpush1.msra.mxu0 0.0
        %1361 = vmatprep.subr.mxu0 0.0
        %1362 = vmatpush1.msra.mxu0 0.0
        %1363 = vmatprep.mubr.f32.mxu0 0.0
        %1364 = vmatmul.mubr.f32.gmra.mrb[0].mxu0 %v1297
        %v1365 = vpop.f32.mrb[0].mxu0
        %v1366 = vadd.f32 0.0, %v1365
        %v1367 = vpop.f32.mrb[0].mxu0
        %1368 = vdwg.mxu0
        %1370 = vrot.lane.b32.xlu0 %v1220, 16
        %v1371 = vpop.permute.xlu0 %1370
        %1374 = vrot.lane.b32.xlu0 %v1293, 32
        %v1375 = vpop.permute.xlu0 %1374
        %1378 = vrot.lane.b32.xlu0 %v1366, 48
        %v1379 = vpop.permute.xlu0 %1378
        %v1381 = vsel %vm721, %v1147, %v1371
        %v1382 = vsel %vm619, %v1381, %v1375
        %vm1383 = vcmask 392192
        %v1384 = vsel %vm1383, %v1382, %v1379
        %vm1385 = vcmask 523264
        %v1387 = vsel %vm1385, %v1384, 0
        %1389 = vmatprep.subr.mxu0 0.0
        %1390 = vmatpush1.msra.mxu0 %v694
        %1391 = vmatprep.subr.mxu0 0.0
        %1392 = vmatpush1.msra.mxu0 %v695
        %1393 = vmatprep.subr.mxu0 0.0
        %1394 = vmatpush1.msra.mxu0 %v696
        %1395 = vmatprep.subr.mxu0 0.0
        %1396 = vmatpush1.msra.mxu0 %v697
        %1397 = vmatprep.subr.mxu0 0.0
        %1398 = vmatpush1.msra.mxu0 %v698
        %1399 = vmatprep.subr.mxu0 0.0
        %1400 = vmatpush1.msra.mxu0 %v699
        %1401 = vmatprep.subr.mxu0 0.0
        %1402 = vmatpush1.msra.mxu0 %v700
        %1403 = vmatprep.subr.mxu0 0.0
        %1404 = vmatpush1.msra.mxu0 %v701
        %1405 = vmatprep.subr.mxu0 0.0
        %1406 = vmatpush1.msra.mxu0 0.0
        %1407 = vmatprep.subr.mxu0 0.0
        %1408 = vmatpush1.msra.mxu0 0.0
        %1409 = vmatprep.subr.mxu0 0.0
        %1410 = vmatpush1.msra.mxu0 0.0
        %1411 = vmatprep.subr.mxu0 0.0
        %1412 = vmatpush1.msra.mxu0 0.0
        %1413 = vmatprep.subr.mxu0 0.0
        %1414 = vmatpush1.msra.mxu0 0.0
        %1415 = vmatprep.subr.mxu0 0.0
        %1416 = vmatpush1.msra.mxu0 0.0
        %1417 = vmatprep.subr.mxu0 0.0
        %1418 = vmatpush1.msra.mxu0 0.0
        %1419 = vmatprep.subr.mxu0 0.0
        %1420 = vmatpush1.msra.mxu0 0.0
        %1421 = vmatprep.subr.mxu0 0.0
        %1422 = vmatpush1.msra.mxu0 0.0
        %1423 = vmatprep.subr.mxu0 0.0
        %1424 = vmatpush1.msra.mxu0 0.0
        %1425 = vmatprep.subr.mxu0 0.0
        %1426 = vmatpush1.msra.mxu0 0.0
        %1427 = vmatprep.subr.mxu0 0.0
        %1428 = vmatpush1.msra.mxu0 0.0
        %1429 = vmatprep.subr.mxu0 0.0
        %1430 = vmatpush1.msra.mxu0 0.0
        %1431 = vmatprep.subr.mxu0 0.0
        %1432 = vmatpush1.msra.mxu0 0.0
        %1433 = vmatprep.subr.mxu0 0.0
        %1434 = vmatpush1.msra.mxu0 0.0
        %1435 = vmatprep.subr.mxu0 0.0
        %1436 = vmatpush1.msra.mxu0 0.0
        %1437 = vmatprep.subr.mxu0 0.0
        %1438 = vmatpush1.msra.mxu0 0.0
        %1439 = vmatprep.subr.mxu0 0.0
        %1440 = vmatpush1.msra.mxu0 0.0
        %1441 = vmatprep.subr.mxu0 0.0
        %1442 = vmatpush1.msra.mxu0 0.0
        %1443 = vmatprep.subr.mxu0 0.0
        %1444 = vmatpush1.msra.mxu0 0.0
        %1445 = vmatprep.subr.mxu0 0.0
        %1446 = vmatpush1.msra.mxu0 0.0
        %1447 = vmatprep.subr.mxu0 0.0
        %1448 = vmatpush1.msra.mxu0 0.0
        %1449 = vmatprep.subr.mxu0 0.0
        %1450 = vmatpush1.msra.mxu0 0.0
        %1451 = vmatprep.subr.mxu0 0.0
        %1452 = vmatpush1.msra.mxu0 0.0
        %1453 = vmatprep.mubr.f32.mxu0 0.0
        %1454 = vmatmul.mubr.f32.gmra.mrb[0].mxu0 %v1387
        %v1455 = vpop.f32.mrb[0].mxu0
        %v1456 = vadd.f32 0.0, %v1455
        %v1457 = vpop.f32.mrb[0].mxu0
        %1458 = vdwg.mxu0
        %v1459 = vadd.f32 %v602, %v1456
        %v1460 = vld [vmem:[%s12] sm:$0x1]
        %v1461 = vld [vmem:[%s13] sm:$0x1]
        %v1462 = vsel %vm619, %v1459, 0.0
        %1463 = vadd.xlane.f32.xlu0 %v1462
        %v1464 = vpop.xlane.xlu0 %1463
        %v1465 = vrcp.pop 32.0
        %v1466 = vmul.f32 %v1464, %v1465
        %v1467 = vsub.f32 %v1459, %v1466
        %v1468 = vmul.f32 %v1467, %v1467
        %v1469 = vsel %vm619, %v1468, 0.0
        %1470 = vadd.xlane.f32.xlu0 %v1469
        %v1471 = vpop.xlane.xlu0 %1470
        %v1472 = vmul.f32 %v1471, %v1465
        %v1473 = vadd.f32 %v1472, 1e-05
        %v1474 = vrsqrt.pop %v1473
        %v1475 = vmul.f32 %v1467, %v1474
        %v1477 = vlaneseq
        %v1478 = vshrl.u32 %v1477, 7
        %v1479 = vsub.s32 0, %v1478
        %v1480 = vrot.slane %v1460, %v1479
        %v1482 = vmul.f32 %v1475, %v1480
        %v1484 = vlaneseq
        %v1485 = vshrl.u32 %v1484, 7
        %v1486 = vsub.s32 0, %v1485
        %v1487 = vrot.slane %v1461, %v1486
        %v1489 = vadd.f32 %v1482, %v1487
        %v1490 = vld [vmem:[%s5] sm:$0xff]
        %v1491 = vld [vmem:[%s5 + $0x8] sm:$0xff]
        %v1492 = vld [vmem:[%s5 + $0x10] sm:$0xff]
        %v1493 = vld [vmem:[%s5 + $0x18] sm:$0xff]
        %v1495 = vsel %vm619, %v1489, 0
        %1497 = vmatprep.subr.mxu0 0.0
        %1498 = vmatpush1.msra.mxu0 %v1490
        %1499 = vmatprep.subr.mxu0 0.0
        %1500 = vmatpush1.msra.mxu0 %v1491
        %1501 = vmatprep.subr.mxu0 0.0
        %1502 = vmatpush1.msra.mxu0 %v1492
        %1503 = vmatprep.subr.mxu0 0.0
        %1504 = vmatpush1.msra.mxu0 %v1493
        %1505 = vmatprep.subr.mxu0 0.0
        %1506 = vmatpush1.msra.mxu0 0.0
        %1507 = vmatprep.subr.mxu0 0.0
        %1508 = vmatpush1.msra.mxu0 0.0
        %1509 = vmatprep.subr.mxu0 0.0
        %1510 = vmatpush1.msra.mxu0 0.0
        %1511 = vmatprep.subr.mxu0 0.0
        %1512 = vmatpush1.msra.mxu0 0.0
        %1513 = vmatprep.subr.mxu0 0.0
        %1514 = vmatpush1.msra.mxu0 0.0
        %1515 = vmatprep.subr.mxu0 0.0
        %1516 = vmatpush1.msra.mxu0 0.0
        %1517 = vmatprep.subr.mxu0 0.0
        %1518 = vmatpush1.msra.mxu0 0.0
        %1519 = vmatprep.subr.mxu0 0.0
        %1520 = vmatpush1.msra.mxu0 0.0
        %1521 = vmatprep.subr.mxu0 0.0
        %1522 = vmatpush1.msra.mxu0 0.0
        %1523 = vmatprep.subr.mxu0 0.0
        %1524 = vmatpush1.msra.mxu0 0.0
        %1525 = vmatprep.subr.mxu0 0.0
        %1526 = vmatpush1.msra.mxu0 0.0
        %1527 = vmatprep.subr.mxu0 0.0
        %1528 = vmatpush1.msra.mxu0 0.0
        %1529 = vmatprep.subr.mxu0 0.0
        %1530 = vmatpush1.msra.mxu0 0.0
        %1531 = vmatprep.subr.mxu0 0.0
        %1532 = vmatpush1.msra.mxu0 0.0
        %1533 = vmatprep.subr.mxu0 0.0
        %1534 = vmatpush1.msra.mxu0 0.0
        %1535 = vmatprep.subr.mxu0 0.0
        %1536 = vmatpush1.msra.mxu0 0.0
        %1537 = vmatprep.subr.mxu0 0.0
        %1538 = vmatpush1.msra.mxu0 0.0
        %1539 = vmatprep.subr.mxu0 0.0
        %1540 = vmatpush1.msra.mxu0 0.0
        %1541 = vmatprep.subr.mxu0 0.0
        %1542 = vmatpush1.msra.mxu0 0.0
        %1543 = vmatprep.subr.mxu0 0.0
        %1544 = vmatpush1.msra.mxu0 0.0
        %1545 = vmatprep.subr.mxu0 0.0
        %1546 = vmatpush1.msra.mxu0 0.0
        %1547 = vmatprep.subr.mxu0 0.0
        %1548 = vmatpush1.msra.mxu0 0.0
        %1549 = vmatprep.subr.mxu0 0.0
        %1550 = vmatpush1.msra.mxu0 0.0
        %1551 = vmatprep.subr.mxu0 0.0
        %1552 = vmatpush1.msra.mxu0 0.0
        %1553 = vmatprep.subr.mxu0 0.0
        %1554 = vmatpush1.msra.mxu0 0.0
        %1555 = vmatprep.subr.mxu0 0.0
        %1556 = vmatpush1.msra.mxu0 0.0
        %1557 = vmatprep.subr.mxu0 0.0
        %1558 = vmatpush1.msra.mxu0 0.0
        %1559 = vmatprep.subr.mxu0 0.0
        %1560 = vmatpush1.msra.mxu0 0.0
        %1561 = vmatprep.mubr.f32.mxu0 0.0
        %1562 = vmatmul.mubr.f32.gmra.mrb[0].mxu0 %v1495
        %v1563 = vpop.f32.mrb[0].mxu0
        %v1564 = vadd.f32 0.0, %v1563
        %v1565 = vpop.f32.mrb[0].mxu0
        %1566 = vdwg.mxu0
        %v1567 = vld [vmem:[%s6] sm:$0xff]
        %v1568 = vld [vmem:[%s6 + $0x8] sm:$0xff]
        %v1569 = vld [vmem:[%s6 + $0x10] sm:$0xff]
        %v1570 = vld [vmem:[%s6 + $0x18] sm:$0xff]
        %v1572 = vsel %vm619, %v603, 0
        %1574 = vmatprep.subr.mxu0 0.0
        %1575 = vmatpush1.msra.mxu0 %v1567
        %1576 = vmatprep.subr.mxu0 0.0
        %1577 = vmatpush1.msra.mxu0 %v1568
        %1578 = vmatprep.subr.mxu0 0.0
        %1579 = vmatpush1.msra.mxu0 %v1569
        %1580 = vmatprep.subr.mxu0 0.0
        %1581 = vmatpush1.msra.mxu0 %v1570
        %1582 = vmatprep.subr.mxu0 0.0
        %1583 = vmatpush1.msra.mxu0 0.0
        %1584 = vmatprep.subr.mxu0 0.0
        %1585 = vmatpush1.msra.mxu0 0.0
        %1586 = vmatprep.subr.mxu0 0.0
        %1587 = vmatpush1.msra.mxu0 0.0
        %1588 = vmatprep.subr.mxu0 0.0
        %1589 = vmatpush1.msra.mxu0 0.0
        %1590 = vmatprep.subr.mxu0 0.0
        %1591 = vmatpush1.msra.mxu0 0.0
        %1592 = vmatprep.subr.mxu0 0.0
        %1593 = vmatpush1.msra.mxu0 0.0
        %1594 = vmatprep.subr.mxu0 0.0
        %1595 = vmatpush1.msra.mxu0 0.0
        %1596 = vmatprep.subr.mxu0 0.0
        %1597 = vmatpush1.msra.mxu0 0.0
        %1598 = vmatprep.subr.mxu0 0.0
        %1599 = vmatpush1.msra.mxu0 0.0
        %1600 = vmatprep.subr.mxu0 0.0
        %1601 = vmatpush1.msra.mxu0 0.0
        %1602 = vmatprep.subr.mxu0 0.0
        %1603 = vmatpush1.msra.mxu0 0.0
        %1604 = vmatprep.subr.mxu0 0.0
        %1605 = vmatpush1.msra.mxu0 0.0
        %1606 = vmatprep.subr.mxu0 0.0
        %1607 = vmatpush1.msra.mxu0 0.0
        %1608 = vmatprep.subr.mxu0 0.0
        %1609 = vmatpush1.msra.mxu0 0.0
        %1610 = vmatprep.subr.mxu0 0.0
        %1611 = vmatpush1.msra.mxu0 0.0
        %1612 = vmatprep.subr.mxu0 0.0
        %1613 = vmatpush1.msra.mxu0 0.0
        %1614 = vmatprep.subr.mxu0 0.0
        %1615 = vmatpush1.msra.mxu0 0.0
        %1616 = vmatprep.subr.mxu0 0.0
        %1617 = vmatpush1.msra.mxu0 0.0
        %1618 = vmatprep.subr.mxu0 0.0
        %1619 = vmatpush1.msra.mxu0 0.0
        %1620 = vmatprep.subr.mxu0 0.0
        %1621 = vmatpush1.msra.mxu0 0.0
        %1622 = vmatprep.subr.mxu0 0.0
        %1623 = vmatpush1.msra.mxu0 0.0
        %1624 = vmatprep.subr.mxu0 0.0
        %1625 = vmatpush1.msra.mxu0 0.0
        %1626 = vmatprep.subr.mxu0 0.0
        %1627 = vmatpush1.msra.mxu0 0.0
        %1628 = vmatprep.subr.mxu0 0.0
        %1629 = vmatpush1.msra.mxu0 0.0
        %1630 = vmatprep.subr.mxu0 0.0
        %1631 = vmatpush1.msra.mxu0 0.0
        %1632 = vmatprep.subr.mxu0 0.0
        %1633 = vmatpush1.msra.mxu0 0.0
        %1634 = vmatprep.subr.mxu0 0.0
        %1635 = vmatpush1.msra.mxu0 0.0
        %1636 = vmatprep.subr.mxu0 0.0
        %1637 = vmatpush1.msra.mxu0 0.0
        %1638 = vmatprep.mubr.f32.mxu0 0.0
        %1639 = vmatmul.mubr.f32.gmra.mrb[0].mxu0 %v1572
        %v1640 = vpop.f32.mrb[0].mxu0
        %v1641 = vadd.f32 0.0, %v1640
        %v1642 = vpop.f32.mrb[0].mxu0
        %1643 = vdwg.mxu0
        %v1644 = vld [vmem:[%s7] sm:$0xff]
        %v1645 = vld [vmem:[%s7 + $0x8] sm:$0xff]
        %v1646 = vld [vmem:[%s7 + $0x10] sm:$0xff]
        %v1647 = vld [vmem:[%s7 + $0x18] sm:$0xff]
        %v1648 = vld [vmem:[%s7 + $0x20] sm:$0xff]
        %v1649 = vld [vmem:[%s7 + $0x28] sm:$0xff]
        %v1650 = vld [vmem:[%s7 + $0x30] sm:$0xff]
        %v1651 = vld [vmem:[%s7 + $0x38] sm:$0xff]
        %1653 = vrot.lane.b32.xlu0 %v1564, 112
        %v1654 = vpop.permute.xlu0 %1653
        %1655 = vrot.lane.b32.xlu0 %v1564, 96
        %v1656 = vpop.permute.xlu0 %1655
        %1657 = vrot.lane.b32.xlu0 %v1564, 80
        %v1658 = vpop.permute.xlu0 %1657
        %1660 = vrot.lane.b32.xlu0 %v1641, 112
        %v1661 = vpop.permute.xlu0 %1660
        %1662 = vrot.lane.b32.xlu0 %v1641, 96
        %v1663 = vpop.permute.xlu0 %1662
        %1664 = vrot.lane.b32.xlu0 %v1641, 80
        %v1665 = vpop.permute.xlu0 %1664
        %v1666 = vsel %vm721, %v1564, 0
        %v1668 = vsel %vm721, %v1641, 0
        %1670 = vmatprep.subr.mxu0 0.0
        %1671 = vmatpush1.xpose.msra.mxu0 %v1668
        %1672 = vmatprep.subr.mxu0 0.0
        %1673 = vmatpush1.xpose.msra.mxu0 0.0
        %1674 = vmatprep.subr.mxu0 0.0
        %1675 = vmatpush1.xpose.msra.mxu0 0.0
        %1676 = vmatprep.subr.mxu0 0.0
        %1677 = vmatpush1.xpose.msra.mxu0 0.0
        %1678 = vmatprep.subr.mxu0 0.0
        %1679 = vmatpush1.xpose.msra.mxu0 0.0
        %1680 = vmatprep.subr.mxu0 0.0
        %1681 = vmatpush1.xpose.msra.mxu0 0.0
        %1682 = vmatprep.subr.mxu0 0.0
        %1683 = vmatpush1.xpose.msra.mxu0 0.0
        %1684 = vmatprep.subr.mxu0 0.0
        %1685 = vmatpush1.xpose.msra.mxu0 0.0
        %1686 = vmatprep.subr.mxu0 0.0
        %1687 = vmatpush1.xpose.msra.mxu0 0.0
        %1688 = vmatprep.subr.mxu0 0.0
        %1689 = vmatpush1.xpose.msra.mxu0 0.0
        %1690 = vmatprep.subr.mxu0 0.0
        %1691 = vmatpush1.xpose.msra.mxu0 0.0
        %1692 = vmatprep.subr.mxu0 0.0
        %1693 = vmatpush1.xpose.msra.mxu0 0.0
        %1694 = vmatprep.subr.mxu0 0.0
        %1695 = vmatpush1.xpose.msra.mxu0 0.0
        %1696 = vmatprep.subr.mxu0 0.0
        %1697 = vmatpush1.xpose.msra.mxu0 0.0
        %1698 = vmatprep.subr.mxu0 0.0
        %1699 = vmatpush1.xpose.msra.mxu0 0.0
        %1700 = vmatprep.subr.mxu0 0.0
        %1701 = vmatpush1.xpose.msra.mxu0 0.0
        %1702 = vmatprep.subr.mxu0 0.0
        %1703 = vmatpush1.xpose.msra.mxu0 0.0
        %1704 = vmatprep.subr.mxu0 0.0
        %1705 = vmatpush1.xpose.msra.mxu0 0.0
        %1706 = vmatprep.subr.mxu0 0.0
        %1707 = vmatpush1.xpose.msra.mxu0 0.0
        %1708 = vmatprep.subr.mxu0 0.0
        %1709 = vmatpush1.xpose.msra.mxu0 0.0
        %1710 = vmatprep.subr.mxu0 0.0
        %1711 = vmatpush1.xpose.msra.mxu0 0.0
        %1712 = vmatprep.subr.mxu0 0.0
        %1713 = vmatpush1.xpose.msra.mxu0 0.0
        %1714 = vmatprep.subr.mxu0 0.0
        %1715 = vmatpush1.xpose.msra.mxu0 0.0
        %1716 = vmatprep.subr.mxu0 0.0
        %1717 = vmatpush1.xpose.msra.mxu0 0.0
        %1718 = vmatprep.subr.mxu0 0.0
        %1719 = vmatpush1.xpose.msra.mxu0 0.0
        %1720 = vmatprep.subr.mxu0 0.0
        %1721 = vmatpush1.xpose.msra.mxu0 0.0
        %1722 = vmatprep.subr.mxu0 0.0
        %1723 = vmatpush1.xpose.msra.mxu0 0.0
        %1724 = vmatprep.subr.mxu0 0.0
        %1725 = vmatpush1.xpose.msra.mxu0 0.0
        %1726 = vmatprep.subr.mxu0 0.0
        %1727 = vmatpush1.xpose.msra.mxu0 0.0
        %1728 = vmatprep.subr.mxu0 0.0
        %1729 = vmatpush1.xpose.msra.mxu0 0.0
        %1730 = vmatprep.subr.mxu0 0.0
        %1731 = vmatpush1.xpose.msra.mxu0 0.0
        %1732 = vmatprep.subr.mxu0 0.0
        %1733 = vmatpush1.xpose.msra.mxu0 0.0
        %1734 = vmatprep.mubr.f32.mxu0 0.0
        %1735 = vmatmul.mubr.f32.gmra.mrb[0].mxu0 %v1666
        %v1736 = vpop.f32.mrb[0].mxu0
        %v1737 = vadd.f32 0.0, %v1736
        %v1738 = vpop.f32.mrb[0].mxu0
        %1739 = vdwg.mxu0
        %v1740 = vsel %vm721, %v1654, 0
        %v1742 = vsel %vm721, %v1661, 0
        %1744 = vmatprep.subr.mxu0 0.0
        %1745 = vmatpush1.xpose.msra.mxu0 %v1742
        %1746 = vmatprep.subr.mxu0 0.0
        %1747 = vmatpush1.xpose.msra.mxu0 0.0
        %1748 = vmatprep.subr.mxu0 0.0
        %1749 = vmatpush1.xpose.msra.mxu0 0.0
        %1750 = vmatprep.subr.mxu0 0.0
        %1751 = vmatpush1.xpose.msra.mxu0 0.0
        %1752 = vmatprep.subr.mxu0 0.0
        %1753 = vmatpush1.xpose.msra.mxu0 0.0
        %1754 = vmatprep.subr.mxu0 0.0
        %1755 = vmatpush1.xpose.msra.mxu0 0.0
        %1756 = vmatprep.subr.mxu0 0.0
        %1757 = vmatpush1.xpose.msra.mxu0 0.0
        %1758 = vmatprep.subr.mxu0 0.0
        %1759 = vmatpush1.xpose.msra.mxu0 0.0
        %1760 = vmatprep.subr.mxu0 0.0
        %1761 = vmatpush1.xpose.msra.mxu0 0.0
        %1762 = vmatprep.subr.mxu0 0.0
        %1763 = vmatpush1.xpose.msra.mxu0 0.0
        %1764 = vmatprep.subr.mxu0 0.0
        %1765 = vmatpush1.xpose.msra.mxu0 0.0
        %1766 = vmatprep.subr.mxu0 0.0
        %1767 = vmatpush1.xpose.msra.mxu0 0.0
        %1768 = vmatprep.subr.mxu0 0.0
        %1769 = vmatpush1.xpose.msra.mxu0 0.0
        %1770 = vmatprep.subr.mxu0 0.0
        %1771 = vmatpush1.xpose.msra.mxu0 0.0
        %1772 = vmatprep.subr.mxu0 0.0
        %1773 = vmatpush1.xpose.msra.mxu0 0.0
        %1774 = vmatprep.subr.mxu0 0.0
        %1775 = vmatpush1.xpose.msra.mxu0 0.0
        %1776 = vmatprep.subr.mxu0 0.0
        %1777 = vmatpush1.xpose.msra.mxu0 0.0
        %1778 = vmatprep.subr.mxu0 0.0
        %1779 = vmatpush1.xpose.msra.mxu0 0.0
        %1780 = vmatprep.subr.mxu0 0.0
        %1781 = vmatpush1.xpose.msra.mxu0 0.0
        %1782 = vmatprep.subr.mxu0 0.0
        %1783 = vmatpush1.xpose.msra.mxu0 0.0
        %1784 = vmatprep.subr.mxu0 0.0
        %1785 = vmatpush1.xpose.msra.mxu0 0.0
        %1786 = vmatprep.subr.mxu0 0.0
        %1787 = vmatpush1.xpose.msra.mxu0 0.0
        %1788 = vmatprep.subr.mxu0 0.0
        %1789 = vmatpush1.xpose.msra.mxu0 0.0
        %1790 = vmatprep.subr.mxu0 0.0
        %1791 = vmatpush1.xpose.msra.mxu0 0.0
        %1792 = vmatprep.subr.mxu0 0.0
        %1793 = vmatpush1.xpose.msra.mxu0 0.0
        %1794 = vmatprep.subr.mxu0 0.0
        %1795 = vmatpush1.xpose.msra.mxu0 0.0
        %1796 = vmatprep.subr.mxu0 0.0
        %1797 = vmatpush1.xpose.msra.mxu0 0.0
        %1798 = vmatprep.subr.mxu0 0.0
        %1799 = vmatpush1.xpose.msra.mxu0 0.0
        %1800 = vmatprep.subr.mxu0 0.0
        %1801 = vmatpush1.xpose.msra.mxu0 0.0
        %1802 = vmatprep.subr.mxu0 0.0
        %1803 = vmatpush1.xpose.msra.mxu0 0.0
        %1804 = vmatprep.subr.mxu0 0.0
        %1805 = vmatpush1.xpose.msra.mxu0 0.0
        %1806 = vmatprep.subr.mxu0 0.0
        %1807 = vmatpush1.xpose.msra.mxu0 0.0
        %1808 = vmatprep.mubr.f32.mxu0 0.0
        %1809 = vmatmul.mubr.f32.gmra.mrb[0].mxu0 %v1740
        %v1810 = vpop.f32.mrb[0].mxu0
        %v1811 = vadd.f32 0.0, %v1810
        %v1812 = vpop.f32.mrb[0].mxu0
        %1813 = vdwg.mxu0
        %v1814 = vsel %vm721, %v1656, 0
        %v1816 = vsel %vm721, %v1663, 0
        %1818 = vmatprep.subr.mxu0 0.0
        %1819 = vmatpush1.xpose.msra.mxu0 %v1816
        %1820 = vmatprep.subr.mxu0 0.0
        %1821 = vmatpush1.xpose.msra.mxu0 0.0
        %1822 = vmatprep.subr.mxu0 0.0
        %1823 = vmatpush1.xpose.msra.mxu0 0.0
        %1824 = vmatprep.subr.mxu0 0.0
        %1825 = vmatpush1.xpose.msra.mxu0 0.0
        %1826 = vmatprep.subr.mxu0 0.0
        %1827 = vmatpush1.xpose.msra.mxu0 0.0
        %1828 = vmatprep.subr.mxu0 0.0
        %1829 = vmatpush1.xpose.msra.mxu0 0.0
        %1830 = vmatprep.subr.mxu0 0.0
        %1831 = vmatpush1.xpose.msra.mxu0 0.0
        %1832 = vmatprep.subr.mxu0 0.0
        %1833 = vmatpush1.xpose.msra.mxu0 0.0
        %1834 = vmatprep.subr.mxu0 0.0
        %1835 = vmatpush1.xpose.msra.mxu0 0.0
        %1836 = vmatprep.subr.mxu0 0.0
        %1837 = vmatpush1.xpose.msra.mxu0 0.0
        %1838 = vmatprep.subr.mxu0 0.0
        %1839 = vmatpush1.xpose.msra.mxu0 0.0
        %1840 = vmatprep.subr.mxu0 0.0
        %1841 = vmatpush1.xpose.msra.mxu0 0.0
        %1842 = vmatprep.subr.mxu0 0.0
        %1843 = vmatpush1.xpose.msra.mxu0 0.0
        %1844 = vmatprep.subr.mxu0 0.0
        %1845 = vmatpush1.xpose.msra.mxu0 0.0
        %1846 = vmatprep.subr.mxu0 0.0
        %1847 = vmatpush1.xpose.msra.mxu0 0.0
        %1848 = vmatprep.subr.mxu0 0.0
        %1849 = vmatpush1.xpose.msra.mxu0 0.0
        %1850 = vmatprep.subr.mxu0 0.0
        %1851 = vmatpush1.xpose.msra.mxu0 0.0
        %1852 = vmatprep.subr.mxu0 0.0
        %1853 = vmatpush1.xpose.msra.mxu0 0.0
        %1854 = vmatprep.subr.mxu0 0.0
        %1855 = vmatpush1.xpose.msra.mxu0 0.0
        %1856 = vmatprep.subr.mxu0 0.0
        %1857 = vmatpush1.xpose.msra.mxu0 0.0
        %1858 = vmatprep.subr.mxu0 0.0
        %1859 = vmatpush1.xpose.msra.mxu0 0.0
        %1860 = vmatprep.subr.mxu0 0.0
        %1861 = vmatpush1.xpose.msra.mxu0 0.0
        %1862 = vmatprep.subr.mxu0 0.0
        %1863 = vmatpush1.xpose.msra.mxu0 0.0
        %1864 = vmatprep.subr.mxu0 0.0
        %1865 = vmatpush1.xpose.msra.mxu0 0.0
        %1866 = vmatprep.subr.mxu0 0.0
        %1867 = vmatpush1.xpose.msra.mxu0 0.0
        %1868 = vmatprep.subr.mxu0 0.0
        %1869 = vmatpush1.xpose.msra.mxu0 0.0
        %1870 = vmatprep.subr.mxu0 0.0
        %1871 = vmatpush1.xpose.msra.mxu0 0.0
        %1872 = vmatprep.subr.mxu0 0.0
        %1873 = vmatpush1.xpose.msra.mxu0 0.0
        %1874 = vmatprep.subr.mxu0 0.0
        %1875 = vmatpush1.xpose.msra.mxu0 0.0
        %1876 = vmatprep.subr.mxu0 0.0
        %1877 = vmatpush1.xpose.msra.mxu0 0.0
        %1878 = vmatprep.subr.mxu0 0.0
        %1879 = vmatpush1.xpose.msra.mxu0 0.0
        %1880 = vmatprep.subr.mxu0 0.0
        %1881 = vmatpush1.xpose.msra.mxu0 0.0
        %1882 = vmatprep.mubr.f32.mxu0 0.0
        %1883 = vmatmul.mubr.f32.gmra.mrb[0].mxu0 %v1814
        %v1884 = vpop.f32.mrb[0].mxu0
        %v1885 = vadd.f32 0.0, %v1884
        %v1886 = vpop.f32.mrb[0].mxu0
        %1887 = vdwg.mxu0
        %v1888 = vsel %vm721, %v1658, 0
        %v1890 = vsel %vm721, %v1665, 0
        %1892 = vmatprep.subr.mxu0 0.0
        %1893 = vmatpush1.xpose.msra.mxu0 %v1890
        %1894 = vmatprep.subr.mxu0 0.0
        %1895 = vmatpush1.xpose.msra.mxu0 0.0
        %1896 = vmatprep.subr.mxu0 0.0
        %1897 = vmatpush1.xpose.msra.mxu0 0.0
        %1898 = vmatprep.subr.mxu0 0.0
        %1899 = vmatpush1.xpose.msra.mxu0 0.0
        %1900 = vmatprep.subr.mxu0 0.0
        %1901 = vmatpush1.xpose.msra.mxu0 0.0
        %1902 = vmatprep.subr.mxu0 0.0
        %1903 = vmatpush1.xpose.msra.mxu0 0.0
        %1904 = vmatprep.subr.mxu0 0.0
        %1905 = vmatpush1.xpose.msra.mxu0 0.0
        %1906 = vmatprep.subr.mxu0 0.0
        %1907 = vmatpush1.xpose.msra.mxu0 0.0
        %1908 = vmatprep.subr.mxu0 0.0
        %1909 = vmatpush1.xpose.msra.mxu0 0.0
        %1910 = vmatprep.subr.mxu0 0.0
        %1911 = vmatpush1.xpose.msra.mxu0 0.0
        %1912 = vmatprep.subr.mxu0 0.0
        %1913 = vmatpush1.xpose.msra.mxu0 0.0
        %1914 = vmatprep.subr.mxu0 0.0
        %1915 = vmatpush1.xpose.msra.mxu0 0.0
        %1916 = vmatprep.subr.mxu0 0.0
        %1917 = vmatpush1.xpose.msra.mxu0 0.0
        %1918 = vmatprep.subr.mxu0 0.0
        %1919 = vmatpush1.xpose.msra.mxu0 0.0
        %1920 = vmatprep.subr.mxu0 0.0
        %1921 = vmatpush1.xpose.msra.mxu0 0.0
        %1922 = vmatprep.subr.mxu0 0.0
        %1923 = vmatpush1.xpose.msra.mxu0 0.0
        %1924 = vmatprep.subr.mxu0 0.0
        %1925 = vmatpush1.xpose.msra.mxu0 0.0
        %1926 = vmatprep.subr.mxu0 0.0
        %1927 = vmatpush1.xpose.msra.mxu0 0.0
        %1928 = vmatprep.subr.mxu0 0.0
        %1929 = vmatpush1.xpose.msra.mxu0 0.0
        %1930 = vmatprep.subr.mxu0 0.0
        %1931 = vmatpush1.xpose.msra.mxu0 0.0
        %1932 = vmatprep.subr.mxu0 0.0
        %1933 = vmatpush1.xpose.msra.mxu0 0.0
        %1934 = vmatprep.subr.mxu0 0.0
        %1935 = vmatpush1.xpose.msra.mxu0 0.0
        %1936 = vmatprep.subr.mxu0 0.0
        %1937 = vmatpush1.xpose.msra.mxu0 0.0
        %1938 = vmatprep.subr.mxu0 0.0
        %1939 = vmatpush1.xpose.msra.mxu0 0.0
        %1940 = vmatprep.subr.mxu0 0.0
        %1941 = vmatpush1.xpose.msra.mxu0 0.0
        %1942 = vmatprep.subr.mxu0 0.0
        %1943 = vmatpush1.xpose.msra.mxu0 0.0
        %1944 = vmatprep.subr.mxu0 0.0
        %1945 = vmatpush1.xpose.msra.mxu0 0.0
        %1946 = vmatprep.subr.mxu0 0.0
        %1947 = vmatpush1.xpose.msra.mxu0 0.0
        %1948 = vmatprep.subr.mxu0 0.0
        %1949 = vmatpush1.xpose.msra.mxu0 0.0
        %1950 = vmatprep.subr.mxu0 0.0
        %1951 = vmatpush1.xpose.msra.mxu0 0.0
        %1952 = vmatprep.subr.mxu0 0.0
        %1953 = vmatpush1.xpose.msra.mxu0 0.0
        %1954 = vmatprep.subr.mxu0 0.0
        %1955 = vmatpush1.xpose.msra.mxu0 0.0
        %1956 = vmatprep.mubr.f32.mxu0 0.0
        %1957 = vmatmul.mubr.f32.gmra.mrb[0].mxu0 %v1888
        %v1958 = vpop.f32.mrb[0].mxu0
        %v1959 = vadd.f32 0.0, %v1958
        %v1960 = vpop.f32.mrb[0].mxu0
        %1961 = vdwg.mxu0
        %v1962 = vmul.f32 %v1737, 0.25
        %v1963 = vmul.f32 %v1811, 0.25
        %v1964 = vmul.f32 %v1885, 0.25
        %v1965 = vmul.f32 %v1959, 0.25
        %v1967 = vlaneseq
        %v1968 = vshrl.u32 %v1967, 7
        %v1969 = vsub.s32 0, %v1968
        %v1970 = vrot.slane %v604, %v1969
        %v1972 = vadd.f32 %v1962, %v1970
        %v1973 = vadd.f32 %v1963, %v1970
        %v1974 = vadd.f32 %v1964, %v1970
        %v1975 = vadd.f32 %v1965, %v1970
        %v1976 = vsel %vm1032, %v1972, -inf
        %1977 = vmax.xlane.f32.xlu0 %v1976
        %v1978 = vpop.xlane.xlu0 %1977
        %v1979 = vsel %vm1032, %v1973, -inf
        %1980 = vmax.xlane.f32.xlu0 %v1979
        %v1981 = vpop.xlane.xlu0 %1980
        %v1982 = vsel %vm1032, %v1974, -inf
        %1983 = vmax.xlane.f32.xlu0 %v1982
        %v1984 = vpop.xlane.xlu0 %1983
        %v1985 = vsel %vm1032, %v1975, -inf
        %1986 = vmax.xlane.f32.xlu0 %v1985
        %v1987 = vpop.xlane.xlu0 %1986
        %v1988 = vsub.f32 %v1972, %v1978
        %v1989 = vsub.f32 %v1973, %v1981
        %v1990 = vsub.f32 %v1974, %v1984
        %v1991 = vsub.f32 %v1975, %v1987
        %v1992 = vmul.f32 %v1988, 1.442695
        %v1993 = vpow.pop %v1992
        %v1994 = vmul.f32 %v1989, 1.442695
        %v1995 = vpow.pop %v1994
        %v1996 = vmul.f32 %v1990, 1.442695
        %v1997 = vpow.pop %v1996
        %v1998 = vmul.f32 %v1991, 1.442695
        %v1999 = vpow.pop %v1998
        %v2000 = vsel %vm1032, %v1993, 0.0
        %2001 = vadd.xlane.f32.xlu0 %v2000
        %v2002 = vpop.xlane.xlu0 %2001
        %v2003 = vsel %vm1032, %v1995, 0.0
        %2004 = vadd.xlane.f32.xlu0 %v2003
        %v2005 = vpop.xlane.xlu0 %2004
        %v2006 = vsel %vm1032, %v1997, 0.0
        %2007 = vadd.xlane.f32.xlu0 %v2006
        %v2008 = vpop.xlane.xlu0 %2007
        %v2009 = vsel %vm1032, %v1999, 0.0
        %2010 = vadd.xlane.f32.xlu0 %v2009
        %v2011 = vpop.xlane.xlu0 %2010
        %v2012 = vrcp.pop %v2002
        %v2013 = vrcp.pop %v2005
        %v2014 = vrcp.pop %v2008
        %v2015 = vrcp.pop %v2011
        %v2016 = vmul.f32 %v1993, %v2012
        %v2017 = vmul.f32 %v1995, %v2013
        %v2018 = vmul.f32 %v1997, %v2014
        %v2019 = vmul.f32 %v1999, %v2015
        %2020 = vrot.lane.b32.xlu0 %v1641, 64
        %v2021 = vpop.permute.xlu0 %2020
        %v2024 = vsel %vm1032, %v2016, 0
        %2026 = vmatprep.subr.mxu0 0.0
        %2027 = vmatpush1.msra.mxu0 %v2021
        %2028 = vmatprep.subr.mxu0 0.0
        %2029 = vmatpush1.msra.mxu0 0.0
        %2030 = vmatprep.subr.mxu0 0.0
        %2031 = vmatpush1.msra.mxu0 0.0
        %2032 = vmatprep.subr.mxu0 0.0
        %2033 = vmatpush1.msra.mxu0 0.0
        %2034 = vmatprep.subr.mxu0 0.0
        %2035 = vmatpush1.msra.mxu0 0.0
        %2036 = vmatprep.subr.mxu0 0.0
        %2037 = vmatpush1.msra.mxu0 0.0
        %2038 = vmatprep.subr.mxu0 0.0
        %2039 = vmatpush1.msra.mxu0 0.0
        %2040 = vmatprep.subr.mxu0 0.0
        %2041 = vmatpush1.msra.mxu0 0.0
        %2042 = vmatprep.subr.mxu0 0.0
        %2043 = vmatpush1.msra.mxu0 0.0
        %2044 = vmatprep.subr.mxu0 0.0
        %2045 = vmatpush1.msra.mxu0 0.0
        %2046 = vmatprep.subr.mxu0 0.0
        %2047 = vmatpush1.msra.mxu0 0.0
        %2048 = vmatprep.subr.mxu0 0.0
        %2049 = vmatpush1.msra.mxu0 0.0
        %2050 = vmatprep.subr.mxu0 0.0
        %2051 = vmatpush1.msra.mxu0 0.0
        %2052 = vmatprep.subr.mxu0 0.0
        %2053 = vmatpush1.msra.mxu0 0.0
        %2054 = vmatprep.subr.mxu0 0.0
        %2055 = vmatpush1.msra.mxu0 0.0
        %2056 = vmatprep.subr.mxu0 0.0
        %2057 = vmatpush1.msra.mxu0 0.0
        %2058 = vmatprep.subr.mxu0 0.0
        %2059 = vmatpush1.msra.mxu0 0.0
        %2060 = vmatprep.subr.mxu0 0.0
        %2061 = vmatpush1.msra.mxu0 0.0
        %2062 = vmatprep.subr.mxu0 0.0
        %2063 = vmatpush1.msra.mxu0 0.0
        %2064 = vmatprep.subr.mxu0 0.0
        %2065 = vmatpush1.msra.mxu0 0.0
        %2066 = vmatprep.subr.mxu0 0.0
        %2067 = vmatpush1.msra.mxu0 0.0
        %2068 = vmatprep.subr.mxu0 0.0
        %2069 = vmatpush1.msra.mxu0 0.0
        %2070 = vmatprep.subr.mxu0 0.0
        %2071 = vmatpush1.msra.mxu0 0.0
        %2072 = vmatprep.subr.mxu0 0.0
        %2073 = vmatpush1.msra.mxu0 0.0
        %2074 = vmatprep.subr.mxu0 0.0
        %2075 = vmatpush1.msra.mxu0 0.0
        %2076 = vmatprep.subr.mxu0 0.0
        %2077 = vmatpush1.msra.mxu0 0.0
        %2078 = vmatprep.subr.mxu0 0.0
        %2079 = vmatpush1.msra.mxu0 0.0
        %2080 = vmatprep.subr.mxu0 0.0
        %2081 = vmatpush1.msra.mxu0 0.0
        %2082 = vmatprep.subr.mxu0 0.0
        %2083 = vmatpush1.msra.mxu0 0.0
        %2084 = vmatprep.subr.mxu0 0.0
        %2085 = vmatpush1.msra.mxu0 0.0
        %2086 = vmatprep.subr.mxu0 0.0
        %2087 = vmatpush1.msra.mxu0 0.0
        %2088 = vmatprep.subr.mxu0 0.0
        %2089 = vmatpush1.msra.mxu0 0.0
        %2090 = vmatprep.mubr.f32.mxu0 0.0
        %2091 = vmatmul.mubr.f32.gmra.mrb[0].mxu0 %v2024
        %v2092 = vpop.f32.mrb[0].mxu0
        %v2093 = vadd.f32 0.0, %v2092
        %v2094 = vpop.f32.mrb[0].mxu0
        %2095 = vdwg.mxu0
        %2096 = vrot.lane.b32.xlu0 %v1661, 64
        %v2097 = vpop.permute.xlu0 %2096
        %v2100 = vsel %vm1032, %v2017, 0
        %2102 = vmatprep.subr.mxu0 0.0
        %2103 = vmatpush1.msra.mxu0 %v2097
        %2104 = vmatprep.subr.mxu0 0.0
        %2105 = vmatpush1.msra.mxu0 0.0
        %2106 = vmatprep.subr.mxu0 0.0
        %2107 = vmatpush1.msra.mxu0 0.0
        %2108 = vmatprep.subr.mxu0 0.0
        %2109 = vmatpush1.msra.mxu0 0.0
        %2110 = vmatprep.subr.mxu0 0.0
        %2111 = vmatpush1.msra.mxu0 0.0
        %2112 = vmatprep.subr.mxu0 0.0
        %2113 = vmatpush1.msra.mxu0 0.0
        %2114 = vmatprep.subr.mxu0 0.0
        %2115 = vmatpush1.msra.mxu0 0.0
        %2116 = vmatprep.subr.mxu0 0.0
        %2117 = vmatpush1.msra.mxu0 0.0
        %2118 = vmatprep.subr.mxu0 0.0
        %2119 = vmatpush1.msra.mxu0 0.0
        %2120 = vmatprep.subr.mxu0 0.0
        %2121 = vmatpush1.msra.mxu0 0.0
        %2122 = vmatprep.subr.mxu0 0.0
        %2123 = vmatpush1.msra.mxu0 0.0
        %2124 = vmatprep.subr.mxu0 0.0
        %2125 = vmatpush1.msra.mxu0 0.0
        %2126 = vmatprep.subr.mxu0 0.0
        %2127 = vmatpush1.msra.mxu0 0.0
        %2128 = vmatprep.subr.mxu0 0.0
        %2129 = vmatpush1.msra.mxu0 0.0
        %2130 = vmatprep.subr.mxu0 0.0
        %2131 = vmatpush1.msra.mxu0 0.0
        %2132 = vmatprep.subr.mxu0 0.0
        %2133 = vmatpush1.msra.mxu0 0.0
        %2134 = vmatprep.subr.mxu0 0.0
        %2135 = vmatpush1.msra.mxu0 0.0
        %2136 = vmatprep.subr.mxu0 0.0
        %2137 = vmatpush1.msra.mxu0 0.0
        %2138 = vmatprep.subr.mxu0 0.0
        %2139 = vmatpush1.msra.mxu0 0.0
        %2140 = vmatprep.subr.mxu0 0.0
        %2141 = vmatpush1.msra.mxu0 0.0
        %2142 = vmatprep.subr.mxu0 0.0
        %2143 = vmatpush1.msra.mxu0 0.0
        %2144 = vmatprep.subr.mxu0 0.0
        %2145 = vmatpush1.msra.mxu0 0.0
        %2146 = vmatprep.subr.mxu0 0.0
        %2147 = vmatpush1.msra.mxu0 0.0
        %2148 = vmatprep.subr.mxu0 0.0
        %2149 = vmatpush1.msra.mxu0 0.0
        %2150 = vmatprep.subr.mxu0 0.0
        %2151 = vmatpush1.msra.mxu0 0.0
        %2152 = vmatprep.subr.mxu0 0.0
        %2153 = vmatpush1.msra.mxu0 0.0
        %2154 = vmatprep.subr.mxu0 0.0
        %2155 = vmatpush1.msra.mxu0 0.0
        %2156 = vmatprep.subr.mxu0 0.0
        %2157 = vmatpush1.msra.mxu0 0.0
        %2158 = vmatprep.subr.mxu0 0.0
        %2159 = vmatpush1.msra.mxu0 0.0
        %2160 = vmatprep.subr.mxu0 0.0
        %2161 = vmatpush1.msra.mxu0 0.0
        %2162 = vmatprep.subr.mxu0 0.0
        %2163 = vmatpush1.msra.mxu0 0.0
        %2164 = vmatprep.subr.mxu0 0.0
        %2165 = vmatpush1.msra.mxu0 0.0
        %2166 = vmatprep.mubr.f32.mxu0 0.0
        %2167 = vmatmul.mubr.f32.gmra.mrb[0].mxu0 %v2100
        %v2168 = vpop.f32.mrb[0].mxu0
        %v2169 = vadd.f32 0.0, %v2168
        %v2170 = vpop.f32.mrb[0].mxu0
        %2171 = vdwg.mxu0
        %2172 = vrot.lane.b32.xlu0 %v1663, 64
        %v2173 = vpop.permute.xlu0 %2172
        %v2176 = vsel %vm1032, %v2018, 0
        %2178 = vmatprep.subr.mxu0 0.0
        %2179 = vmatpush1.msra.mxu0 %v2173
        %2180 = vmatprep.subr.mxu0 0.0
        %2181 = vmatpush1.msra.mxu0 0.0
        %2182 = vmatprep.subr.mxu0 0.0
        %2183 = vmatpush1.msra.mxu0 0.0
        %2184 = vmatprep.subr.mxu0 0.0
        %2185 = vmatpush1.msra.mxu0 0.0
        %2186 = vmatprep.subr.mxu0 0.0
        %2187 = vmatpush1.msra.mxu0 0.0
        %2188 = vmatprep.subr.mxu0 0.0
        %2189 = vmatpush1.msra.mxu0 0.0
        %2190 = vmatprep.subr.mxu0 0.0
        %2191 = vmatpush1.msra.mxu0 0.0
        %2192 = vmatprep.subr.mxu0 0.0
        %2193 = vmatpush1.msra.mxu0 0.0
        %2194 = vmatprep.subr.mxu0 0.0
        %2195 = vmatpush1.msra.mxu0 0.0
        %2196 = vmatprep.subr.mxu0 0.0
        %2197 = vmatpush1.msra.mxu0 0.0
        %2198 = vmatprep.subr.mxu0 0.0
        %2199 = vmatpush1.msra.mxu0 0.0
        %2200 = vmatprep.subr.mxu0 0.0
        %2201 = vmatpush1.msra.mxu0 0.0
        %2202 = vmatprep.subr.mxu0 0.0
        %2203 = vmatpush1.msra.mxu0 0.0
        %2204 = vmatprep.subr.mxu0 0.0
        %2205 = vmatpush1.msra.mxu0 0.0
        %2206 = vmatprep.subr.mxu0 0.0
        %2207 = vmatpush1.msra.mxu0 0.0
        %2208 = vmatprep.subr.mxu0 0.0
        %2209 = vmatpush1.msra.mxu0 0.0
        %2210 = vmatprep.subr.mxu0 0.0
        %2211 = vmatpush1.msra.mxu0 0.0
        %2212 = vmatprep.subr.mxu0 0.0
        %2213 = vmatpush1.msra.mxu0 0.0
        %2214 = vmatprep.subr.mxu0 0.0
        %2215 = vmatpush1.msra.mxu0 0.0
        %2216 = vmatprep.subr.mxu0 0.0
        %2217 = vmatpush1.msra.mxu0 0.0
        %2218 = vmatprep.subr.mxu0 0.0
        %2219 = vmatpush1.msra.mxu0 0.0
        %2220 = vmatprep.subr.mxu0 0.0
        %2221 = vmatpush1.msra.mxu0 0.0
        %2222 = vmatprep.subr.mxu0 0.0
        %2223 = vmatpush1.msra.mxu0 0.0
        %2224 = vmatprep.subr.mxu0 0.0
        %2225 = vmatpush1.msra.mxu0 0.0
        %2226 = vmatprep.subr.mxu0 0.0
        %2227 = vmatpush1.msra.mxu0 0.0
        %2228 = vmatprep.subr.mxu0 0.0
        %2229 = vmatpush1.msra.mxu0 0.0
        %2230 = vmatprep.subr.mxu0 0.0
        %2231 = vmatpush1.msra.mxu0 0.0
        %2232 = vmatprep.subr.mxu0 0.0
        %2233 = vmatpush1.msra.mxu0 0.0
        %2234 = vmatprep.subr.mxu0 0.0
        %2235 = vmatpush1.msra.mxu0 0.0
        %2236 = vmatprep.subr.mxu0 0.0
        %2237 = vmatpush1.msra.mxu0 0.0
        %2238 = vmatprep.subr.mxu0 0.0
        %2239 = vmatpush1.msra.mxu0 0.0
        %2240 = vmatprep.subr.mxu0 0.0
        %2241 = vmatpush1.msra.mxu0 0.0
        %2242 = vmatprep.mubr.f32.mxu0 0.0
        %2243 = vmatmul.mubr.f32.gmra.mrb[0].mxu0 %v2176
        %v2244 = vpop.f32.mrb[0].mxu0
        %v2245 = vadd.f32 0.0, %v2244
        %v2246 = vpop.f32.mrb[0].mxu0
        %2247 = vdwg.mxu0
        %2248 = vrot.lane.b32.xlu0 %v1665, 64
        %v2249 = vpop.permute.xlu0 %2248
        %v2252 = vsel %vm1032, %v2019, 0
        %2254 = vmatprep.subr.mxu0 0.0
        %2255 = vmatpush1.msra.mxu0 %v2249
        %2256 = vmatprep.subr.mxu0 0.0
        %2257 = vmatpush1.msra.mxu0 0.0
        %2258 = vmatprep.subr.mxu0 0.0
        %2259 = vmatpush1.msra.mxu0 0.0
        %2260 = vmatprep.subr.mxu0 0.0
        %2261 = vmatpush1.msra.mxu0 0.0
        %2262 = vmatprep.subr.mxu0 0.0
        %2263 = vmatpush1.msra.mxu0 0.0
        %2264 = vmatprep.subr.mxu0 0.0
        %2265 = vmatpush1.msra.mxu0 0.0
        %2266 = vmatprep.subr.mxu0 0.0
        %2267 = vmatpush1.msra.mxu0 0.0
        %2268 = vmatprep.subr.mxu0 0.0
        %2269 = vmatpush1.msra.mxu0 0.0
        %2270 = vmatprep.subr.mxu0 0.0
        %2271 = vmatpush1.msra.mxu0 0.0
        %2272 = vmatprep.subr.mxu0 0.0
        %2273 = vmatpush1.msra.mxu0 0.0
        %2274 = vmatprep.subr.mxu0 0.0
        %2275 = vmatpush1.msra.mxu0 0.0
        %2276 = vmatprep.subr.mxu0 0.0
        %2277 = vmatpush1.msra.mxu0 0.0
        %2278 = vmatprep.subr.mxu0 0.0
        %2279 = vmatpush1.msra.mxu0 0.0
        %2280 = vmatprep.subr.mxu0 0.0
        %2281 = vmatpush1.msra.mxu0 0.0
        %2282 = vmatprep.subr.mxu0 0.0
        %2283 = vmatpush1.msra.mxu0 0.0
        %2284 = vmatprep.subr.mxu0 0.0
        %2285 = vmatpush1.msra.mxu0 0.0
        %2286 = vmatprep.subr.mxu0 0.0
        %2287 = vmatpush1.msra.mxu0 0.0
        %2288 = vmatprep.subr.mxu0 0.0
        %2289 = vmatpush1.msra.mxu0 0.0
        %2290 = vmatprep.subr.mxu0 0.0
        %2291 = vmatpush1.msra.mxu0 0.0
        %2292 = vmatprep.subr.mxu0 0.0
        %2293 = vmatpush1.msra.mxu0 0.0
        %2294 = vmatprep.subr.mxu0 0.0
        %2295 = vmatpush1.msra.mxu0 0.0
        %2296 = vmatprep.subr.mxu0 0.0
        %2297 = vmatpush1.msra.mxu0 0.0
        %2298 = vmatprep.subr.mxu0 0.0
        %2299 = vmatpush1.msra.mxu0 0.0
        %2300 = vmatprep.subr.mxu0 0.0
        %2301 = vmatpush1.msra.mxu0 0.0
        %2302 = vmatprep.subr.mxu0 0.0
        %2303 = vmatpush1.msra.mxu0 0.0
        %2304 = vmatprep.subr.mxu0 0.0
        %2305 = vmatpush1.msra.mxu0 0.0
        %2306 = vmatprep.subr.mxu0 0.0
        %2307 = vmatpush1.msra.mxu0 0.0
        %2308 = vmatprep.subr.mxu0 0.0
        %2309 = vmatpush1.msra.mxu0 0.0
        %2310 = vmatprep.subr.mxu0 0.0
        %2311 = vmatpush1.msra.mxu0 0.0
        %2312 = vmatprep.subr.mxu0 0.0
        %2313 = vmatpush1.msra.mxu0 0.0
        %2314 = vmatprep.subr.mxu0 0.0
        %2315 = vmatpush1.msra.mxu0 0.0
        %2316 = vmatprep.subr.mxu0 0.0
        %2317 = vmatpush1.msra.mxu0 0.0
        %2318 = vmatprep.mubr.f32.mxu0 0.0
        %2319 = vmatmul.mubr.f32.gmra.mrb[0].mxu0 %v2252
        %v2320 = vpop.f32.mrb[0].mxu0
        %v2321 = vadd.f32 0.0, %v2320
        %v2322 = vpop.f32.mrb[0].mxu0
        %2323 = vdwg.mxu0
        %2325 = vrot.lane.b32.xlu0 %v2169, 16
        %v2326 = vpop.permute.xlu0 %2325
        %2329 = vrot.lane.b32.xlu0 %v2245, 32
        %v2330 = vpop.permute.xlu0 %2329
        %2333 = vrot.lane.b32.xlu0 %v2321, 48
        %v2334 = vpop.permute.xlu0 %2333
        %v2336 = vsel %vm721, %v2093, %v2326
        %v2337 = vsel %vm619, %v2336, %v2330
        %v2338 = vsel %vm1383, %v2337, %v2334
        %v2340 = vsel %vm1385, %v2338, 0
        %2342 = vmatprep.subr.mxu0 0.0
        %2343 = vmatpush1.msra.mxu0 %v1644
        %2344 = vmatprep.subr.mxu0 0.0
        %2345 = vmatpush1.msra.mxu0 %v1645
        %2346 = vmatprep.subr.mxu0 0.0
        %2347 = vmatpush1.msra.mxu0 %v1646
        %2348 = vmatprep.subr.mxu0 0.0
        %2349 = vmatpush1.msra.mxu0 %v1647
        %2350 = vmatprep.subr.mxu0 0.0
        %2351 = vmatpush1.msra.mxu0 %v1648
        %2352 = vmatprep.subr.mxu0 0.0
        %2353 = vmatpush1.msra.mxu0 %v1649
        %2354 = vmatprep.subr.mxu0 0.0
        %2355 = vmatpush1.msra.mxu0 %v1650
        %2356 = vmatprep.subr.mxu0 0.0
        %2357 = vmatpush1.msra.mxu0 %v1651
        %2358 = vmatprep.subr.mxu0 0.0
        %2359 = vmatpush1.msra.mxu0 0.0
        %2360 = vmatprep.subr.mxu0 0.0
        %2361 = vmatpush1.msra.mxu0 0.0
        %2362 = vmatprep.subr.mxu0 0.0
        %2363 = vmatpush1.msra.mxu0 0.0
        %2364 = vmatprep.subr.mxu0 0.0
        %2365 = vmatpush1.msra.mxu0 0.0
        %2366 = vmatprep.subr.mxu0 0.0
        %2367 = vmatpush1.msra.mxu0 0.0
        %2368 = vmatprep.subr.mxu0 0.0
        %2369 = vmatpush1.msra.mxu0 0.0
        %2370 = vmatprep.subr.mxu0 0.0
        %2371 = vmatpush1.msra.mxu0 0.0
        %2372 = vmatprep.subr.mxu0 0.0
        %2373 = vmatpush1.msra.mxu0 0.0
        %2374 = vmatprep.subr.mxu0 0.0
        %2375 = vmatpush1.msra.mxu0 0.0
        %2376 = vmatprep.subr.mxu0 0.0
        %2377 = vmatpush1.msra.mxu0 0.0
        %2378 = vmatprep.subr.mxu0 0.0
        %2379 = vmatpush1.msra.mxu0 0.0
        %2380 = vmatprep.subr.mxu0 0.0
        %2381 = vmatpush1.msra.mxu0 0.0
        %2382 = vmatprep.subr.mxu0 0.0
        %2383 = vmatpush1.msra.mxu0 0.0
        %2384 = vmatprep.subr.mxu0 0.0
        %2385 = vmatpush1.msra.mxu0 0.0
        %2386 = vmatprep.subr.mxu0 0.0
        %2387 = vmatpush1.msra.mxu0 0.0
        %2388 = vmatprep.subr.mxu0 0.0
        %2389 = vmatpush1.msra.mxu0 0.0
        %2390 = vmatprep.subr.mxu0 0.0
        %2391 = vmatpush1.msra.mxu0 0.0
        %2392 = vmatprep.subr.mxu0 0.0
        %2393 = vmatpush1.msra.mxu0 0.0
        %2394 = vmatprep.subr.mxu0 0.0
        %2395 = vmatpush1.msra.mxu0 0.0
        %2396 = vmatprep.subr.mxu0 0.0
        %2397 = vmatpush1.msra.mxu0 0.0
        %2398 = vmatprep.subr.mxu0 0.0
        %2399 = vmatpush1.msra.mxu0 0.0
        %2400 = vmatprep.subr.mxu0 0.0
        %2401 = vmatpush1.msra.mxu0 0.0
        %2402 = vmatprep.subr.mxu0 0.0
        %2403 = vmatpush1.msra.mxu0 0.0
        %2404 = vmatprep.subr.mxu0 0.0
        %2405 = vmatpush1.msra.mxu0 0.0
        %2406 = vmatprep.mubr.f32.mxu0 0.0
        %2407 = vmatmul.mubr.f32.gmra.mrb[0].mxu0 %v2340
        %v2408 = vpop.f32.mrb[0].mxu0
        %v2409 = vadd.f32 0.0, %v2408
        %v2410 = vpop.f32.mrb[0].mxu0
        %2411 = vdwg.mxu0
        %v2412 = vadd.f32 %v1489, %v2409
        %v2413 = vld [vmem:[%s14] sm:$0x1]
        %v2414 = vld [vmem:[%s15] sm:$0x1]
        %v2415 = vsel %vm619, %v2412, 0.0
        %2416 = vadd.xlane.f32.xlu0 %v2415
        %v2417 = vpop.xlane.xlu0 %2416
        %v2418 = vmul.f32 %v2417, %v1465
        %v2419 = vsub.f32 %v2412, %v2418
        %v2420 = vmul.f32 %v2419, %v2419
        %v2421 = vsel %vm619, %v2420, 0.0
        %2422 = vadd.xlane.f32.xlu0 %v2421
        %v2423 = vpop.xlane.xlu0 %2422
        %v2424 = vmul.f32 %v2423, %v1465
        %v2425 = vadd.f32 %v2424, 1e-05
        %v2426 = vrsqrt.pop %v2425
        %v2427 = vmul.f32 %v2419, %v2426
        %v2429 = vlaneseq
        %v2430 = vshrl.u32 %v2429, 7
        %v2431 = vsub.s32 0, %v2430
        %v2432 = vrot.slane %v2413, %v2431
        %v2434 = vmul.f32 %v2427, %v2432
        %v2436 = vlaneseq
        %v2437 = vshrl.u32 %v2436, 7
        %v2438 = vsub.s32 0, %v2437
        %v2439 = vrot.slane %v2414, %v2438
        %v2441 = vadd.f32 %v2434, %v2439
        %v2442 = vld [vmem:[%s8] sm:$0xff]
        %v2443 = vld [vmem:[%s8 + $0x8] sm:$0xff]
        %v2444 = vld [vmem:[%s8 + $0x10] sm:$0xff]
        %v2445 = vld [vmem:[%s8 + $0x18] sm:$0xff]
        %v2446 = vld [vmem:[%s9] sm:$0x1]
        %v2448 = vlaneseq
        %v2449 = vshrl.u32 %v2448, 7
        %v2450 = vsub.s32 0, %v2449
        %v2451 = vrot.slane %v2446, %v2450
        %v2454 = vsel %vm619, %v2441, 0
        %2456 = vmatprep.subr.mxu0 0.0
        %2457 = vmatpush1.msra.mxu0 %v2442
        %2458 = vmatprep.subr.mxu0 0.0
        %2459 = vmatpush1.msra.mxu0 %v2443
        %2460 = vmatprep.subr.mxu0 0.0
        %2461 = vmatpush1.msra.mxu0 %v2444
        %2462 = vmatprep.subr.mxu0 0.0
        %2463 = vmatpush1.msra.mxu0 %v2445
        %2464 = vmatprep.subr.mxu0 0.0
        %2465 = vmatpush1.msra.mxu0 0.0
        %2466 = vmatprep.subr.mxu0 0.0
        %2467 = vmatpush1.msra.mxu0 0.0
        %2468 = vmatprep.subr.mxu0 0.0
        %2469 = vmatpush1.msra.mxu0 0.0
        %2470 = vmatprep.subr.mxu0 0.0
        %2471 = vmatpush1.msra.mxu0 0.0
        %2472 = vmatprep.subr.mxu0 0.0
        %2473 = vmatpush1.msra.mxu0 0.0
        %2474 = vmatprep.subr.mxu0 0.0
        %2475 = vmatpush1.msra.mxu0 0.0
        %2476 = vmatprep.subr.mxu0 0.0
        %2477 = vmatpush1.msra.mxu0 0.0
        %2478 = vmatprep.subr.mxu0 0.0
        %2479 = vmatpush1.msra.mxu0 0.0
        %2480 = vmatprep.subr.mxu0 0.0
        %2481 = vmatpush1.msra.mxu0 0.0
        %2482 = vmatprep.subr.mxu0 0.0
        %2483 = vmatpush1.msra.mxu0 0.0
        %2484 = vmatprep.subr.mxu0 0.0
        %2485 = vmatpush1.msra.mxu0 0.0
        %2486 = vmatprep.subr.mxu0 0.0
        %2487 = vmatpush1.msra.mxu0 0.0
        %2488 = vmatprep.subr.mxu0 0.0
        %2489 = vmatpush1.msra.mxu0 0.0
        %2490 = vmatprep.subr.mxu0 0.0
        %2491 = vmatpush1.msra.mxu0 0.0
        %2492 = vmatprep.subr.mxu0 0.0
        %2493 = vmatpush1.msra.mxu0 0.0
        %2494 = vmatprep.subr.mxu0 0.0
        %2495 = vmatpush1.msra.mxu0 0.0
        %2496 = vmatprep.subr.mxu0 0.0
        %2497 = vmatpush1.msra.mxu0 0.0
        %2498 = vmatprep.subr.mxu0 0.0
        %2499 = vmatpush1.msra.mxu0 0.0
        %2500 = vmatprep.subr.mxu0 0.0
        %2501 = vmatpush1.msra.mxu0 0.0
        %2502 = vmatprep.subr.mxu0 0.0
        %2503 = vmatpush1.msra.mxu0 0.0
        %2504 = vmatprep.subr.mxu0 0.0
        %2505 = vmatpush1.msra.mxu0 0.0
        %2506 = vmatprep.subr.mxu0 0.0
        %2507 = vmatpush1.msra.mxu0 0.0
        %2508 = vmatprep.subr.mxu0 0.0
        %2509 = vmatpush1.msra.mxu0 0.0
        %2510 = vmatprep.subr.mxu0 0.0
        %2511 = vmatpush1.msra.mxu0 0.0
        %2512 = vmatprep.subr.mxu0 0.0
        %2513 = vmatpush1.msra.mxu0 0.0
        %2514 = vmatprep.subr.mxu0 0.0
        %2515 = vmatpush1.msra.mxu0 0.0
        %2516 = vmatprep.subr.mxu0 0.0
        %2517 = vmatpush1.msra.mxu0 0.0
        %2518 = vmatprep.subr.mxu0 0.0
        %2519 = vmatpush1.msra.mxu0 0.0
        %2520 = vmatprep.mubr.f32.mxu0 0.0
        %2521 = vmatmul.mubr.f32.gmra.mrb[0].mxu0 %v2454
        %v2522 = vpop.f32.mrb[0].mxu0
        %v2523 = vadd.f32 %v2451, %v2522
        %v2524 = vpop.f32.mrb[0].mxu0
        %2525 = vdwg.mxu0
        %v2526 = vmax.f32 %v2523, 0.0
        %v2527 = vld [vmem:[%s10] sm:$0xff]
        %v2528 = vld [vmem:[%s10 + $0x8] sm:$0xff]
        %v2529 = vld [vmem:[%s10 + $0x10] sm:$0xff]
        %v2530 = vld [vmem:[%s10 + $0x18] sm:$0xff]
        %v2531 = vld [vmem:[%s10 + $0x20] sm:$0xff]
        %v2532 = vld [vmem:[%s10 + $0x28] sm:$0xff]
        %v2533 = vld [vmem:[%s10 + $0x30] sm:$0xff]
        %v2534 = vld [vmem:[%s10 + $0x38] sm:$0xff]
        %v2535 = vld [vmem:[%s11] sm:$0x1]
        %v2537 = vlaneseq
        %v2538 = vshrl.u32 %v2537, 7
        %v2539 = vsub.s32 0, %v2538
        %v2540 = vrot.slane %v2535, %v2539
        %v2543 = vsel %vm1385, %v2526, 0
        %2545 = vmatprep.subr.mxu0 0.0
        %2546 = vmatpush1.msra.mxu0 %v2527
        %2547 = vmatprep.subr.mxu0 0.0
        %2548 = vmatpush1.msra.mxu0 %v2528
        %2549 = vmatprep.subr.mxu0 0.0
        %2550 = vmatpush1.msra.mxu0 %v2529
        %2551 = vmatprep.subr.mxu0 0.0
        %2552 = vmatpush1.msra.mxu0 %v2530
        %2553 = vmatprep.subr.mxu0 0.0
        %2554 = vmatpush1.msra.mxu0 %v2531
        %2555 = vmatprep.subr.mxu0 0.0
        %2556 = vmatpush1.msra.mxu0 %v2532
        %2557 = vmatprep.subr.mxu0 0.0
        %2558 = vmatpush1.msra.mxu0 %v2533
        %2559 = vmatprep.subr.mxu0 0.0
        %2560 = vmatpush1.msra.mxu0 %v2534
        %2561 = vmatprep.subr.mxu0 0.0
        %2562 = vmatpush1.msra.mxu0 0.0
        %2563 = vmatprep.subr.mxu0 0.0
        %2564 = vmatpush1.msra.mxu0 0.0
        %2565 = vmatprep.subr.mxu0 0.0
        %2566 = vmatpush1.msra.mxu0 0.0
        %2567 = vmatprep.subr.mxu0 0.0
        %2568 = vmatpush1.msra.mxu0 0.0
        %2569 = vmatprep.subr.mxu0 0.0
        %2570 = vmatpush1.msra.mxu0 0.0
        %2571 = vmatprep.subr.mxu0 0.0
        %2572 = vmatpush1.msra.mxu0 0.0
        %2573 = vmatprep.subr.mxu0 0.0
        %2574 = vmatpush1.msra.mxu0 0.0
        %2575 = vmatprep.subr.mxu0 0.0
        %2576 = vmatpush1.msra.mxu0 0.0
        %2577 = vmatprep.subr.mxu0 0.0
        %2578 = vmatpush1.msra.mxu0 0.0
        %2579 = vmatprep.subr.mxu0 0.0
        %2580 = vmatpush1.msra.mxu0 0.0
        %2581 = vmatprep.subr.mxu0 0.0
        %2582 = vmatpush1.msra.mxu0 0.0
        %2583 = vmatprep.subr.mxu0 0.0
        %2584 = vmatpush1.msra.mxu0 0.0
        %2585 = vmatprep.subr.mxu0 0.0
        %2586 = vmatpush1.msra.mxu0 0.0
        %2587 = vmatprep.subr.mxu0 0.0
        %2588 = vmatpush1.msra.mxu0 0.0
        %2589 = vmatprep.subr.mxu0 0.0
        %2590 = vmatpush1.msra.mxu0 0.0
        %2591 = vmatprep.subr.mxu0 0.0
        %2592 = vmatpush1.msra.mxu0 0.0
        %2593 = vmatprep.subr.mxu0 0.0
        %2594 = vmatpush1.msra.mxu0 0.0
        %2595 = vmatprep.subr.mxu0 0.0
        %2596 = vmatpush1.msra.mxu0 0.0
        %2597 = vmatprep.subr.mxu0 0.0
        %2598 = vmatpush1.msra.mxu0 0.0
        %2599 = vmatprep.subr.mxu0 0.0
        %2600 = vmatpush1.msra.mxu0 0.0
        %2601 = vmatprep.subr.mxu0 0.0
        %2602 = vmatpush1.msra.mxu0 0.0
        %2603 = vmatprep.subr.mxu0 0.0
        %2604 = vmatpush1.msra.mxu0 0.0
        %2605 = vmatprep.subr.mxu0 0.0
        %2606 = vmatpush1.msra.mxu0 0.0
        %2607 = vmatprep.subr.mxu0 0.0
        %2608 = vmatpush1.msra.mxu0 0.0
        %2609 = vmatprep.mubr.f32.mxu0 0.0
        %2610 = vmatmul.mubr.f32.gmra.mrb[0].mxu0 %v2543
        %v2611 = vpop.f32.mrb[0].mxu0
        %v2612 = vadd.f32 %v2540, %v2611
        %v2613 = vpop.f32.mrb[0].mxu0
        %2614 = vdwg.mxu0
        %v2615 = vadd.f32 %v2441, %v2612
        %v2616 = vld [vmem:[%s16] sm:$0x1]
        %v2617 = vld [vmem:[%s17] sm:$0x1]
        %v2618 = vsel %vm619, %v2615, 0.0
        %2619 = vadd.xlane.f32.xlu0 %v2618
        %v2620 = vpop.xlane.xlu0 %2619
        %v2621 = vmul.f32 %v2620, %v1465
        %v2622 = vsub.f32 %v2615, %v2621
        %v2623 = vmul.f32 %v2622, %v2622
        %v2624 = vsel %vm619, %v2623, 0.0
        %2625 = vadd.xlane.f32.xlu0 %v2624
        %v2626 = vpop.xlane.xlu0 %2625
        %v2627 = vmul.f32 %v2626, %v1465
        %v2628 = vadd.f32 %v2627, 1e-05
        %v2629 = vrsqrt.pop %v2628
        %v2630 = vmul.f32 %v2622, %v2629
        %v2632 = vlaneseq
        %v2633 = vshrl.u32 %v2632, 7
        %v2634 = vsub.s32 0, %v2633
        %v2635 = vrot.slane %v2616, %v2634
        %v2637 = vmul.f32 %v2630, %v2635
        %v2639 = vlaneseq
        %v2640 = vshrl.u32 %v2639, 7
        %v2641 = vsub.s32 0, %v2640
        %v2642 = vrot.slane %v2617, %v2641
        %v2644 = vadd.f32 %v2637, %v2642
        %2645 = vst.msk [vmem:[%s590] sm:$0xff] %vm619, %v2644
        %s2646 = sand.u32 %s433, 1
        %s2647 = scalar_lea.sflag [#allocation3], %s2646
        %s2648 = sand.u32 %s433, 1
        %s2649 = smul.addr %s2648, 8
        %s2650 = scalar_lea.vmem [#allocation2], %s2649
        // Predicated region
        $region93: #{tpu_custom_call.1} parent=91 // pred_check
          %p2651 = pneg %p443
        $region94: #{tpu_custom_call.1} parent=91 // pred_check_branch
          %2653 = sbr.rel (%p2651) target = $region96
        $region95: #{tpu_custom_call.1} parent=91 // pred_region
          %s2655 = ssub.s32 128, 128
          %2656 = vsyncadd %s2647, %s2655
          %s2657 = smul.addr %s32, 128
          %s2658 = scalar_lea.hbm %s18, %s2657
          %s2660 = sshll.u32 %s2650, 4
          %s2661 = int_to_ptr.vmem [resolvable:$true] %s2660
          %2663 = dma.vmem_to_hbm [thread:$0]  %s2661, 128, %s2658, %s2647
        $region96: #{tpu_custom_call.1} parent=91 // pred_fallthru
          _
      $region92: #{tpu_custom_call.1} parent=5 // pred_fallthru
        _
      %p2664 = scmp.le.s32.totalorder 2, %s27
      // Predicated region
      $region97: #{tpu_custom_call.1} parent=5 // pred_check
        %p2665 = pneg %p2664
      $region98: #{tpu_custom_call.1} parent=5 // pred_check_branch
        %2667 = sbr.rel (%p2665) target = $region100
      $region99: #{tpu_custom_call.1} parent=5 // pred_region
        %s2668 = ssub.s32 %s27, 2
        // Predicated region
        $region101: #{tpu_custom_call.1} parent=99 // pred_check
          %p2669 = pneg %p449
        $region102: #{tpu_custom_call.1} parent=99 // pred_check_branch
          %2671 = sbr.rel (%p2669) target = $region104
        $region103: #{tpu_custom_call.1} parent=99 // pred_region
          %s2672 = sand.u32 %s434, 1
          %s2673 = scalar_lea.sflag [#allocation3], %s2672
          %s2674 = sand.u32 %s434, 1
          %s2675 = smul.addr %s2674, 8
          %s2676 = scalar_lea.vmem [#allocation2], %s2675
          %2677 = dma.done %s2673, 128
        $region104: #{tpu_custom_call.1} parent=99 // pred_fallthru
          _
      $region100: #{tpu_custom_call.1} parent=5 // pred_fallthru
        _
    $region6: #{tpu_custom_call.1} parent=1 // loop_footer
      %s31 = sadd.s32 1, %s27
    $region7: #{tpu_custom_call.1} parent=1 // loop_footer_branch
      %26 = sbr.rel target = $region3
    $region8: #{tpu_custom_call.1} parent=1 // loop_exit
      _
    %2678 = vsyncpa [#allocation3], 1
    %s2679 = scalar_lea.sflag [#allocation3], 1
    %2680 = vsyncpa %s2679, 1

</llo_original>
